<compile_context>
chip_gen: v7x
topology: tpu7x:2x2x1
jax: 0.10.0
libtpu: 0.0.40
codegen_flags: <defaults>
</compile_context>

<pallas_src>
import functools

import jax
import jax.numpy as jnp
import numpy as np
from jax.experimental import pallas as pl
from jax.experimental.pallas import tpu as pltpu


# ----------------------------------------------------------------------------
# Kernels
# ----------------------------------------------------------------------------
def _coord_attn_wdense_kernel(x_ref, w1_ref, shift_ref, wx_ref, bx_ref,
                              wy_ref, by_ref, out_ref, *, nb, inv_w, inv_h):
    """W % 128 == 0 path.  Block layout (NB, C, H, W): W on lanes, H on
    sublanes, so the attention maps apply as pure VPU broadcasts."""
    for b in range(nb):                        # static unroll over the batch tile
        x32 = x_ref[b].astype(jnp.float32)     # (C,H,W); dead after the poolings
        xs = jnp.sum(x32, axis=2) * inv_w      # (C, H)  mean over W
        ys = jnp.sum(x32, axis=1) * inv_h      # (C, W)  mean over H
        zx = jnp.maximum(
            jnp.dot(w1_ref[...], xs, preferred_element_type=jnp.float32)
            + shift_ref[...], 0.0)             # (Ccp, H)
        zy = jnp.maximum(
            jnp.dot(w1_ref[...], ys, preferred_element_type=jnp.float32)
            + shift_ref[...], 0.0)             # (Ccp, W)
        xa = jax.nn.sigmoid(
            jnp.dot(wx_ref[...], zx, preferred_element_type=jnp.float32)
            + bx_ref[...])                     # (C, H)
        ya = jax.nn.sigmoid(
            jnp.dot(wy_ref[...], zy, preferred_element_type=jnp.float32)
            + by_ref[...])                     # (C, W)
        out_ref[b] = (x_ref[b].astype(jnp.float32)
                      * xa[:, :, None]         # lane broadcast
                      * ya[:, None, :]         # sublane broadcast
                      ).astype(out_ref.dtype)


def _coord_attn_flat_kernel(x_ref, poolh_ref, poolw_ref, bch_ref, bcw_ref,
                            w1_ref, shift_ref, wx_ref, bx_ref, wy_ref, by_ref,
                            out_ref, *, nb, inv_w, inv_h, bcast_dtype):
    """Fallback (W < 128): lane-dense (C, HWp) slab; poolings and attention
    broadcasts ride the MXU via 0/1 matrices held in the input dtype."""
    for b in range(nb):
        xs = jnp.dot(x_ref[b], poolh_ref[...],
                     preferred_element_type=jnp.float32) * inv_w    # (C, H)
        ys = jnp.dot(x_ref[b], poolw_ref[...],
                     preferred_element_type=jnp.float32) * inv_h    # (C, W)
        zx = jnp.maximum(
            jnp.dot(w1_ref[...], xs, preferred_element_type=jnp.float32)
            + shift_ref[...], 0.0)                                  # (Ccp, H)
        zy = jnp.maximum(
            jnp.dot(w1_ref[...], ys, preferred_element_type=jnp.float32)
            + shift_ref[...], 0.0)                                  # (Ccp, W)
        xa = jax.nn.sigmoid(
            jnp.dot(wx_ref[...], zx, preferred_element_type=jnp.float32)
            + bx_ref[...])                                          # (C, H)
        ya = jax.nn.sigmoid(
            jnp.dot(wy_ref[...], zy, preferred_element_type=jnp.float32)
            + by_ref[...])                                          # (C, W)
        xab = jnp.dot(xa.astype(bcast_dtype), bch_ref[...],
                      preferred_element_type=jnp.float32)           # (C, HWp)
        yab = jnp.dot(ya.astype(bcast_dtype), bcw_ref[...],
                      preferred_element_type=jnp.float32)           # (C, HWp)
        out_ref[b] = (x_ref[b].astype(jnp.float32) * xab * yab).astype(out_ref.dtype)


# ----------------------------------------------------------------------------
# Helpers
# ----------------------------------------------------------------------------
def _round_up(v, m):
    return (v + m - 1) // m * m


def _pad_axis_to(a, axis, size):
    pad = size - a.shape[axis]
    if pad <= 0:
        return a
    widths = [(0, 0)] * a.ndim
    widths[axis] = (0, pad)
    return jnp.pad(a, widths)


def _prep_weights(params):
    """Fold BN scale into the shared conv and zero-pad the compressed channel
    dim to a multiple of 8 sublanes (extra rows -> relu(0)=0, and the matching
    extra wx/wy columns are zero -> output unchanged)."""
    w1, scale, shift, wx, bx, wy, by = params
    w1s = w1 * scale
    ccp = _round_up(w1s.shape[0], 8)
    return (_pad_axis_to(w1s, 0, ccp), _pad_axis_to(shift, 0, ccp),
            _pad_axis_to(wx, 1, ccp), bx, _pad_axis_to(wy, 1, ccp), by, ccp)


def _pick_nb(n, per_elem_bytes, target_bytes=2 << 20, max_nb=16):
    """Largest divisor of n (<= max_nb) whose batched slab stays <= ~2 MiB —
    amortizes per-grid-step overhead for small feature maps."""
    best = 1
    for d in range(1, min(n, max_nb) + 1):
        if n % d == 0 and d * per_elem_bytes <= max(target_bytes, per_elem_bytes):
            best = d
    return best


def _vmem_ceiling():
    """Generation-aware ceiling (~96 MiB on v5e/v6e, ~48 MiB on v7x)."""
    try:
        cap = int(pltpu.get_tpu_info().vmem_capacity_bytes)
    except Exception:
        cap = 128 << 20
    return max(32 << 20, (cap * 3) // 4)


def _run_with_fallback(call):
    """Try single-buffered constants (pl.Buffered(1)) first; fall back to the
    default double-buffered specs if the installed Pallas rejects it."""
    try:
        return jax.block_until_ready(call(True))
    except Exception:
        return jax.block_until_ready(call(False))


# ----------------------------------------------------------------------------
# Wrappers
# ----------------------------------------------------------------------------
def _coord_attention_wdense(x, params):
    N, C, H, W = x.shape
    dtype = x.dtype
    item = jnp.dtype(dtype).itemsize
    w1s, shift, wx, bx, wy, by, ccp = _prep_weights(params)

    nb = _pick_nb(N, C * H * W * item)
    grid = (N // nb,)
    kernel = functools.partial(_coord_attn_wdense_kernel, nb=nb,
                               inv_w=1.0 / W, inv_h=1.0 / H)

    slab = nb * C * H * W * item
    wts = (ccp * C + ccp + 2 * (C * ccp + C)) * 4

    def call(single_buffer_consts):
        cbuf = 1 if single_buffer_consts else 2
        spec_kw = ({"pipeline_mode": pl.Buffered(buffer_count=1)}
                   if single_buffer_consts else {})

        def const_spec(shape):
            return pl.BlockSpec(shape, lambda b, n=len(shape): (0,) * n, **spec_kw)

        vmem_needed = 4 * slab + cbuf * wts + 4 * C * H * W * 4 + (2 << 20)
        vmem_limit = int(min(max(vmem_needed, 32 << 20), _vmem_ceiling()))
        return pl.pallas_call(
            kernel,
            out_shape=jax.ShapeDtypeStruct((N, C, H, W), dtype),
            grid=grid,
            in_specs=[
                pl.BlockSpec((nb, C, H, W), lambda b: (b, 0, 0, 0)),
                const_spec((ccp, C)), const_spec((ccp, 1)),
                const_spec((C, ccp)), const_spec((C, 1)),
                const_spec((C, ccp)), const_spec((C, 1)),
            ],
            out_specs=pl.BlockSpec((nb, C, H, W), lambda b: (b, 0, 0, 0)),
            compiler_params=pltpu.CompilerParams(
                dimension_semantics=("parallel",),
                vmem_limit_bytes=vmem_limit),
        )(x, w1s, shift, wx, bx, wy, by)

    return _run_with_fallback(call)


def _coord_attention_flat(x, params):
    N, C, H, W = x.shape
    HW = H * W
    HWp = _round_up(HW, 128)
    dtype = x.dtype
    item = jnp.dtype(dtype).itemsize
    w1s, shift, wx, bx, wy, by, ccp = _prep_weights(params)

    # Structured 0/1 pooling / broadcast matrices in the input dtype (exact in
    # bf16 since entries are 0/1; the 1/W, 1/H mean scales are applied in f32
    # inside the kernel).  Rows/cols of the HW-padding region are zero.
    pos = np.arange(HWp)
    hi, wi = pos // W, pos % W
    valid = pos < HW
    bch_np = ((hi[None, :] == np.arange(H)[:, None]) & valid[None, :]).astype(np.float32)
    bcw_np = ((wi[None, :] == np.arange(W)[:, None]) & valid[None, :]).astype(np.float32)
    poolh = jnp.asarray(bch_np.T, dtype)   # (HWp, H)
    poolw = jnp.asarray(bcw_np.T, dtype)   # (HWp, W)
    bch = jnp.asarray(bch_np, dtype)       # (H, HWp)
    bcw = jnp.asarray(bcw_np, dtype)       # (W, HWp)

    x_flat = x.reshape(N, C, HW)
    if HWp != HW:
        x_flat = jnp.pad(x_flat, ((0, 0), (0, 0), (0, HWp - HW)))

    nb = _pick_nb(N, C * HWp * item)
    grid = (N // nb,)
    kernel = functools.partial(_coord_attn_flat_kernel, nb=nb,
                               inv_w=1.0 / W, inv_h=1.0 / H, bcast_dtype=dtype)

    slab = nb * C * HWp * item
    mats = 2 * HWp * (H + W) * item
    wts = (ccp * C + ccp + 2 * (C * ccp + C)) * 4

    def call(single_buffer_consts):
        cbuf = 1 if single_buffer_consts else 2
        spec_kw = ({"pipeline_mode": pl.Buffered(buffer_count=1)}
                   if single_buffer_consts else {})

        def const_spec(shape):
            return pl.BlockSpec(shape, lambda b, n=len(shape): (0,) * n, **spec_kw)

        vmem_needed = 4 * slab + cbuf * (mats + wts) + 5 * C * HWp * 4 + (2 << 20)
        vmem_limit = int(min(max(vmem_needed, 32 << 20), _vmem_ceiling()))
        return pl.pallas_call(
            kernel,
            out_shape=jax.ShapeDtypeStruct((N, C, HWp), dtype),
            grid=grid,
            in_specs=[
                pl.BlockSpec((nb, C, HWp), lambda b: (b, 0, 0)),
                const_spec((HWp, H)), const_spec((HWp, W)),
                const_spec((H, HWp)), const_spec((W, HWp)),
                const_spec((ccp, C)), const_spec((ccp, 1)),
                const_spec((C, ccp)), const_spec((C, 1)),
                const_spec((C, ccp)), const_spec((C, 1)),
            ],
            out_specs=pl.BlockSpec((nb, C, HWp), lambda b: (b, 0, 0)),
            compiler_params=pltpu.CompilerParams(
                dimension_semantics=("parallel",),
                vmem_limit_bytes=vmem_limit),
        )(x_flat, poolh, poolw, bch, bcw, w1s, shift, wx, bx, wy, by)

    out_flat = _run_with_fallback(call)
    if HWp != HW:
        out_flat = out_flat[:, :, :HW]
    return out_flat.reshape(N, C, H, W)


def coordinate_attention_2d(x, params):
    """x: (N, C, H, W), float32 or bfloat16.  Matches the PyTorch module's
    forward pass (BatchNorm in eval mode, folded into the shared 1x1 conv)."""
    # TODO(synk): v7x streaming path — when C*H*W is too large to keep the whole
    # slab VMEM-resident (64 MiB/TC), keep x/out in memory_space=pl.ANY and
    # stream H-tiles with pltpu.emit_pipeline (pooling pass + apply pass).
    # TODO(synk): add a second "parallel" grid axis over channel/H tiles of the
    # apply phase so both v7x TensorCores are fed when N == 1 or N is odd.
    if x.shape[3] % 128 == 0:
        try:
            return _coord_attention_wdense(x, params)
        except Exception:
            pass   # fall back to the lane-dense matmul-broadcast path
    return _coord_attention_flat(x, params)


# ----------------------------------------------------------------------------
# Parameters & pure-JAX reference
# ----------------------------------------------------------------------------
def init_params(key, in_dim, reduction_ratio=1):
    """Deterministic synthetic parameters matching the PyTorch module's shapes.
    BatchNorm is evaluated in eval mode and folded into (scale, shift)."""
    cc = int(in_dim // reduction_ratio)
    ks = jax.random.split(key, 9)
    w1 = jax.random.normal(ks[0], (cc, in_dim), jnp.float32) * 0.2
    gamma = 1.0 + 0.1 * jax.random.normal(ks[1], (cc, 1), jnp.float32)
    beta = 0.1 * jax.random.normal(ks[2], (cc, 1), jnp.float32)
    running_mean = 0.1 * jax.random.normal(ks[3], (cc, 1), jnp.float32)
    running_var = 1.0 + 0.1 * jnp.abs(jax.random.normal(ks[4], (cc, 1), jnp.float32))
    eps = 1e-5
    scale = gamma / jnp.sqrt(running_var + eps)
    shift = beta - running_mean * scale

    wx = jax.random.normal(ks[5], (in_dim, cc), jnp.float32) * 0.2
    bx = 0.1 * jax.random.normal(ks[6], (in_dim, 1), jnp.float32)
    wy = jax.random.normal(ks[7], (in_dim, cc), jnp.float32) * 0.2
    by = 0.1 * jax.random.normal(ks[8], (in_dim, 1), jnp.float32)
    return (w1, scale, shift, wx, bx, wy, by)


def reference(x, params):
    """Pure-JAX reference reproducing the PyTorch forward semantics."""
    w1, scale, shift, wx, bx, wy, by = params
    N, C, H, W = x.shape
    xp = x.mean(axis=3)                                  # (N, C, H)   mean over W
    yp = x.mean(axis=2)                                  # (N, C, W)   mean over H
    cat = jnp.concatenate([xp, yp], axis=2)              # (N, C, H+W)
    z = jnp.einsum('oc,ncl->nol', w1, cat)
    z = jnp.maximum(z * scale[None] + shift[None], 0.0)
    zx, zy = z[:, :, :H], z[:, :, H:]
    xa = jax.nn.sigmoid(jnp.einsum('oc,ncl->nol', wx, zx) + bx[None])  # (N, C, H)
    ya = jax.nn.sigmoid(jnp.einsum('oc,ncl->nol', wy, zy) + by[None])  # (N, C, W)
    return x * xa[:, :, :, None] * ya[:, :, None, :]


# ----------------------------------------------------------------------------
# Self-test
# ----------------------------------------------------------------------------
if __name__ == "__main__":
    key = jax.random.PRNGKey(0)
    k1, k2, k3, k4 = jax.random.split(key, 4)

    # --- main case: lane-dense flat path, 2 batch elements per grid step ----
    N, C, H, W = 2, 4, 16, 16
    x = jax.random.normal(k1, (N, C, H, W), jnp.float32)
    params = init_params(k2, in_dim=C, reduction_ratio=1)
    out = jax.block_until_ready(coordinate_attention_2d(x, params))
    ref = reference(x, params)
    np.testing.assert_allclose(np.asarray(out), np.asarray(ref), rtol=1e-4, atol=1e-5)

    # bf16 I/O (halves HBM traffic; bf16 MXU for the structured matmuls).
    out_bf = jax.block_until_ready(
        coordinate_attention_2d(x.astype(jnp.bfloat16), params))
    ref_bf = reference(x.astype(jnp.bfloat16).astype(jnp.float32), params)
    np.testing.assert_allclose(np.asarray(out_bf.astype(jnp.float32)),
                               np.asarray(ref_bf), rtol=5e-2, atol=5e-2)

    # --- W % 128 == 0: vreg-broadcast path (no broadcast matmuls) -----------
    x2 = jax.random.normal(k3, (1, 8, 8, 128), jnp.float32)
    params2 = init_params(k4, in_dim=8, reduction_ratio=2)   # exercises Cc padding
    out2 = jax.block_until_ready(coordinate_attention_2d(x2, params2))
    ref2 = reference(x2, params2)
    np.testing.assert_allclose(np.asarray(out2), np.asarray(ref2), rtol=1e-4, atol=1e-5)

    # --- H*W not a multiple of 128: padded lane-dense path ------------------
    x3 = jax.random.normal(k1, (2, 4, 6, 10), jnp.float32)
    out3 = jax.block_until_ready(coordinate_attention_2d(x3, params))
    ref3 = reference(x3, params)
    np.testing.assert_allclose(np.asarray(out3), np.asarray(ref3), rtol=1e-4, atol=1e-5)

    print("KERNEL_OK")
</pallas_src>

<mosaic_0001>
module attributes {stable_mosaic.version = 11 : i64} {
  func.func @_coord_attn_flat_kernel(%arg0: i32, %arg1: memref<2x4x256xf32, #tpu.memory_space<vmem>>, %arg2: memref<256x16xf32, #tpu.memory_space<vmem>>, %arg3: memref<256x16xf32, #tpu.memory_space<vmem>>, %arg4: memref<16x256xf32, #tpu.memory_space<vmem>>, %arg5: memref<16x256xf32, #tpu.memory_space<vmem>>, %arg6: memref<8x4xf32, #tpu.memory_space<vmem>>, %arg7: memref<8x1xf32, #tpu.memory_space<vmem>>, %arg8: memref<4x8xf32, #tpu.memory_space<vmem>>, %arg9: memref<4x1xf32, #tpu.memory_space<vmem>>, %arg10: memref<4x8xf32, #tpu.memory_space<vmem>>, %arg11: memref<4x1xf32, #tpu.memory_space<vmem>>, %arg12: memref<2x4x256xf32, #tpu.memory_space<vmem>>) attributes {dimension_semantics = [#tpu.dimension_semantics<parallel>], iteration_bounds = array<i64: 1>, scalar_prefetch = 0 : i64, scratch_operands = 0 : i64, tpu.core_type = #tpu.core_type<tc>, window_params = [{transform_indices = @transform_0, window_bounds = array<i64: 2, 4, 256>}, {pipeline_mode = #tpu.pipeline_mode<synchronous>, transform_indices = @transform_1, window_bounds = array<i64: 256, 16>}, {pipeline_mode = #tpu.pipeline_mode<synchronous>, transform_indices = @transform_2, window_bounds = array<i64: 256, 16>}, {pipeline_mode = #tpu.pipeline_mode<synchronous>, transform_indices = @transform_3, window_bounds = array<i64: 16, 256>}, {pipeline_mode = #tpu.pipeline_mode<synchronous>, transform_indices = @transform_4, window_bounds = array<i64: 16, 256>}, {pipeline_mode = #tpu.pipeline_mode<synchronous>, transform_indices = @transform_5, window_bounds = array<i64: 8, 4>}, {pipeline_mode = #tpu.pipeline_mode<synchronous>, transform_indices = @transform_6, window_bounds = array<i64: 8, 1>}, {pipeline_mode = #tpu.pipeline_mode<synchronous>, transform_indices = @transform_7, window_bounds = array<i64: 4, 8>}, {pipeline_mode = #tpu.pipeline_mode<synchronous>, transform_indices = @transform_8, window_bounds = array<i64: 4, 1>}, {pipeline_mode = #tpu.pipeline_mode<synchronous>, transform_indices = @transform_9, window_bounds = array<i64: 4, 8>}, {pipeline_mode = #tpu.pipeline_mode<synchronous>, transform_indices = @transform_10, window_bounds = array<i64: 4, 1>}, {transform_indices = @transform_11, window_bounds = array<i64: 2, 4, 256>}]} {
    %c0 = arith.constant 0 : index
    %c0_0 = arith.constant 0 : index
    %c0_1 = arith.constant 0 : index
    %0 = vector.load %arg1[%c0, %c0_0, %c0_1] : memref<2x4x256xf32, #tpu.memory_space<vmem>>, vector<1x4x256xf32>
    %1 = vector.shape_cast %0 : vector<1x4x256xf32> to vector<4x256xf32>
    %c0_2 = arith.constant 0 : index
    %c0_3 = arith.constant 0 : index
    %2 = vector.load %arg2[%c0_2, %c0_3] : memref<256x16xf32, #tpu.memory_space<vmem>>, vector<256x16xf32>
    %cst = arith.constant dense<0.000000e+00> : vector<4x16xf32>
    %3 = tpu.matmul %1, %2, %cst {dimension_numbers = #tpu.dot_dimension_numbers<[1], [0], [0], [1], [0, 0, 1, 1], [], []>} : vector<4x256xf32>, vector<256x16xf32>, vector<4x16xf32> -> vector<4x16xf32>
    %cst_4 = arith.constant 6.250000e-02 : f32
    %4 = vector.broadcast %cst_4 : f32 to vector<4x16xf32>
    %5 = arith.mulf %3, %4 : vector<4x16xf32>
    %c0_5 = arith.constant 0 : index
    %c0_6 = arith.constant 0 : index
    %c0_7 = arith.constant 0 : index
    %6 = vector.load %arg1[%c0_5, %c0_6, %c0_7] : memref<2x4x256xf32, #tpu.memory_space<vmem>>, vector<1x4x256xf32>
    %7 = vector.shape_cast %6 : vector<1x4x256xf32> to vector<4x256xf32>
    %c0_8 = arith.constant 0 : index
    %c0_9 = arith.constant 0 : index
    %8 = vector.load %arg3[%c0_8, %c0_9] : memref<256x16xf32, #tpu.memory_space<vmem>>, vector<256x16xf32>
    %cst_10 = arith.constant dense<0.000000e+00> : vector<4x16xf32>
    %9 = tpu.matmul %7, %8, %cst_10 {dimension_numbers = #tpu.dot_dimension_numbers<[1], [0], [0], [1], [0, 0, 1, 1], [], []>} : vector<4x256xf32>, vector<256x16xf32>, vector<4x16xf32> -> vector<4x16xf32>
    %cst_11 = arith.constant 6.250000e-02 : f32
    %10 = vector.broadcast %cst_11 : f32 to vector<4x16xf32>
    %11 = arith.mulf %9, %10 : vector<4x16xf32>
    %c0_12 = arith.constant 0 : index
    %c0_13 = arith.constant 0 : index
    %12 = vector.load %arg6[%c0_12, %c0_13] : memref<8x4xf32, #tpu.memory_space<vmem>>, vector<8x4xf32>
    %cst_14 = arith.constant dense<0.000000e+00> : vector<8x16xf32>
    %13 = tpu.matmul %12, %5, %cst_14 {dimension_numbers = #tpu.dot_dimension_numbers<[1], [0], [0], [1], [0, 0, 1, 1], [], []>} : vector<8x4xf32>, vector<4x16xf32>, vector<8x16xf32> -> vector<8x16xf32>
    %c0_15 = arith.constant 0 : index
    %c0_16 = arith.constant 0 : index
    %14 = vector.load %arg7[%c0_15, %c0_16] : memref<8x1xf32, #tpu.memory_space<vmem>>, vector<8x1xf32>
    %15 = vector.broadcast %14 : vector<8x1xf32> to vector<8x16xf32>
    %16 = arith.addf %13, %15 : vector<8x16xf32>
    %cst_17 = arith.constant 0.000000e+00 : f32
    %17 = vector.broadcast %cst_17 : f32 to vector<8x16xf32>
    %18 = arith.maximumf %16, %17 : vector<8x16xf32>
    %c0_18 = arith.constant 0 : index
    %c0_19 = arith.constant 0 : index
    %19 = vector.load %arg6[%c0_18, %c0_19] : memref<8x4xf32, #tpu.memory_space<vmem>>, vector<8x4xf32>
    %cst_20 = arith.constant dense<0.000000e+00> : vector<8x16xf32>
    %20 = tpu.matmul %19, %11, %cst_20 {dimension_numbers = #tpu.dot_dimension_numbers<[1], [0], [0], [1], [0, 0, 1, 1], [], []>} : vector<8x4xf32>, vector<4x16xf32>, vector<8x16xf32> -> vector<8x16xf32>
    %c0_21 = arith.constant 0 : index
    %c0_22 = arith.constant 0 : index
    %21 = vector.load %arg7[%c0_21, %c0_22] : memref<8x1xf32, #tpu.memory_space<vmem>>, vector<8x1xf32>
    %22 = vector.broadcast %21 : vector<8x1xf32> to vector<8x16xf32>
    %23 = arith.addf %20, %22 : vector<8x16xf32>
    %cst_23 = arith.constant 0.000000e+00 : f32
    %24 = vector.broadcast %cst_23 : f32 to vector<8x16xf32>
    %25 = arith.maximumf %23, %24 : vector<8x16xf32>
    %c0_24 = arith.constant 0 : index
    %c0_25 = arith.constant 0 : index
    %26 = vector.load %arg8[%c0_24, %c0_25] : memref<4x8xf32, #tpu.memory_space<vmem>>, vector<4x8xf32>
    %cst_26 = arith.constant dense<0.000000e+00> : vector<4x16xf32>
    %27 = tpu.matmul %26, %18, %cst_26 {dimension_numbers = #tpu.dot_dimension_numbers<[1], [0], [0], [1], [0, 0, 1, 1], [], []>} : vector<4x8xf32>, vector<8x16xf32>, vector<4x16xf32> -> vector<4x16xf32>
    %c0_27 = arith.constant 0 : index
    %c0_28 = arith.constant 0 : index
    %28 = vector.load %arg9[%c0_27, %c0_28] : memref<4x1xf32, #tpu.memory_space<vmem>>, vector<4x1xf32>
    %29 = vector.broadcast %28 : vector<4x1xf32> to vector<4x16xf32>
    %30 = arith.addf %27, %29 : vector<4x16xf32>
    %31 = arith.negf %30 : vector<4x16xf32>
    %32 = math.exp %31 : vector<4x16xf32>
    %cst_29 = arith.constant 1.000000e+00 : f32
    %33 = vector.broadcast %cst_29 : f32 to vector<4x16xf32>
    %34 = arith.addf %33, %32 : vector<4x16xf32>
    %35 = arith.divf %33, %34 : vector<4x16xf32>
    %c0_30 = arith.constant 0 : index
    %c0_31 = arith.constant 0 : index
    %36 = vector.load %arg10[%c0_30, %c0_31] : memref<4x8xf32, #tpu.memory_space<vmem>>, vector<4x8xf32>
    %cst_32 = arith.constant dense<0.000000e+00> : vector<4x16xf32>
    %37 = tpu.matmul %36, %25, %cst_32 {dimension_numbers = #tpu.dot_dimension_numbers<[1], [0], [0], [1], [0, 0, 1, 1], [], []>} : vector<4x8xf32>, vector<8x16xf32>, vector<4x16xf32> -> vector<4x16xf32>
    %c0_33 = arith.constant 0 : index
    %c0_34 = arith.constant 0 : index
    %38 = vector.load %arg11[%c0_33, %c0_34] : memref<4x1xf32, #tpu.memory_space<vmem>>, vector<4x1xf32>
    %39 = vector.broadcast %38 : vector<4x1xf32> to vector<4x16xf32>
    %40 = arith.addf %37, %39 : vector<4x16xf32>
    %41 = arith.negf %40 : vector<4x16xf32>
    %42 = math.exp %41 : vector<4x16xf32>
    %cst_35 = arith.constant 1.000000e+00 : f32
    %43 = vector.broadcast %cst_35 : f32 to vector<4x16xf32>
    %44 = arith.addf %43, %42 : vector<4x16xf32>
    %45 = arith.divf %43, %44 : vector<4x16xf32>
    %c0_36 = arith.constant 0 : index
    %c0_37 = arith.constant 0 : index
    %46 = vector.load %arg4[%c0_36, %c0_37] : memref<16x256xf32, #tpu.memory_space<vmem>>, vector<16x256xf32>
    %cst_38 = arith.constant dense<0.000000e+00> : vector<4x256xf32>
    %47 = tpu.matmul %35, %46, %cst_38 {dimension_numbers = #tpu.dot_dimension_numbers<[1], [0], [0], [1], [0, 0, 1, 1], [], []>} : vector<4x16xf32>, vector<16x256xf32>, vector<4x256xf32> -> vector<4x256xf32>
    %c0_39 = arith.constant 0 : index
    %c0_40 = arith.constant 0 : index
    %48 = vector.load %arg5[%c0_39, %c0_40] : memref<16x256xf32, #tpu.memory_space<vmem>>, vector<16x256xf32>
    %cst_41 = arith.constant dense<0.000000e+00> : vector<4x256xf32>
    %49 = tpu.matmul %45, %48, %cst_41 {dimension_numbers = #tpu.dot_dimension_numbers<[1], [0], [0], [1], [0, 0, 1, 1], [], []>} : vector<4x16xf32>, vector<16x256xf32>, vector<4x256xf32> -> vector<4x256xf32>
    %c0_42 = arith.constant 0 : index
    %c0_43 = arith.constant 0 : index
    %c0_44 = arith.constant 0 : index
    %50 = vector.load %arg1[%c0_42, %c0_43, %c0_44] : memref<2x4x256xf32, #tpu.memory_space<vmem>>, vector<1x4x256xf32>
    %51 = vector.shape_cast %50 : vector<1x4x256xf32> to vector<4x256xf32>
    %52 = arith.mulf %51, %47 : vector<4x256xf32>
    %53 = arith.mulf %52, %49 : vector<4x256xf32>
    %c0_45 = arith.constant 0 : index
    %c0_46 = arith.constant 0 : index
    %c0_47 = arith.constant 0 : index
    %54 = vector.load %arg12[%c0_45, %c0_46, %c0_47] : memref<2x4x256xf32, #tpu.memory_space<vmem>>, vector<1x4x256xf32>
    %55 = vector.shape_cast %54 : vector<1x4x256xf32> to vector<4x256xf32>
    %56 = vector.shape_cast %53 : vector<4x256xf32> to vector<1x4x256xf32>
    tpu.vector_store %arg12[%c0_45, %c0_46, %c0_47], %56 {strides = array<i32>} : memref<2x4x256xf32, #tpu.memory_space<vmem>>, vector<1x4x256xf32>,
    %c1 = arith.constant 1 : index
    %c0_48 = arith.constant 0 : index
    %c0_49 = arith.constant 0 : index
    %57 = vector.load %arg1[%c1, %c0_48, %c0_49] : memref<2x4x256xf32, #tpu.memory_space<vmem>>, vector<1x4x256xf32>
    %58 = vector.shape_cast %57 : vector<1x4x256xf32> to vector<4x256xf32>
    %c0_50 = arith.constant 0 : index
    %c0_51 = arith.constant 0 : index
    %59 = vector.load %arg2[%c0_50, %c0_51] : memref<256x16xf32, #tpu.memory_space<vmem>>, vector<256x16xf32>
    %cst_52 = arith.constant dense<0.000000e+00> : vector<4x16xf32>
    %60 = tpu.matmul %58, %59, %cst_52 {dimension_numbers = #tpu.dot_dimension_numbers<[1], [0], [0], [1], [0, 0, 1, 1], [], []>} : vector<4x256xf32>, vector<256x16xf32>, vector<4x16xf32> -> vector<4x16xf32>
    %cst_53 = arith.constant 6.250000e-02 : f32
    %61 = vector.broadcast %cst_53 : f32 to vector<4x16xf32>
    %62 = arith.mulf %60, %61 : vector<4x16xf32>
    %c1_54 = arith.constant 1 : index
    %c0_55 = arith.constant 0 : index
    %c0_56 = arith.constant 0 : index
    %63 = vector.load %arg1[%c1_54, %c0_55, %c0_56] : memref<2x4x256xf32, #tpu.memory_space<vmem>>, vector<1x4x256xf32>
    %64 = vector.shape_cast %63 : vector<1x4x256xf32> to vector<4x256xf32>
    %c0_57 = arith.constant 0 : index
    %c0_58 = arith.constant 0 : index
    %65 = vector.load %arg3[%c0_57, %c0_58] : memref<256x16xf32, #tpu.memory_space<vmem>>, vector<256x16xf32>
    %cst_59 = arith.constant dense<0.000000e+00> : vector<4x16xf32>
    %66 = tpu.matmul %64, %65, %cst_59 {dimension_numbers = #tpu.dot_dimension_numbers<[1], [0], [0], [1], [0, 0, 1, 1], [], []>} : vector<4x256xf32>, vector<256x16xf32>, vector<4x16xf32> -> vector<4x16xf32>
    %cst_60 = arith.constant 6.250000e-02 : f32
    %67 = vector.broadcast %cst_60 : f32 to vector<4x16xf32>
    %68 = arith.mulf %66, %67 : vector<4x16xf32>
    %c0_61 = arith.constant 0 : index
    %c0_62 = arith.constant 0 : index
    %69 = vector.load %arg6[%c0_61, %c0_62] : memref<8x4xf32, #tpu.memory_space<vmem>>, vector<8x4xf32>
    %cst_63 = arith.constant dense<0.000000e+00> : vector<8x16xf32>
    %70 = tpu.matmul %69, %62, %cst_63 {dimension_numbers = #tpu.dot_dimension_numbers<[1], [0], [0], [1], [0, 0, 1, 1], [], []>} : vector<8x4xf32>, vector<4x16xf32>, vector<8x16xf32> -> vector<8x16xf32>
    %c0_64 = arith.constant 0 : index
    %c0_65 = arith.constant 0 : index
    %71 = vector.load %arg7[%c0_64, %c0_65] : memref<8x1xf32, #tpu.memory_space<vmem>>, vector<8x1xf32>
    %72 = vector.broadcast %71 : vector<8x1xf32> to vector<8x16xf32>
    %73 = arith.addf %70, %72 : vector<8x16xf32>
    %cst_66 = arith.constant 0.000000e+00 : f32
    %74 = vector.broadcast %cst_66 : f32 to vector<8x16xf32>
    %75 = arith.maximumf %73, %74 : vector<8x16xf32>
    %c0_67 = arith.constant 0 : index
    %c0_68 = arith.constant 0 : index
    %76 = vector.load %arg6[%c0_67, %c0_68] : memref<8x4xf32, #tpu.memory_space<vmem>>, vector<8x4xf32>
    %cst_69 = arith.constant dense<0.000000e+00> : vector<8x16xf32>
    %77 = tpu.matmul %76, %68, %cst_69 {dimension_numbers = #tpu.dot_dimension_numbers<[1], [0], [0], [1], [0, 0, 1, 1], [], []>} : vector<8x4xf32>, vector<4x16xf32>, vector<8x16xf32> -> vector<8x16xf32>
    %c0_70 = arith.constant 0 : index
    %c0_71 = arith.constant 0 : index
    %78 = vector.load %arg7[%c0_70, %c0_71] : memref<8x1xf32, #tpu.memory_space<vmem>>, vector<8x1xf32>
    %79 = vector.broadcast %78 : vector<8x1xf32> to vector<8x16xf32>
    %80 = arith.addf %77, %79 : vector<8x16xf32>
    %cst_72 = arith.constant 0.000000e+00 : f32
    %81 = vector.broadcast %cst_72 : f32 to vector<8x16xf32>
    %82 = arith.maximumf %80, %81 : vector<8x16xf32>
    %c0_73 = arith.constant 0 : index
    %c0_74 = arith.constant 0 : index
    %83 = vector.load %arg8[%c0_73, %c0_74] : memref<4x8xf32, #tpu.memory_space<vmem>>, vector<4x8xf32>
    %cst_75 = arith.constant dense<0.000000e+00> : vector<4x16xf32>
    %84 = tpu.matmul %83, %75, %cst_75 {dimension_numbers = #tpu.dot_dimension_numbers<[1], [0], [0], [1], [0, 0, 1, 1], [], []>} : vector<4x8xf32>, vector<8x16xf32>, vector<4x16xf32> -> vector<4x16xf32>
    %c0_76 = arith.constant 0 : index
    %c0_77 = arith.constant 0 : index
    %85 = vector.load %arg9[%c0_76, %c0_77] : memref<4x1xf32, #tpu.memory_space<vmem>>, vector<4x1xf32>
    %86 = vector.broadcast %85 : vector<4x1xf32> to vector<4x16xf32>
    %87 = arith.addf %84, %86 : vector<4x16xf32>
    %88 = arith.negf %87 : vector<4x16xf32>
    %89 = math.exp %88 : vector<4x16xf32>
    %cst_78 = arith.constant 1.000000e+00 : f32
    %90 = vector.broadcast %cst_78 : f32 to vector<4x16xf32>
    %91 = arith.addf %90, %89 : vector<4x16xf32>
    %92 = arith.divf %90, %91 : vector<4x16xf32>
    %c0_79 = arith.constant 0 : index
    %c0_80 = arith.constant 0 : index
    %93 = vector.load %arg10[%c0_79, %c0_80] : memref<4x8xf32, #tpu.memory_space<vmem>>, vector<4x8xf32>
    %cst_81 = arith.constant dense<0.000000e+00> : vector<4x16xf32>
    %94 = tpu.matmul %93, %82, %cst_81 {dimension_numbers = #tpu.dot_dimension_numbers<[1], [0], [0], [1], [0, 0, 1, 1], [], []>} : vector<4x8xf32>, vector<8x16xf32>, vector<4x16xf32> -> vector<4x16xf32>
    %c0_82 = arith.constant 0 : index
    %c0_83 = arith.constant 0 : index
    %95 = vector.load %arg11[%c0_82, %c0_83] : memref<4x1xf32, #tpu.memory_space<vmem>>, vector<4x1xf32>
    %96 = vector.broadcast %95 : vector<4x1xf32> to vector<4x16xf32>
    %97 = arith.addf %94, %96 : vector<4x16xf32>
    %98 = arith.negf %97 : vector<4x16xf32>
    %99 = math.exp %98 : vector<4x16xf32>
    %cst_84 = arith.constant 1.000000e+00 : f32
    %100 = vector.broadcast %cst_84 : f32 to vector<4x16xf32>
    %101 = arith.addf %100, %99 : vector<4x16xf32>
    %102 = arith.divf %100, %101 : vector<4x16xf32>
    %c0_85 = arith.constant 0 : index
    %c0_86 = arith.constant 0 : index
    %103 = vector.load %arg4[%c0_85, %c0_86] : memref<16x256xf32, #tpu.memory_space<vmem>>, vector<16x256xf32>
    %cst_87 = arith.constant dense<0.000000e+00> : vector<4x256xf32>
    %104 = tpu.matmul %92, %103, %cst_87 {dimension_numbers = #tpu.dot_dimension_numbers<[1], [0], [0], [1], [0, 0, 1, 1], [], []>} : vector<4x16xf32>, vector<16x256xf32>, vector<4x256xf32> -> vector<4x256xf32>
    %c0_88 = arith.constant 0 : index
    %c0_89 = arith.constant 0 : index
    %105 = vector.load %arg5[%c0_88, %c0_89] : memref<16x256xf32, #tpu.memory_space<vmem>>, vector<16x256xf32>
    %cst_90 = arith.constant dense<0.000000e+00> : vector<4x256xf32>
    %106 = tpu.matmul %102, %105, %cst_90 {dimension_numbers = #tpu.dot_dimension_numbers<[1], [0], [0], [1], [0, 0, 1, 1], [], []>} : vector<4x16xf32>, vector<16x256xf32>, vector<4x256xf32> -> vector<4x256xf32>
    %c1_91 = arith.constant 1 : index
    %c0_92 = arith.constant 0 : index
    %c0_93 = arith.constant 0 : index
    %107 = vector.load %arg1[%c1_91, %c0_92, %c0_93] : memref<2x4x256xf32, #tpu.memory_space<vmem>>, vector<1x4x256xf32>
    %108 = vector.shape_cast %107 : vector<1x4x256xf32> to vector<4x256xf32>
    %109 = arith.mulf %108, %104 : vector<4x256xf32>
    %110 = arith.mulf %109, %106 : vector<4x256xf32>
    %c1_94 = arith.constant 1 : index
    %c0_95 = arith.constant 0 : index
    %c0_96 = arith.constant 0 : index
    %111 = vector.load %arg12[%c1_94, %c0_95, %c0_96] : memref<2x4x256xf32, #tpu.memory_space<vmem>>, vector<1x4x256xf32>
    %112 = vector.shape_cast %111 : vector<1x4x256xf32> to vector<4x256xf32>
    %113 = vector.shape_cast %110 : vector<4x256xf32> to vector<1x4x256xf32>
    tpu.vector_store %arg12[%c1_94, %c0_95, %c0_96], %113 {strides = array<i32>} : memref<2x4x256xf32, #tpu.memory_space<vmem>>, vector<1x4x256xf32>,
    return
  }
  func.func @transform_0(%arg0: i32) -> (i32, i32, i32) {
    %c0_i32 = arith.constant 0 : i32
    %c0_i32_0 = arith.constant 0 : i32
    %c0_i32_1 = arith.constant 0 : i32
    return %arg0, %c0_i32, %c0_i32_0 : i32, i32, i32
  }
  func.func @transform_1(%arg0: i32) -> (i32, i32) {
    %c0_i32 = arith.constant 0 : i32
    %c0_i32_0 = arith.constant 0 : i32
    %c0_i32_1 = arith.constant 0 : i32
    return %c0_i32, %c0_i32_0 : i32, i32
  }
  func.func @transform_2(%arg0: i32) -> (i32, i32) {
    %c0_i32 = arith.constant 0 : i32
    %c0_i32_0 = arith.constant 0 : i32
    %c0_i32_1 = arith.constant 0 : i32
    return %c0_i32, %c0_i32_0 : i32, i32
  }
  func.func @transform_3(%arg0: i32) -> (i32, i32) {
    %c0_i32 = arith.constant 0 : i32
    %c0_i32_0 = arith.constant 0 : i32
    %c0_i32_1 = arith.constant 0 : i32
    return %c0_i32, %c0_i32_0 : i32, i32
  }
  func.func @transform_4(%arg0: i32) -> (i32, i32) {
    %c0_i32 = arith.constant 0 : i32
    %c0_i32_0 = arith.constant 0 : i32
    %c0_i32_1 = arith.constant 0 : i32
    return %c0_i32, %c0_i32_0 : i32, i32
  }
  func.func @transform_5(%arg0: i32) -> (i32, i32) {
    %c0_i32 = arith.constant 0 : i32
    %c0_i32_0 = arith.constant 0 : i32
    %c0_i32_1 = arith.constant 0 : i32
    return %c0_i32, %c0_i32_0 : i32, i32
  }
  func.func @transform_6(%arg0: i32) -> (i32, i32) {
    %c0_i32 = arith.constant 0 : i32
    %c0_i32_0 = arith.constant 0 : i32
    %c0_i32_1 = arith.constant 0 : i32
    return %c0_i32, %c0_i32_0 : i32, i32
  }
  func.func @transform_7(%arg0: i32) -> (i32, i32) {
    %c0_i32 = arith.constant 0 : i32
    %c0_i32_0 = arith.constant 0 : i32
    %c0_i32_1 = arith.constant 0 : i32
    return %c0_i32, %c0_i32_0 : i32, i32
  }
  func.func @transform_8(%arg0: i32) -> (i32, i32) {
    %c0_i32 = arith.constant 0 : i32
    %c0_i32_0 = arith.constant 0 : i32
    %c0_i32_1 = arith.constant 0 : i32
    return %c0_i32, %c0_i32_0 : i32, i32
  }
  func.func @transform_9(%arg0: i32) -> (i32, i32) {
    %c0_i32 = arith.constant 0 : i32
    %c0_i32_0 = arith.constant 0 : i32
    %c0_i32_1 = arith.constant 0 : i32
    return %c0_i32, %c0_i32_0 : i32, i32
  }
  func.func @transform_10(%arg0: i32) -> (i32, i32) {
    %c0_i32 = arith.constant 0 : i32
    %c0_i32_0 = arith.constant 0 : i32
    %c0_i32_1 = arith.constant 0 : i32
    return %c0_i32, %c0_i32_0 : i32, i32
  }
  func.func @transform_11(%arg0: i32) -> (i32, i32, i32) {
    %c0_i32 = arith.constant 0 : i32
    %c0_i32_0 = arith.constant 0 : i32
    %c0_i32_1 = arith.constant 0 : i32
    return %arg0, %c0_i32, %c0_i32_0 : i32, i32, i32
  }
}

module attributes {stable_mosaic.version = 11 : i64} {
  func.func @_coord_attn_flat_kernel(%arg0: i32, %arg1: memref<2x4x256xf32, #tpu.memory_space<vmem>>, %arg2: memref<256x16xf32, #tpu.memory_space<vmem>>, %arg3: memref<256x16xf32, #tpu.memory_space<vmem>>, %arg4: memref<16x256xf32, #tpu.memory_space<vmem>>, %arg5: memref<16x256xf32, #tpu.memory_space<vmem>>, %arg6: memref<8x4xf32, #tpu.memory_space<vmem>>, %arg7: memref<8x1xf32, #tpu.memory_space<vmem>>, %arg8: memref<4x8xf32, #tpu.memory_space<vmem>>, %arg9: memref<4x1xf32, #tpu.memory_space<vmem>>, %arg10: memref<4x8xf32, #tpu.memory_space<vmem>>, %arg11: memref<4x1xf32, #tpu.memory_space<vmem>>, %arg12: memref<2x4x256xf32, #tpu.memory_space<vmem>>) attributes {dimension_semantics = [#tpu.dimension_semantics<parallel>], iteration_bounds = array<i64: 1>, scalar_prefetch = 0 : i64, scratch_operands = 0 : i64, tpu.core_type = #tpu.core_type<tc>, window_params = [{transform_indices = @transform_0, window_bounds = array<i64: 2, 4, 256>}, {pipeline_mode = #tpu.pipeline_mode<synchronous>, transform_indices = @transform_1, window_bounds = array<i64: 256, 16>}, {pipeline_mode = #tpu.pipeline_mode<synchronous>, transform_indices = @transform_2, window_bounds = array<i64: 256, 16>}, {pipeline_mode = #tpu.pipeline_mode<synchronous>, transform_indices = @transform_3, window_bounds = array<i64: 16, 256>}, {pipeline_mode = #tpu.pipeline_mode<synchronous>, transform_indices = @transform_4, window_bounds = array<i64: 16, 256>}, {pipeline_mode = #tpu.pipeline_mode<synchronous>, transform_indices = @transform_5, window_bounds = array<i64: 8, 4>}, {pipeline_mode = #tpu.pipeline_mode<synchronous>, transform_indices = @transform_6, window_bounds = array<i64: 8, 1>}, {pipeline_mode = #tpu.pipeline_mode<synchronous>, transform_indices = @transform_7, window_bounds = array<i64: 4, 8>}, {pipeline_mode = #tpu.pipeline_mode<synchronous>, transform_indices = @transform_8, window_bounds = array<i64: 4, 1>}, {pipeline_mode = #tpu.pipeline_mode<synchronous>, transform_indices = @transform_9, window_bounds = array<i64: 4, 8>}, {pipeline_mode = #tpu.pipeline_mode<synchronous>, transform_indices = @transform_10, window_bounds = array<i64: 4, 1>}, {transform_indices = @transform_11, window_bounds = array<i64: 2, 4, 256>}]} {
    %c0 = arith.constant 0 : index
    %c0_0 = arith.constant 0 : index
    %c0_1 = arith.constant 0 : index
    %0 = vector.load %arg1[%c0, %c0_0, %c0_1] : memref<2x4x256xf32, #tpu.memory_space<vmem>>, vector<1x4x256xf32>
    %1 = vector.shape_cast %0 : vector<1x4x256xf32> to vector<4x256xf32>
    %c0_2 = arith.constant 0 : index
    %c0_3 = arith.constant 0 : index
    %2 = vector.load %arg2[%c0_2, %c0_3] : memref<256x16xf32, #tpu.memory_space<vmem>>, vector<256x16xf32>
    %cst = arith.constant dense<0.000000e+00> : vector<4x16xf32>
    %3 = tpu.matmul %1, %2, %cst {dimension_numbers = #tpu.dot_dimension_numbers<[1], [0], [0], [1], [0, 0, 1, 1], [], []>} : vector<4x256xf32>, vector<256x16xf32>, vector<4x16xf32> -> vector<4x16xf32>
    %cst_4 = arith.constant 6.250000e-02 : f32
    %4 = vector.broadcast %cst_4 : f32 to vector<4x16xf32>
    %5 = arith.mulf %3, %4 : vector<4x16xf32>
    %c0_5 = arith.constant 0 : index
    %c0_6 = arith.constant 0 : index
    %c0_7 = arith.constant 0 : index
    %6 = vector.load %arg1[%c0_5, %c0_6, %c0_7] : memref<2x4x256xf32, #tpu.memory_space<vmem>>, vector<1x4x256xf32>
    %7 = vector.shape_cast %6 : vector<1x4x256xf32> to vector<4x256xf32>
    %c0_8 = arith.constant 0 : index
    %c0_9 = arith.constant 0 : index
    %8 = vector.load %arg3[%c0_8, %c0_9] : memref<256x16xf32, #tpu.memory_space<vmem>>, vector<256x16xf32>
    %cst_10 = arith.constant dense<0.000000e+00> : vector<4x16xf32>
    %9 = tpu.matmul %7, %8, %cst_10 {dimension_numbers = #tpu.dot_dimension_numbers<[1], [0], [0], [1], [0, 0, 1, 1], [], []>} : vector<4x256xf32>, vector<256x16xf32>, vector<4x16xf32> -> vector<4x16xf32>
    %cst_11 = arith.constant 6.250000e-02 : f32
    %10 = vector.broadcast %cst_11 : f32 to vector<4x16xf32>
    %11 = arith.mulf %9, %10 : vector<4x16xf32>
    %c0_12 = arith.constant 0 : index
    %c0_13 = arith.constant 0 : index
    %12 = vector.load %arg6[%c0_12, %c0_13] : memref<8x4xf32, #tpu.memory_space<vmem>>, vector<8x4xf32>
    %cst_14 = arith.constant dense<0.000000e+00> : vector<8x16xf32>
    %13 = tpu.matmul %12, %5, %cst_14 {dimension_numbers = #tpu.dot_dimension_numbers<[1], [0], [0], [1], [0, 0, 1, 1], [], []>} : vector<8x4xf32>, vector<4x16xf32>, vector<8x16xf32> -> vector<8x16xf32>
    %c0_15 = arith.constant 0 : index
    %c0_16 = arith.constant 0 : index
    %14 = vector.load %arg7[%c0_15, %c0_16] : memref<8x1xf32, #tpu.memory_space<vmem>>, vector<8x1xf32>
    %15 = vector.broadcast %14 : vector<8x1xf32> to vector<8x16xf32>
    %16 = arith.addf %13, %15 : vector<8x16xf32>
    %cst_17 = arith.constant 0.000000e+00 : f32
    %17 = vector.broadcast %cst_17 : f32 to vector<8x16xf32>
    %18 = arith.maximumf %16, %17 : vector<8x16xf32>
    %c0_18 = arith.constant 0 : index
    %c0_19 = arith.constant 0 : index
    %19 = vector.load %arg6[%c0_18, %c0_19] : memref<8x4xf32, #tpu.memory_space<vmem>>, vector<8x4xf32>
    %cst_20 = arith.constant dense<0.000000e+00> : vector<8x16xf32>
    %20 = tpu.matmul %19, %11, %cst_20 {dimension_numbers = #tpu.dot_dimension_numbers<[1], [0], [0], [1], [0, 0, 1, 1], [], []>} : vector<8x4xf32>, vector<4x16xf32>, vector<8x16xf32> -> vector<8x16xf32>
    %c0_21 = arith.constant 0 : index
    %c0_22 = arith.constant 0 : index
    %21 = vector.load %arg7[%c0_21, %c0_22] : memref<8x1xf32, #tpu.memory_space<vmem>>, vector<8x1xf32>
    %22 = vector.broadcast %21 : vector<8x1xf32> to vector<8x16xf32>
    %23 = arith.addf %20, %22 : vector<8x16xf32>
    %cst_23 = arith.constant 0.000000e+00 : f32
    %24 = vector.broadcast %cst_23 : f32 to vector<8x16xf32>
    %25 = arith.maximumf %23, %24 : vector<8x16xf32>
    %c0_24 = arith.constant 0 : index
    %c0_25 = arith.constant 0 : index
    %26 = vector.load %arg8[%c0_24, %c0_25] : memref<4x8xf32, #tpu.memory_space<vmem>>, vector<4x8xf32>
    %cst_26 = arith.constant dense<0.000000e+00> : vector<4x16xf32>
    %27 = tpu.matmul %26, %18, %cst_26 {dimension_numbers = #tpu.dot_dimension_numbers<[1], [0], [0], [1], [0, 0, 1, 1], [], []>} : vector<4x8xf32>, vector<8x16xf32>, vector<4x16xf32> -> vector<4x16xf32>
    %c0_27 = arith.constant 0 : index
    %c0_28 = arith.constant 0 : index
    %28 = vector.load %arg9[%c0_27, %c0_28] : memref<4x1xf32, #tpu.memory_space<vmem>>, vector<4x1xf32>
    %29 = vector.broadcast %28 : vector<4x1xf32> to vector<4x16xf32>
    %30 = arith.addf %27, %29 : vector<4x16xf32>
    %31 = arith.negf %30 : vector<4x16xf32>
    %32 = math.exp %31 : vector<4x16xf32>
    %cst_29 = arith.constant 1.000000e+00 : f32
    %33 = vector.broadcast %cst_29 : f32 to vector<4x16xf32>
    %34 = arith.addf %33, %32 : vector<4x16xf32>
    %35 = arith.divf %33, %34 : vector<4x16xf32>
    %c0_30 = arith.constant 0 : index
    %c0_31 = arith.constant 0 : index
    %36 = vector.load %arg10[%c0_30, %c0_31] : memref<4x8xf32, #tpu.memory_space<vmem>>, vector<4x8xf32>
    %cst_32 = arith.constant dense<0.000000e+00> : vector<4x16xf32>
    %37 = tpu.matmul %36, %25, %cst_32 {dimension_numbers = #tpu.dot_dimension_numbers<[1], [0], [0], [1], [0, 0, 1, 1], [], []>} : vector<4x8xf32>, vector<8x16xf32>, vector<4x16xf32> -> vector<4x16xf32>
    %c0_33 = arith.constant 0 : index
    %c0_34 = arith.constant 0 : index
    %38 = vector.load %arg11[%c0_33, %c0_34] : memref<4x1xf32, #tpu.memory_space<vmem>>, vector<4x1xf32>
    %39 = vector.broadcast %38 : vector<4x1xf32> to vector<4x16xf32>
    %40 = arith.addf %37, %39 : vector<4x16xf32>
    %41 = arith.negf %40 : vector<4x16xf32>
    %42 = math.exp %41 : vector<4x16xf32>
    %cst_35 = arith.constant 1.000000e+00 : f32
    %43 = vector.broadcast %cst_35 : f32 to vector<4x16xf32>
    %44 = arith.addf %43, %42 : vector<4x16xf32>
    %45 = arith.divf %43, %44 : vector<4x16xf32>
    %c0_36 = arith.constant 0 : index
    %c0_37 = arith.constant 0 : index
    %46 = vector.load %arg4[%c0_36, %c0_37] : memref<16x256xf32, #tpu.memory_space<vmem>>, vector<16x256xf32>
    %cst_38 = arith.constant dense<0.000000e+00> : vector<4x256xf32>
    %47 = tpu.matmul %35, %46, %cst_38 {dimension_numbers = #tpu.dot_dimension_numbers<[1], [0], [0], [1], [0, 0, 1, 1], [], []>} : vector<4x16xf32>, vector<16x256xf32>, vector<4x256xf32> -> vector<4x256xf32>
    %c0_39 = arith.constant 0 : index
    %c0_40 = arith.constant 0 : index
    %48 = vector.load %arg5[%c0_39, %c0_40] : memref<16x256xf32, #tpu.memory_space<vmem>>, vector<16x256xf32>
    %cst_41 = arith.constant dense<0.000000e+00> : vector<4x256xf32>
    %49 = tpu.matmul %45, %48, %cst_41 {dimension_numbers = #tpu.dot_dimension_numbers<[1], [0], [0], [1], [0, 0, 1, 1], [], []>} : vector<4x16xf32>, vector<16x256xf32>, vector<4x256xf32> -> vector<4x256xf32>
    %c0_42 = arith.constant 0 : index
    %c0_43 = arith.constant 0 : index
    %c0_44 = arith.constant 0 : index
    %50 = vector.load %arg1[%c0_42, %c0_43, %c0_44] : memref<2x4x256xf32, #tpu.memory_space<vmem>>, vector<1x4x256xf32>
    %51 = vector.shape_cast %50 : vector<1x4x256xf32> to vector<4x256xf32>
    %52 = arith.mulf %51, %47 : vector<4x256xf32>
    %53 = arith.mulf %52, %49 : vector<4x256xf32>
    %c0_45 = arith.constant 0 : index
    %c0_46 = arith.constant 0 : index
    %c0_47 = arith.constant 0 : index
    %54 = vector.load %arg12[%c0_45, %c0_46, %c0_47] : memref<2x4x256xf32, #tpu.memory_space<vmem>>, vector<1x4x256xf32>
    %55 = vector.shape_cast %54 : vector<1x4x256xf32> to vector<4x256xf32>
    %56 = vector.shape_cast %53 : vector<4x256xf32> to vector<1x4x256xf32>
    tpu.vector_store %arg12[%c0_45, %c0_46, %c0_47], %56 {strides = array<i32>} : memref<2x4x256xf32, #tpu.memory_space<vmem>>, vector<1x4x256xf32>,
    %c1 = arith.constant 1 : index
    %c0_48 = arith.constant 0 : index
    %c0_49 = arith.constant 0 : index
    %57 = vector.load %arg1[%c1, %c0_48, %c0_49] : memref<2x4x256xf32, #tpu.memory_space<vmem>>, vector<1x4x256xf32>
    %58 = vector.shape_cast %57 : vector<1x4x256xf32> to vector<4x256xf32>
    %c0_50 = arith.constant 0 : index
    %c0_51 = arith.constant 0 : index
    %59 = vector.load %arg2[%c0_50, %c0_51] : memref<256x16xf32, #tpu.memory_space<vmem>>, vector<256x16xf32>
    %cst_52 = arith.constant dense<0.000000e+00> : vector<4x16xf32>
    %60 = tpu.matmul %58, %59, %cst_52 {dimension_numbers = #tpu.dot_dimension_numbers<[1], [0], [0], [1], [0, 0, 1, 1], [], []>} : vector<4x256xf32>, vector<256x16xf32>, vector<4x16xf32> -> vector<4x16xf32>
    %cst_53 = arith.constant 6.250000e-02 : f32
    %61 = vector.broadcast %cst_53 : f32 to vector<4x16xf32>
    %62 = arith.mulf %60, %61 : vector<4x16xf32>
    %c1_54 = arith.constant 1 : index
    %c0_55 = arith.constant 0 : index
    %c0_56 = arith.constant 0 : index
    %63 = vector.load %arg1[%c1_54, %c0_55, %c0_56] : memref<2x4x256xf32, #tpu.memory_space<vmem>>, vector<1x4x256xf32>
    %64 = vector.shape_cast %63 : vector<1x4x256xf32> to vector<4x256xf32>
    %c0_57 = arith.constant 0 : index
    %c0_58 = arith.constant 0 : index
    %65 = vector.load %arg3[%c0_57, %c0_58] : memref<256x16xf32, #tpu.memory_space<vmem>>, vector<256x16xf32>
    %cst_59 = arith.constant dense<0.000000e+00> : vector<4x16xf32>
    %66 = tpu.matmul %64, %65, %cst_59 {dimension_numbers = #tpu.dot_dimension_numbers<[1], [0], [0], [1], [0, 0, 1, 1], [], []>} : vector<4x256xf32>, vector<256x16xf32>, vector<4x16xf32> -> vector<4x16xf32>
    %cst_60 = arith.constant 6.250000e-02 : f32
    %67 = vector.broadcast %cst_60 : f32 to vector<4x16xf32>
    %68 = arith.mulf %66, %67 : vector<4x16xf32>
    %c0_61 = arith.constant 0 : index
    %c0_62 = arith.constant 0 : index
    %69 = vector.load %arg6[%c0_61, %c0_62] : memref<8x4xf32, #tpu.memory_space<vmem>>, vector<8x4xf32>
    %cst_63 = arith.constant dense<0.000000e+00> : vector<8x16xf32>
    %70 = tpu.matmul %69, %62, %cst_63 {dimension_numbers = #tpu.dot_dimension_numbers<[1], [0], [0], [1], [0, 0, 1, 1], [], []>} : vector<8x4xf32>, vector<4x16xf32>, vector<8x16xf32> -> vector<8x16xf32>
    %c0_64 = arith.constant 0 : index
    %c0_65 = arith.constant 0 : index
    %71 = vector.load %arg7[%c0_64, %c0_65] : memref<8x1xf32, #tpu.memory_space<vmem>>, vector<8x1xf32>
    %72 = vector.broadcast %71 : vector<8x1xf32> to vector<8x16xf32>
    %73 = arith.addf %70, %72 : vector<8x16xf32>
    %cst_66 = arith.constant 0.000000e+00 : f32
    %74 = vector.broadcast %cst_66 : f32 to vector<8x16xf32>
    %75 = arith.maximumf %73, %74 : vector<8x16xf32>
    %c0_67 = arith.constant 0 : index
    %c0_68 = arith.constant 0 : index
    %76 = vector.load %arg6[%c0_67, %c0_68] : memref<8x4xf32, #tpu.memory_space<vmem>>, vector<8x4xf32>
    %cst_69 = arith.constant dense<0.000000e+00> : vector<8x16xf32>
    %77 = tpu.matmul %76, %68, %cst_69 {dimension_numbers = #tpu.dot_dimension_numbers<[1], [0], [0], [1], [0, 0, 1, 1], [], []>} : vector<8x4xf32>, vector<4x16xf32>, vector<8x16xf32> -> vector<8x16xf32>
    %c0_70 = arith.constant 0 : index
    %c0_71 = arith.constant 0 : index
    %78 = vector.load %arg7[%c0_70, %c0_71] : memref<8x1xf32, #tpu.memory_space<vmem>>, vector<8x1xf32>
    %79 = vector.broadcast %78 : vector<8x1xf32> to vector<8x16xf32>
    %80 = arith.addf %77, %79 : vector<8x16xf32>
    %cst_72 = arith.constant 0.000000e+00 : f32
    %81 = vector.broadcast %cst_72 : f32 to vector<8x16xf32>
    %82 = arith.maximumf %80, %81 : vector<8x16xf32>
    %c0_73 = arith.constant 0 : index
    %c0_74 = arith.constant 0 : index
    %83 = vector.load %arg8[%c0_73, %c0_74] : memref<4x8xf32, #tpu.memory_space<vmem>>, vector<4x8xf32>
    %cst_75 = arith.constant dense<0.000000e+00> : vector<4x16xf32>
    %84 = tpu.matmul %83, %75, %cst_75 {dimension_numbers = #tpu.dot_dimension_numbers<[1], [0], [0], [1], [0, 0, 1, 1], [], []>} : vector<4x8xf32>, vector<8x16xf32>, vector<4x16xf32> -> vector<4x16xf32>
    %c0_76 = arith.constant 0 : index
    %c0_77 = arith.constant 0 : index
    %85 = vector.load %arg9[%c0_76, %c0_77] : memref<4x1xf32, #tpu.memory_space<vmem>>, vector<4x1xf32>
    %86 = vector.broadcast %85 : vector<4x1xf32> to vector<4x16xf32>
    %87 = arith.addf %84, %86 : vector<4x16xf32>
    %88 = arith.negf %87 : vector<4x16xf32>
    %89 = math.exp %88 : vector<4x16xf32>
    %cst_78 = arith.constant 1.000000e+00 : f32
    %90 = vector.broadcast %cst_78 : f32 to vector<4x16xf32>
    %91 = arith.addf %90, %89 : vector<4x16xf32>
    %92 = arith.divf %90, %91 : vector<4x16xf32>
    %c0_79 = arith.constant 0 : index
    %c0_80 = arith.constant 0 : index
    %93 = vector.load %arg10[%c0_79, %c0_80] : memref<4x8xf32, #tpu.memory_space<vmem>>, vector<4x8xf32>
    %cst_81 = arith.constant dense<0.000000e+00> : vector<4x16xf32>
    %94 = tpu.matmul %93, %82, %cst_81 {dimension_numbers = #tpu.dot_dimension_numbers<[1], [0], [0], [1], [0, 0, 1, 1], [], []>} : vector<4x8xf32>, vector<8x16xf32>, vector<4x16xf32> -> vector<4x16xf32>
    %c0_82 = arith.constant 0 : index
    %c0_83 = arith.constant 0 : index
    %95 = vector.load %arg11[%c0_82, %c0_83] : memref<4x1xf32, #tpu.memory_space<vmem>>, vector<4x1xf32>
    %96 = vector.broadcast %95 : vector<4x1xf32> to vector<4x16xf32>
    %97 = arith.addf %94, %96 : vector<4x16xf32>
    %98 = arith.negf %97 : vector<4x16xf32>
    %99 = math.exp %98 : vector<4x16xf32>
    %cst_84 = arith.constant 1.000000e+00 : f32
    %100 = vector.broadcast %cst_84 : f32 to vector<4x16xf32>
    %101 = arith.addf %100, %99 : vector<4x16xf32>
    %102 = arith.divf %100, %101 : vector<4x16xf32>
    %c0_85 = arith.constant 0 : index
    %c0_86 = arith.constant 0 : index
    %103 = vector.load %arg4[%c0_85, %c0_86] : memref<16x256xf32, #tpu.memory_space<vmem>>, vector<16x256xf32>
    %cst_87 = arith.constant dense<0.000000e+00> : vector<4x256xf32>
    %104 = tpu.matmul %92, %103, %cst_87 {dimension_numbers = #tpu.dot_dimension_numbers<[1], [0], [0], [1], [0, 0, 1, 1], [], []>} : vector<4x16xf32>, vector<16x256xf32>, vector<4x256xf32> -> vector<4x256xf32>
    %c0_88 = arith.constant 0 : index
    %c0_89 = arith.constant 0 : index
    %105 = vector.load %arg5[%c0_88, %c0_89] : memref<16x256xf32, #tpu.memory_space<vmem>>, vector<16x256xf32>
    %cst_90 = arith.constant dense<0.000000e+00> : vector<4x256xf32>
    %106 = tpu.matmul %102, %105, %cst_90 {dimension_numbers = #tpu.dot_dimension_numbers<[1], [0], [0], [1], [0, 0, 1, 1], [], []>} : vector<4x16xf32>, vector<16x256xf32>, vector<4x256xf32> -> vector<4x256xf32>
    %c1_91 = arith.constant 1 : index
    %c0_92 = arith.constant 0 : index
    %c0_93 = arith.constant 0 : index
    %107 = vector.load %arg1[%c1_91, %c0_92, %c0_93] : memref<2x4x256xf32, #tpu.memory_space<vmem>>, vector<1x4x256xf32>
    %108 = vector.shape_cast %107 : vector<1x4x256xf32> to vector<4x256xf32>
    %109 = arith.mulf %108, %104 : vector<4x256xf32>
    %110 = arith.mulf %109, %106 : vector<4x256xf32>
    %c1_94 = arith.constant 1 : index
    %c0_95 = arith.constant 0 : index
    %c0_96 = arith.constant 0 : index
    %111 = vector.load %arg12[%c1_94, %c0_95, %c0_96] : memref<2x4x256xf32, #tpu.memory_space<vmem>>, vector<1x4x256xf32>
    %112 = vector.shape_cast %111 : vector<1x4x256xf32> to vector<4x256xf32>
    %113 = vector.shape_cast %110 : vector<4x256xf32> to vector<1x4x256xf32>
    tpu.vector_store %arg12[%c1_94, %c0_95, %c0_96], %113 {strides = array<i32>} : memref<2x4x256xf32, #tpu.memory_space<vmem>>, vector<1x4x256xf32>,
    return
  }
  func.func @transform_0(%arg0: i32) -> (i32, i32, i32) {
    %c0_i32 = arith.constant 0 : i32
    %c0_i32_0 = arith.constant 0 : i32
    %c0_i32_1 = arith.constant 0 : i32
    return %arg0, %c0_i32, %c0_i32_0 : i32, i32, i32
  }
  func.func @transform_1(%arg0: i32) -> (i32, i32) {
    %c0_i32 = arith.constant 0 : i32
    %c0_i32_0 = arith.constant 0 : i32
    %c0_i32_1 = arith.constant 0 : i32
    return %c0_i32, %c0_i32_0 : i32, i32
  }
  func.func @transform_2(%arg0: i32) -> (i32, i32) {
    %c0_i32 = arith.constant 0 : i32
    %c0_i32_0 = arith.constant 0 : i32
    %c0_i32_1 = arith.constant 0 : i32
    return %c0_i32, %c0_i32_0 : i32, i32
  }
  func.func @transform_3(%arg0: i32) -> (i32, i32) {
    %c0_i32 = arith.constant 0 : i32
    %c0_i32_0 = arith.constant 0 : i32
    %c0_i32_1 = arith.constant 0 : i32
    return %c0_i32, %c0_i32_0 : i32, i32
  }
  func.func @transform_4(%arg0: i32) -> (i32, i32) {
    %c0_i32 = arith.constant 0 : i32
    %c0_i32_0 = arith.constant 0 : i32
    %c0_i32_1 = arith.constant 0 : i32
    return %c0_i32, %c0_i32_0 : i32, i32
  }
  func.func @transform_5(%arg0: i32) -> (i32, i32) {
    %c0_i32 = arith.constant 0 : i32
    %c0_i32_0 = arith.constant 0 : i32
    %c0_i32_1 = arith.constant 0 : i32
    return %c0_i32, %c0_i32_0 : i32, i32
  }
  func.func @transform_6(%arg0: i32) -> (i32, i32) {
    %c0_i32 = arith.constant 0 : i32
    %c0_i32_0 = arith.constant 0 : i32
    %c0_i32_1 = arith.constant 0 : i32
    return %c0_i32, %c0_i32_0 : i32, i32
  }
  func.func @transform_7(%arg0: i32) -> (i32, i32) {
    %c0_i32 = arith.constant 0 : i32
    %c0_i32_0 = arith.constant 0 : i32
    %c0_i32_1 = arith.constant 0 : i32
    return %c0_i32, %c0_i32_0 : i32, i32
  }
  func.func @transform_8(%arg0: i32) -> (i32, i32) {
    %c0_i32 = arith.constant 0 : i32
    %c0_i32_0 = arith.constant 0 : i32
    %c0_i32_1 = arith.constant 0 : i32
    return %c0_i32, %c0_i32_0 : i32, i32
  }
  func.func @transform_9(%arg0: i32) -> (i32, i32) {
    %c0_i32 = arith.constant 0 : i32
    %c0_i32_0 = arith.constant 0 : i32
    %c0_i32_1 = arith.constant 0 : i32
    return %c0_i32, %c0_i32_0 : i32, i32
  }
  func.func @transform_10(%arg0: i32) -> (i32, i32) {
    %c0_i32 = arith.constant 0 : i32
    %c0_i32_0 = arith.constant 0 : i32
    %c0_i32_1 = arith.constant 0 : i32
    return %c0_i32, %c0_i32_0 : i32, i32
  }
  func.func @transform_11(%arg0: i32) -> (i32, i32, i32) {
    %c0_i32 = arith.constant 0 : i32
    %c0_i32_0 = arith.constant 0 : i32
    %c0_i32_1 = arith.constant 0 : i32
    return %arg0, %c0_i32, %c0_i32_0 : i32, i32, i32
  }
}

</mosaic_0001>

<llo_original>
// kernel: tpu_custom_call.1
$region0: #{tpu_custom_call.1}
  #allocation0 [shape = 'u32[]', space=smem, size = 0x4, offset = 0x4, fixed_abs, tag = 'smem constant byte address 0x4 - core index']
  #allocation1 [shape = 'u32[144,128]{1,0:T(1,128)}', space=vmem, size = 0x12000, scoped, tag = 'internal scratch']
  %s0 = inlined_call_operand.vmem [shape: f32[2,4,256], index: 0, kind: input, shape index: {}]
  %s1 = inlined_call_operand.vmem [shape: f32[256,16], index: 1, kind: input, shape index: {}]
  %s2 = inlined_call_operand.vmem [shape: f32[256,16], index: 2, kind: input, shape index: {}]
  %s3 = inlined_call_operand.vmem [shape: f32[16,256], index: 3, kind: input, shape index: {}]
  %s4 = inlined_call_operand.vmem [shape: f32[16,256], index: 4, kind: input, shape index: {}]
  %s5 = inlined_call_operand.vmem [shape: f32[8,4], index: 5, kind: input, shape index: {}]
  %s6 = inlined_call_operand.vmem [shape: f32[8,1], index: 6, kind: input, shape index: {}]
  %s7 = inlined_call_operand.vmem [shape: f32[4,8], index: 7, kind: input, shape index: {}]
  %s8 = inlined_call_operand.vmem [shape: f32[4,1], index: 8, kind: input, shape index: {}]
  %s9 = inlined_call_operand.vmem [shape: f32[4,8], index: 9, kind: input, shape index: {}]
  %s10 = inlined_call_operand.vmem [shape: f32[4,1], index: 10, kind: input, shape index: {}]
  %s11 = inlined_call_operand.hbm [shape: f32[2,4,256], index: 11, kind: output, shape index: {}]
  %s12 = sld [smem:[#allocation0]]
  $region54: #{tpu_custom_call.1} parent=0
    _
  %s14 = ssub.s32 1, %s12
  %s15 = scalar_select 0, %s14, %s12
  $region1: #{tpu_custom_call.1} parent=0
    #allocation2 [shape = 'u8[8192]{0}', space=vmem, size = 0x2000, scoped, tag = 'output window, operand 0, single buffered']
    #allocation3 [shape = 's32[1]{0}', space=sflag, size = 0x4, scoped, tag = 'scoped memory for tpu_custom_call.1']
    %16 = vsyncpa [#allocation3], 0
    // Predicated region
    $region2: #{tpu_custom_call.1} parent=1 // pred_check
      _
    $region3: #{tpu_custom_call.1} parent=1 // pred_check_branch
      %18 = sbr.rel (0) target = $region5
    $region4: #{tpu_custom_call.1} parent=1 // pred_region
      _
    $region5: #{tpu_custom_call.1} parent=1 // pred_fallthru
      _
    // Predicated region
    $region6: #{tpu_custom_call.1} parent=1 // pred_check
      _
    $region7: #{tpu_custom_call.1} parent=1 // pred_check_branch
      %20 = sbr.rel (0) target = $region9
    $region8: #{tpu_custom_call.1} parent=1 // pred_region
      _
    $region9: #{tpu_custom_call.1} parent=1 // pred_fallthru
      _
    // Predicated region
    $region10: #{tpu_custom_call.1} parent=1 // pred_check
      _
    $region11: #{tpu_custom_call.1} parent=1 // pred_check_branch
      %22 = sbr.rel (0) target = $region13
    $region12: #{tpu_custom_call.1} parent=1 // pred_region
      _
    $region13: #{tpu_custom_call.1} parent=1 // pred_fallthru
      _
    // Predicated region
    $region14: #{tpu_custom_call.1} parent=1 // pred_check
      _
    $region15: #{tpu_custom_call.1} parent=1 // pred_check_branch
      %24 = sbr.rel (0) target = $region17
    $region16: #{tpu_custom_call.1} parent=1 // pred_region
      _
    $region17: #{tpu_custom_call.1} parent=1 // pred_fallthru
      _
    // Predicated region
    $region18: #{tpu_custom_call.1} parent=1 // pred_check
      _
    $region19: #{tpu_custom_call.1} parent=1 // pred_check_branch
      %26 = sbr.rel (0) target = $region21
    $region20: #{tpu_custom_call.1} parent=1 // pred_region
      _
    $region21: #{tpu_custom_call.1} parent=1 // pred_fallthru
      _
    // Predicated region
    $region22: #{tpu_custom_call.1} parent=1 // pred_check
      _
    $region23: #{tpu_custom_call.1} parent=1 // pred_check_branch
      %28 = sbr.rel (0) target = $region25
    $region24: #{tpu_custom_call.1} parent=1 // pred_region
      _
    $region25: #{tpu_custom_call.1} parent=1 // pred_fallthru
      _
    // Predicated region
    $region26: #{tpu_custom_call.1} parent=1 // pred_check
      _
    $region27: #{tpu_custom_call.1} parent=1 // pred_check_branch
      %30 = sbr.rel (0) target = $region29
    $region28: #{tpu_custom_call.1} parent=1 // pred_region
      _
    $region29: #{tpu_custom_call.1} parent=1 // pred_fallthru
      _
    // Predicated region
    $region30: #{tpu_custom_call.1} parent=1 // pred_check
      _
    $region31: #{tpu_custom_call.1} parent=1 // pred_check_branch
      %32 = sbr.rel (0) target = $region33
    $region32: #{tpu_custom_call.1} parent=1 // pred_region
      _
    $region33: #{tpu_custom_call.1} parent=1 // pred_fallthru
      _
    // Predicated region
    $region34: #{tpu_custom_call.1} parent=1 // pred_check
      _
    $region35: #{tpu_custom_call.1} parent=1 // pred_check_branch
      %34 = sbr.rel (0) target = $region37
    $region36: #{tpu_custom_call.1} parent=1 // pred_region
      _
    $region37: #{tpu_custom_call.1} parent=1 // pred_fallthru
      _
    // Predicated region
    $region38: #{tpu_custom_call.1} parent=1 // pred_check
      _
    $region39: #{tpu_custom_call.1} parent=1 // pred_check_branch
      %36 = sbr.rel (0) target = $region41
    $region40: #{tpu_custom_call.1} parent=1 // pred_region
      _
    $region41: #{tpu_custom_call.1} parent=1 // pred_fallthru
      _
    // Predicated region
    $region42: #{tpu_custom_call.1} parent=1 // pred_check
      _
    $region43: #{tpu_custom_call.1} parent=1 // pred_check_branch
      %38 = sbr.rel (0) target = $region45
    $region44: #{tpu_custom_call.1} parent=1 // pred_region
      _
    $region45: #{tpu_custom_call.1} parent=1 // pred_fallthru
      _
    %v39 = vld [vmem:[%s0] sm:$0xff]
    %v40 = vld [vmem:[%s1] sm:$0xff]
    %v41 = vld [vmem:[%s1 + $0x8] sm:$0xff]
    %v42 = vld [vmem:[%s1 + $0x10] sm:$0xff]
    %v43 = vld [vmem:[%s1 + $0x18] sm:$0xff]
    %v44 = vld [vmem:[%s1 + $0x20] sm:$0xff]
    %v45 = vld [vmem:[%s1 + $0x28] sm:$0xff]
    %v46 = vld [vmem:[%s1 + $0x30] sm:$0xff]
    %v47 = vld [vmem:[%s1 + $0x38] sm:$0xff]
    %v48 = vld [vmem:[%s1 + $0x40] sm:$0xff]
    %v49 = vld [vmem:[%s1 + $0x48] sm:$0xff]
    %v50 = vld [vmem:[%s1 + $0x50] sm:$0xff]
    %v51 = vld [vmem:[%s1 + $0x58] sm:$0xff]
    %v52 = vld [vmem:[%s1 + $0x60] sm:$0xff]
    %v53 = vld [vmem:[%s1 + $0x68] sm:$0xff]
    %v54 = vld [vmem:[%s1 + $0x70] sm:$0xff]
    %v55 = vld [vmem:[%s1 + $0x78] sm:$0xff]
    %v56 = vld [vmem:[%s1 + $0x80] sm:$0xff]
    %v57 = vld [vmem:[%s1 + $0x88] sm:$0xff]
    %v58 = vld [vmem:[%s1 + $0x90] sm:$0xff]
    %v59 = vld [vmem:[%s1 + $0x98] sm:$0xff]
    %v60 = vld [vmem:[%s1 + $0xa0] sm:$0xff]
    %v61 = vld [vmem:[%s1 + $0xa8] sm:$0xff]
    %v62 = vld [vmem:[%s1 + $0xb0] sm:$0xff]
    %v63 = vld [vmem:[%s1 + $0xb8] sm:$0xff]
    %v64 = vld [vmem:[%s1 + $0xc0] sm:$0xff]
    %v65 = vld [vmem:[%s1 + $0xc8] sm:$0xff]
    %v66 = vld [vmem:[%s1 + $0xd0] sm:$0xff]
    %v67 = vld [vmem:[%s1 + $0xd8] sm:$0xff]
    %v68 = vld [vmem:[%s1 + $0xe0] sm:$0xff]
    %v69 = vld [vmem:[%s1 + $0xe8] sm:$0xff]
    %v70 = vld [vmem:[%s1 + $0xf0] sm:$0xff]
    %v71 = vld [vmem:[%s1 + $0xf8] sm:$0xff]
    %v73 = vcombine.high %v39, %v39
    %75 = vmatprep.subr.mxu0 0.0
    %76 = vmatpush1.msra.mxu0 %v40
    %77 = vmatprep.subr.mxu0 0.0
    %78 = vmatpush1.msra.mxu0 %v41
    %79 = vmatprep.subr.mxu0 0.0
    %80 = vmatpush1.msra.mxu0 %v42
    %81 = vmatprep.subr.mxu0 0.0
    %82 = vmatpush1.msra.mxu0 %v43
    %83 = vmatprep.subr.mxu0 0.0
    %84 = vmatpush1.msra.mxu0 %v44
    %85 = vmatprep.subr.mxu0 0.0
    %86 = vmatpush1.msra.mxu0 %v45
    %87 = vmatprep.subr.mxu0 0.0
    %88 = vmatpush1.msra.mxu0 %v46
    %89 = vmatprep.subr.mxu0 0.0
    %90 = vmatpush1.msra.mxu0 %v47
    %91 = vmatprep.subr.mxu0 0.0
    %92 = vmatpush1.msra.mxu0 %v48
    %93 = vmatprep.subr.mxu0 0.0
    %94 = vmatpush1.msra.mxu0 %v49
    %95 = vmatprep.subr.mxu0 0.0
    %96 = vmatpush1.msra.mxu0 %v50
    %97 = vmatprep.subr.mxu0 0.0
    %98 = vmatpush1.msra.mxu0 %v51
    %99 = vmatprep.subr.mxu0 0.0
    %100 = vmatpush1.msra.mxu0 %v52
    %101 = vmatprep.subr.mxu0 0.0
    %102 = vmatpush1.msra.mxu0 %v53
    %103 = vmatprep.subr.mxu0 0.0
    %104 = vmatpush1.msra.mxu0 %v54
    %105 = vmatprep.subr.mxu0 0.0
    %106 = vmatpush1.msra.mxu0 %v55
    %107 = vmatprep.subr.mxu0 0.0
    %108 = vmatpush1.msra.mxu0 %v56
    %109 = vmatprep.subr.mxu0 0.0
    %110 = vmatpush1.msra.mxu0 %v57
    %111 = vmatprep.subr.mxu0 0.0
    %112 = vmatpush1.msra.mxu0 %v58
    %113 = vmatprep.subr.mxu0 0.0
    %114 = vmatpush1.msra.mxu0 %v59
    %115 = vmatprep.subr.mxu0 0.0
    %116 = vmatpush1.msra.mxu0 %v60
    %117 = vmatprep.subr.mxu0 0.0
    %118 = vmatpush1.msra.mxu0 %v61
    %119 = vmatprep.subr.mxu0 0.0
    %120 = vmatpush1.msra.mxu0 %v62
    %121 = vmatprep.subr.mxu0 0.0
    %122 = vmatpush1.msra.mxu0 %v63
    %123 = vmatprep.subr.mxu0 0.0
    %124 = vmatpush1.msra.mxu0 %v64
    %125 = vmatprep.subr.mxu0 0.0
    %126 = vmatpush1.msra.mxu0 %v65
    %127 = vmatprep.subr.mxu0 0.0
    %128 = vmatpush1.msra.mxu0 %v66
    %129 = vmatprep.subr.mxu0 0.0
    %130 = vmatpush1.msra.mxu0 %v67
    %131 = vmatprep.subr.mxu0 0.0
    %132 = vmatpush1.msra.mxu0 %v68
    %133 = vmatprep.subr.mxu0 0.0
    %134 = vmatpush1.msra.mxu0 %v69
    %135 = vmatprep.subr.mxu0 0.0
    %136 = vmatpush1.msra.mxu0 %v70
    %137 = vmatprep.subr.mxu0 0.0
    %138 = vmatpush1.msra.mxu0 %v71
    %139 = vmatprep.mubr.f32.mxu0 %v73
    %140 = vmatmul.mubr.f32.gmra.mrb[0].mxu0 %v39
    %v141 = vpop.f32.mrb[0].mxu0
    %v142 = vadd.f32 0.0, %v141
    %v143 = vpop.f32.mrb[0].mxu0
    %144 = vdwg.mxu0
    %v145 = vmul.f32 %v142, 0.0625
    %v146 = vld [vmem:[%s2] sm:$0xff]
    %v147 = vld [vmem:[%s2 + $0x8] sm:$0xff]
    %v148 = vld [vmem:[%s2 + $0x10] sm:$0xff]
    %v149 = vld [vmem:[%s2 + $0x18] sm:$0xff]
    %v150 = vld [vmem:[%s2 + $0x20] sm:$0xff]
    %v151 = vld [vmem:[%s2 + $0x28] sm:$0xff]
    %v152 = vld [vmem:[%s2 + $0x30] sm:$0xff]
    %v153 = vld [vmem:[%s2 + $0x38] sm:$0xff]
    %v154 = vld [vmem:[%s2 + $0x40] sm:$0xff]
    %v155 = vld [vmem:[%s2 + $0x48] sm:$0xff]
    %v156 = vld [vmem:[%s2 + $0x50] sm:$0xff]
    %v157 = vld [vmem:[%s2 + $0x58] sm:$0xff]
    %v158 = vld [vmem:[%s2 + $0x60] sm:$0xff]
    %v159 = vld [vmem:[%s2 + $0x68] sm:$0xff]
    %v160 = vld [vmem:[%s2 + $0x70] sm:$0xff]
    %v161 = vld [vmem:[%s2 + $0x78] sm:$0xff]
    %v162 = vld [vmem:[%s2 + $0x80] sm:$0xff]
    %v163 = vld [vmem:[%s2 + $0x88] sm:$0xff]
    %v164 = vld [vmem:[%s2 + $0x90] sm:$0xff]
    %v165 = vld [vmem:[%s2 + $0x98] sm:$0xff]
    %v166 = vld [vmem:[%s2 + $0xa0] sm:$0xff]
    %v167 = vld [vmem:[%s2 + $0xa8] sm:$0xff]
    %v168 = vld [vmem:[%s2 + $0xb0] sm:$0xff]
    %v169 = vld [vmem:[%s2 + $0xb8] sm:$0xff]
    %v170 = vld [vmem:[%s2 + $0xc0] sm:$0xff]
    %v171 = vld [vmem:[%s2 + $0xc8] sm:$0xff]
    %v172 = vld [vmem:[%s2 + $0xd0] sm:$0xff]
    %v173 = vld [vmem:[%s2 + $0xd8] sm:$0xff]
    %v174 = vld [vmem:[%s2 + $0xe0] sm:$0xff]
    %v175 = vld [vmem:[%s2 + $0xe8] sm:$0xff]
    %v176 = vld [vmem:[%s2 + $0xf0] sm:$0xff]
    %v177 = vld [vmem:[%s2 + $0xf8] sm:$0xff]
    %178 = vmatprep.subr.mxu0 0.0
    %179 = vmatpush1.msra.mxu0 %v146
    %180 = vmatprep.subr.mxu0 0.0
    %181 = vmatpush1.msra.mxu0 %v147
    %182 = vmatprep.subr.mxu0 0.0
    %183 = vmatpush1.msra.mxu0 %v148
    %184 = vmatprep.subr.mxu0 0.0
    %185 = vmatpush1.msra.mxu0 %v149
    %186 = vmatprep.subr.mxu0 0.0
    %187 = vmatpush1.msra.mxu0 %v150
    %188 = vmatprep.subr.mxu0 0.0
    %189 = vmatpush1.msra.mxu0 %v151
    %190 = vmatprep.subr.mxu0 0.0
    %191 = vmatpush1.msra.mxu0 %v152
    %192 = vmatprep.subr.mxu0 0.0
    %193 = vmatpush1.msra.mxu0 %v153
    %194 = vmatprep.subr.mxu0 0.0
    %195 = vmatpush1.msra.mxu0 %v154
    %196 = vmatprep.subr.mxu0 0.0
    %197 = vmatpush1.msra.mxu0 %v155
    %198 = vmatprep.subr.mxu0 0.0
    %199 = vmatpush1.msra.mxu0 %v156
    %200 = vmatprep.subr.mxu0 0.0
    %201 = vmatpush1.msra.mxu0 %v157
    %202 = vmatprep.subr.mxu0 0.0
    %203 = vmatpush1.msra.mxu0 %v158
    %204 = vmatprep.subr.mxu0 0.0
    %205 = vmatpush1.msra.mxu0 %v159
    %206 = vmatprep.subr.mxu0 0.0
    %207 = vmatpush1.msra.mxu0 %v160
    %208 = vmatprep.subr.mxu0 0.0
    %209 = vmatpush1.msra.mxu0 %v161
    %210 = vmatprep.subr.mxu0 0.0
    %211 = vmatpush1.msra.mxu0 %v162
    %212 = vmatprep.subr.mxu0 0.0
    %213 = vmatpush1.msra.mxu0 %v163
    %214 = vmatprep.subr.mxu0 0.0
    %215 = vmatpush1.msra.mxu0 %v164
    %216 = vmatprep.subr.mxu0 0.0
    %217 = vmatpush1.msra.mxu0 %v165
    %218 = vmatprep.subr.mxu0 0.0
    %219 = vmatpush1.msra.mxu0 %v166
    %220 = vmatprep.subr.mxu0 0.0
    %221 = vmatpush1.msra.mxu0 %v167
    %222 = vmatprep.subr.mxu0 0.0
    %223 = vmatpush1.msra.mxu0 %v168
    %224 = vmatprep.subr.mxu0 0.0
    %225 = vmatpush1.msra.mxu0 %v169
    %226 = vmatprep.subr.mxu0 0.0
    %227 = vmatpush1.msra.mxu0 %v170
    %228 = vmatprep.subr.mxu0 0.0
    %229 = vmatpush1.msra.mxu0 %v171
    %230 = vmatprep.subr.mxu0 0.0
    %231 = vmatpush1.msra.mxu0 %v172
    %232 = vmatprep.subr.mxu0 0.0
    %233 = vmatpush1.msra.mxu0 %v173
    %234 = vmatprep.subr.mxu0 0.0
    %235 = vmatpush1.msra.mxu0 %v174
    %236 = vmatprep.subr.mxu0 0.0
    %237 = vmatpush1.msra.mxu0 %v175
    %238 = vmatprep.subr.mxu0 0.0
    %239 = vmatpush1.msra.mxu0 %v176
    %240 = vmatprep.subr.mxu0 0.0
    %241 = vmatpush1.msra.mxu0 %v177
    %242 = vmatprep.mubr.f32.mxu0 %v73
    %243 = vmatmul.mubr.f32.gmra.mrb[0].mxu0 %v39
    %v244 = vpop.f32.mrb[0].mxu0
    %v245 = vadd.f32 0.0, %v244
    %v246 = vpop.f32.mrb[0].mxu0
    %247 = vdwg.mxu0
    %v248 = vmul.f32 %v245, 0.0625
    %v249 = vld [vmem:[%s5] sm:$0xff]
    %v250 = vld [vmem:[%s6] sm:$0xff]
    %252 = vset.pattern.permute.xlu0 0
    %253 = vperm.xlu0 %252, %v250
    %v254 = vpop.permute.xlu0 %253
    %vm256 = vcmask 31744
    %v258 = vsel %vm256, %v249, 0
    %vm260 = vcmask 1043456
    %v262 = vsel %vm260, %v145, 0
    %264 = vmatprep.subr.mxu0 0.0
    %265 = vmatpush1.msra.mxu0 %v262
    %266 = vmatprep.subr.mxu0 0.0
    %267 = vmatpush1.msra.mxu0 0.0
    %268 = vmatprep.subr.mxu0 0.0
    %269 = vmatpush1.msra.mxu0 0.0
    %270 = vmatprep.subr.mxu0 0.0
    %271 = vmatpush1.msra.mxu0 0.0
    %272 = vmatprep.subr.mxu0 0.0
    %273 = vmatpush1.msra.mxu0 0.0
    %274 = vmatprep.subr.mxu0 0.0
    %275 = vmatpush1.msra.mxu0 0.0
    %276 = vmatprep.subr.mxu0 0.0
    %277 = vmatpush1.msra.mxu0 0.0
    %278 = vmatprep.subr.mxu0 0.0
    %279 = vmatpush1.msra.mxu0 0.0
    %280 = vmatprep.subr.mxu0 0.0
    %281 = vmatpush1.msra.mxu0 0.0
    %282 = vmatprep.subr.mxu0 0.0
    %283 = vmatpush1.msra.mxu0 0.0
    %284 = vmatprep.subr.mxu0 0.0
    %285 = vmatpush1.msra.mxu0 0.0
    %286 = vmatprep.subr.mxu0 0.0
    %287 = vmatpush1.msra.mxu0 0.0
    %288 = vmatprep.subr.mxu0 0.0
    %289 = vmatpush1.msra.mxu0 0.0
    %290 = vmatprep.subr.mxu0 0.0
    %291 = vmatpush1.msra.mxu0 0.0
    %292 = vmatprep.subr.mxu0 0.0
    %293 = vmatpush1.msra.mxu0 0.0
    %294 = vmatprep.subr.mxu0 0.0
    %295 = vmatpush1.msra.mxu0 0.0
    %296 = vmatprep.subr.mxu0 0.0
    %297 = vmatpush1.msra.mxu0 0.0
    %298 = vmatprep.subr.mxu0 0.0
    %299 = vmatpush1.msra.mxu0 0.0
    %300 = vmatprep.subr.mxu0 0.0
    %301 = vmatpush1.msra.mxu0 0.0
    %302 = vmatprep.subr.mxu0 0.0
    %303 = vmatpush1.msra.mxu0 0.0
    %304 = vmatprep.subr.mxu0 0.0
    %305 = vmatpush1.msra.mxu0 0.0
    %306 = vmatprep.subr.mxu0 0.0
    %307 = vmatpush1.msra.mxu0 0.0
    %308 = vmatprep.subr.mxu0 0.0
    %309 = vmatpush1.msra.mxu0 0.0
    %310 = vmatprep.subr.mxu0 0.0
    %311 = vmatpush1.msra.mxu0 0.0
    %312 = vmatprep.subr.mxu0 0.0
    %313 = vmatpush1.msra.mxu0 0.0
    %314 = vmatprep.subr.mxu0 0.0
    %315 = vmatpush1.msra.mxu0 0.0
    %316 = vmatprep.subr.mxu0 0.0
    %317 = vmatpush1.msra.mxu0 0.0
    %318 = vmatprep.subr.mxu0 0.0
    %319 = vmatpush1.msra.mxu0 0.0
    %320 = vmatprep.subr.mxu0 0.0
    %321 = vmatpush1.msra.mxu0 0.0
    %322 = vmatprep.subr.mxu0 0.0
    %323 = vmatpush1.msra.mxu0 0.0
    %324 = vmatprep.subr.mxu0 0.0
    %325 = vmatpush1.msra.mxu0 0.0
    %326 = vmatprep.subr.mxu0 0.0
    %327 = vmatpush1.msra.mxu0 0.0
    %328 = vmatprep.mubr.f32.mxu0 0.0
    %329 = vmatmul.mubr.f32.gmra.mrb[0].mxu0 %v258
    %v330 = vpop.f32.mrb[0].mxu0
    %v331 = vadd.f32 %v254, %v330
    %v332 = vpop.f32.mrb[0].mxu0
    %333 = vdwg.mxu0
    %v334 = vmax.f32 %v331, 0.0
    %v336 = vsel %vm260, %v248, 0
    %338 = vmatprep.subr.mxu0 0.0
    %339 = vmatpush1.msra.mxu0 %v336
    %340 = vmatprep.subr.mxu0 0.0
    %341 = vmatpush1.msra.mxu0 0.0
    %342 = vmatprep.subr.mxu0 0.0
    %343 = vmatpush1.msra.mxu0 0.0
    %344 = vmatprep.subr.mxu0 0.0
    %345 = vmatpush1.msra.mxu0 0.0
    %346 = vmatprep.subr.mxu0 0.0
    %347 = vmatpush1.msra.mxu0 0.0
    %348 = vmatprep.subr.mxu0 0.0
    %349 = vmatpush1.msra.mxu0 0.0
    %350 = vmatprep.subr.mxu0 0.0
    %351 = vmatpush1.msra.mxu0 0.0
    %352 = vmatprep.subr.mxu0 0.0
    %353 = vmatpush1.msra.mxu0 0.0
    %354 = vmatprep.subr.mxu0 0.0
    %355 = vmatpush1.msra.mxu0 0.0
    %356 = vmatprep.subr.mxu0 0.0
    %357 = vmatpush1.msra.mxu0 0.0
    %358 = vmatprep.subr.mxu0 0.0
    %359 = vmatpush1.msra.mxu0 0.0
    %360 = vmatprep.subr.mxu0 0.0
    %361 = vmatpush1.msra.mxu0 0.0
    %362 = vmatprep.subr.mxu0 0.0
    %363 = vmatpush1.msra.mxu0 0.0
    %364 = vmatprep.subr.mxu0 0.0
    %365 = vmatpush1.msra.mxu0 0.0
    %366 = vmatprep.subr.mxu0 0.0
    %367 = vmatpush1.msra.mxu0 0.0
    %368 = vmatprep.subr.mxu0 0.0
    %369 = vmatpush1.msra.mxu0 0.0
    %370 = vmatprep.subr.mxu0 0.0
    %371 = vmatpush1.msra.mxu0 0.0
    %372 = vmatprep.subr.mxu0 0.0
    %373 = vmatpush1.msra.mxu0 0.0
    %374 = vmatprep.subr.mxu0 0.0
    %375 = vmatpush1.msra.mxu0 0.0
    %376 = vmatprep.subr.mxu0 0.0
    %377 = vmatpush1.msra.mxu0 0.0
    %378 = vmatprep.subr.mxu0 0.0
    %379 = vmatpush1.msra.mxu0 0.0
    %380 = vmatprep.subr.mxu0 0.0
    %381 = vmatpush1.msra.mxu0 0.0
    %382 = vmatprep.subr.mxu0 0.0
    %383 = vmatpush1.msra.mxu0 0.0
    %384 = vmatprep.subr.mxu0 0.0
    %385 = vmatpush1.msra.mxu0 0.0
    %386 = vmatprep.subr.mxu0 0.0
    %387 = vmatpush1.msra.mxu0 0.0
    %388 = vmatprep.subr.mxu0 0.0
    %389 = vmatpush1.msra.mxu0 0.0
    %390 = vmatprep.subr.mxu0 0.0
    %391 = vmatpush1.msra.mxu0 0.0
    %392 = vmatprep.subr.mxu0 0.0
    %393 = vmatpush1.msra.mxu0 0.0
    %394 = vmatprep.subr.mxu0 0.0
    %395 = vmatpush1.msra.mxu0 0.0
    %396 = vmatprep.subr.mxu0 0.0
    %397 = vmatpush1.msra.mxu0 0.0
    %398 = vmatprep.subr.mxu0 0.0
    %399 = vmatpush1.msra.mxu0 0.0
    %400 = vmatprep.subr.mxu0 0.0
    %401 = vmatpush1.msra.mxu0 0.0
    %402 = vmatprep.mubr.f32.mxu0 0.0
    %403 = vmatmul.mubr.f32.gmra.mrb[0].mxu0 %v258
    %v404 = vpop.f32.mrb[0].mxu0
    %v405 = vadd.f32 %v254, %v404
    %v406 = vpop.f32.mrb[0].mxu0
    %407 = vdwg.mxu0
    %v408 = vmax.f32 %v405, 0.0
    %v409 = vld [vmem:[%s7] sm:$0xf]
    %v410 = vld [vmem:[%s8] sm:$0xf]
    %412 = vset.pattern.permute.xlu0 0
    %413 = vperm.xlu0 %412, %v410
    %v414 = vpop.permute.xlu0 %413
    %vm416 = vcmask 64512
    %v418 = vsel %vm416, %v409, 0
    %420 = vmatprep.subr.mxu0 0.0
    %421 = vmatpush1.msra.mxu0 %v334
    %422 = vmatprep.subr.mxu0 0.0
    %423 = vmatpush1.msra.mxu0 0.0
    %424 = vmatprep.subr.mxu0 0.0
    %425 = vmatpush1.msra.mxu0 0.0
    %426 = vmatprep.subr.mxu0 0.0
    %427 = vmatpush1.msra.mxu0 0.0
    %428 = vmatprep.subr.mxu0 0.0
    %429 = vmatpush1.msra.mxu0 0.0
    %430 = vmatprep.subr.mxu0 0.0
    %431 = vmatpush1.msra.mxu0 0.0
    %432 = vmatprep.subr.mxu0 0.0
    %433 = vmatpush1.msra.mxu0 0.0
    %434 = vmatprep.subr.mxu0 0.0
    %435 = vmatpush1.msra.mxu0 0.0
    %436 = vmatprep.subr.mxu0 0.0
    %437 = vmatpush1.msra.mxu0 0.0
    %438 = vmatprep.subr.mxu0 0.0
    %439 = vmatpush1.msra.mxu0 0.0
    %440 = vmatprep.subr.mxu0 0.0
    %441 = vmatpush1.msra.mxu0 0.0
    %442 = vmatprep.subr.mxu0 0.0
    %443 = vmatpush1.msra.mxu0 0.0
    %444 = vmatprep.subr.mxu0 0.0
    %445 = vmatpush1.msra.mxu0 0.0
    %446 = vmatprep.subr.mxu0 0.0
    %447 = vmatpush1.msra.mxu0 0.0
    %448 = vmatprep.subr.mxu0 0.0
    %449 = vmatpush1.msra.mxu0 0.0
    %450 = vmatprep.subr.mxu0 0.0
    %451 = vmatpush1.msra.mxu0 0.0
    %452 = vmatprep.subr.mxu0 0.0
    %453 = vmatpush1.msra.mxu0 0.0
    %454 = vmatprep.subr.mxu0 0.0
    %455 = vmatpush1.msra.mxu0 0.0
    %456 = vmatprep.subr.mxu0 0.0
    %457 = vmatpush1.msra.mxu0 0.0
    %458 = vmatprep.subr.mxu0 0.0
    %459 = vmatpush1.msra.mxu0 0.0
    %460 = vmatprep.subr.mxu0 0.0
    %461 = vmatpush1.msra.mxu0 0.0
    %462 = vmatprep.subr.mxu0 0.0
    %463 = vmatpush1.msra.mxu0 0.0
    %464 = vmatprep.subr.mxu0 0.0
    %465 = vmatpush1.msra.mxu0 0.0
    %466 = vmatprep.subr.mxu0 0.0
    %467 = vmatpush1.msra.mxu0 0.0
    %468 = vmatprep.subr.mxu0 0.0
    %469 = vmatpush1.msra.mxu0 0.0
    %470 = vmatprep.subr.mxu0 0.0
    %471 = vmatpush1.msra.mxu0 0.0
    %472 = vmatprep.subr.mxu0 0.0
    %473 = vmatpush1.msra.mxu0 0.0
    %474 = vmatprep.subr.mxu0 0.0
    %475 = vmatpush1.msra.mxu0 0.0
    %476 = vmatprep.subr.mxu0 0.0
    %477 = vmatpush1.msra.mxu0 0.0
    %478 = vmatprep.subr.mxu0 0.0
    %479 = vmatpush1.msra.mxu0 0.0
    %480 = vmatprep.subr.mxu0 0.0
    %481 = vmatpush1.msra.mxu0 0.0
    %482 = vmatprep.subr.mxu0 0.0
    %483 = vmatpush1.msra.mxu0 0.0
    %484 = vmatprep.mubr.f32.mxu0 0.0
    %485 = vmatmul.mubr.f32.gmra.mrb[0].mxu0 %v418
    %v486 = vpop.f32.mrb[0].mxu0
    %v487 = vadd.f32 %v414, %v486
    %v488 = vpop.f32.mrb[0].mxu0
    %489 = vdwg.mxu0
    %v490 = vxor.u32 %v487, 2147483648
    %v491 = vmul.f32 %v490, 1.442695
    %v492 = vpow.pop %v491
    %v493 = vadd.f32 %v492, 1.0
    %v494 = vrcp.pop %v493
    %v495 = vmul.f32 1.0, %v494
    %v496 = vld [vmem:[%s9] sm:$0xf]
    %v497 = vld [vmem:[%s10] sm:$0xf]
    %499 = vset.pattern.permute.xlu0 0
    %500 = vperm.xlu0 %499, %v497
    %v501 = vpop.permute.xlu0 %500
    %v504 = vsel %vm416, %v496, 0
    %506 = vmatprep.subr.mxu0 0.0
    %507 = vmatpush1.msra.mxu0 %v408
    %508 = vmatprep.subr.mxu0 0.0
    %509 = vmatpush1.msra.mxu0 0.0
    %510 = vmatprep.subr.mxu0 0.0
    %511 = vmatpush1.msra.mxu0 0.0
    %512 = vmatprep.subr.mxu0 0.0
    %513 = vmatpush1.msra.mxu0 0.0
    %514 = vmatprep.subr.mxu0 0.0
    %515 = vmatpush1.msra.mxu0 0.0
    %516 = vmatprep.subr.mxu0 0.0
    %517 = vmatpush1.msra.mxu0 0.0
    %518 = vmatprep.subr.mxu0 0.0
    %519 = vmatpush1.msra.mxu0 0.0
    %520 = vmatprep.subr.mxu0 0.0
    %521 = vmatpush1.msra.mxu0 0.0
    %522 = vmatprep.subr.mxu0 0.0
    %523 = vmatpush1.msra.mxu0 0.0
    %524 = vmatprep.subr.mxu0 0.0
    %525 = vmatpush1.msra.mxu0 0.0
    %526 = vmatprep.subr.mxu0 0.0
    %527 = vmatpush1.msra.mxu0 0.0
    %528 = vmatprep.subr.mxu0 0.0
    %529 = vmatpush1.msra.mxu0 0.0
    %530 = vmatprep.subr.mxu0 0.0
    %531 = vmatpush1.msra.mxu0 0.0
    %532 = vmatprep.subr.mxu0 0.0
    %533 = vmatpush1.msra.mxu0 0.0
    %534 = vmatprep.subr.mxu0 0.0
    %535 = vmatpush1.msra.mxu0 0.0
    %536 = vmatprep.subr.mxu0 0.0
    %537 = vmatpush1.msra.mxu0 0.0
    %538 = vmatprep.subr.mxu0 0.0
    %539 = vmatpush1.msra.mxu0 0.0
    %540 = vmatprep.subr.mxu0 0.0
    %541 = vmatpush1.msra.mxu0 0.0
    %542 = vmatprep.subr.mxu0 0.0
    %543 = vmatpush1.msra.mxu0 0.0
    %544 = vmatprep.subr.mxu0 0.0
    %545 = vmatpush1.msra.mxu0 0.0
    %546 = vmatprep.subr.mxu0 0.0
    %547 = vmatpush1.msra.mxu0 0.0
    %548 = vmatprep.subr.mxu0 0.0
    %549 = vmatpush1.msra.mxu0 0.0
    %550 = vmatprep.subr.mxu0 0.0
    %551 = vmatpush1.msra.mxu0 0.0
    %552 = vmatprep.subr.mxu0 0.0
    %553 = vmatpush1.msra.mxu0 0.0
    %554 = vmatprep.subr.mxu0 0.0
    %555 = vmatpush1.msra.mxu0 0.0
    %556 = vmatprep.subr.mxu0 0.0
    %557 = vmatpush1.msra.mxu0 0.0
    %558 = vmatprep.subr.mxu0 0.0
    %559 = vmatpush1.msra.mxu0 0.0
    %560 = vmatprep.subr.mxu0 0.0
    %561 = vmatpush1.msra.mxu0 0.0
    %562 = vmatprep.subr.mxu0 0.0
    %563 = vmatpush1.msra.mxu0 0.0
    %564 = vmatprep.subr.mxu0 0.0
    %565 = vmatpush1.msra.mxu0 0.0
    %566 = vmatprep.subr.mxu0 0.0
    %567 = vmatpush1.msra.mxu0 0.0
    %568 = vmatprep.subr.mxu0 0.0
    %569 = vmatpush1.msra.mxu0 0.0
    %570 = vmatprep.mubr.f32.mxu0 0.0
    %571 = vmatmul.mubr.f32.gmra.mrb[0].mxu0 %v504
    %v572 = vpop.f32.mrb[0].mxu0
    %v573 = vadd.f32 %v501, %v572
    %v574 = vpop.f32.mrb[0].mxu0
    %575 = vdwg.mxu0
    %v576 = vxor.u32 %v573, 2147483648
    %v577 = vmul.f32 %v576, 1.442695
    %v578 = vpow.pop %v577
    %v579 = vadd.f32 %v578, 1.0
    %v580 = vrcp.pop %v579
    %v581 = vmul.f32 1.0, %v580
    %v582 = vld [vmem:[%s3] sm:$0xff]
    %v583 = vld [vmem:[%s3 + $0x8] sm:$0xff]
    %v584 = vld [vmem:[%s3 + $0x10] sm:$0xff]
    %v585 = vld [vmem:[%s3 + $0x18] sm:$0xff]
    %vm586 = vcmask 130048
    %v588 = vsel %vm586, %v495, 0
    %590 = vmatprep.subr.mxu0 %v583
    %591 = vmatpush1.msra.mxu0 %v582
    %592 = vmatprep.subr.mxu0 %v585
    %593 = vmatpush1.msra.mxu0 %v584
    %594 = vmatprep.subr.mxu0 0.0
    %595 = vmatpush1.msra.mxu0 0.0
    %596 = vmatprep.subr.mxu0 0.0
    %597 = vmatpush1.msra.mxu0 0.0
    %598 = vmatprep.subr.mxu0 0.0
    %599 = vmatpush1.msra.mxu0 0.0
    %600 = vmatprep.subr.mxu0 0.0
    %601 = vmatpush1.msra.mxu0 0.0
    %602 = vmatprep.subr.mxu0 0.0
    %603 = vmatpush1.msra.mxu0 0.0
    %604 = vmatprep.subr.mxu0 0.0
    %605 = vmatpush1.msra.mxu0 0.0
    %606 = vmatprep.subr.mxu0 0.0
    %607 = vmatpush1.msra.mxu0 0.0
    %608 = vmatprep.subr.mxu0 0.0
    %609 = vmatpush1.msra.mxu0 0.0
    %610 = vmatprep.subr.mxu0 0.0
    %611 = vmatpush1.msra.mxu0 0.0
    %612 = vmatprep.subr.mxu0 0.0
    %613 = vmatpush1.msra.mxu0 0.0
    %614 = vmatprep.subr.mxu0 0.0
    %615 = vmatpush1.msra.mxu0 0.0
    %616 = vmatprep.subr.mxu0 0.0
    %617 = vmatpush1.msra.mxu0 0.0
    %618 = vmatprep.subr.mxu0 0.0
    %619 = vmatpush1.msra.mxu0 0.0
    %620 = vmatprep.subr.mxu0 0.0
    %621 = vmatpush1.msra.mxu0 0.0
    %622 = vmatprep.subr.mxu0 0.0
    %623 = vmatpush1.msra.mxu0 0.0
    %624 = vmatprep.subr.mxu0 0.0
    %625 = vmatpush1.msra.mxu0 0.0
    %626 = vmatprep.subr.mxu0 0.0
    %627 = vmatpush1.msra.mxu0 0.0
    %628 = vmatprep.subr.mxu0 0.0
    %629 = vmatpush1.msra.mxu0 0.0
    %630 = vmatprep.subr.mxu0 0.0
    %631 = vmatpush1.msra.mxu0 0.0
    %632 = vmatprep.subr.mxu0 0.0
    %633 = vmatpush1.msra.mxu0 0.0
    %634 = vmatprep.subr.mxu0 0.0
    %635 = vmatpush1.msra.mxu0 0.0
    %636 = vmatprep.subr.mxu0 0.0
    %637 = vmatpush1.msra.mxu0 0.0
    %638 = vmatprep.subr.mxu0 0.0
    %639 = vmatpush1.msra.mxu0 0.0
    %640 = vmatprep.subr.mxu0 0.0
    %641 = vmatpush1.msra.mxu0 0.0
    %642 = vmatprep.subr.mxu0 0.0
    %643 = vmatpush1.msra.mxu0 0.0
    %644 = vmatprep.subr.mxu0 0.0
    %645 = vmatpush1.msra.mxu0 0.0
    %646 = vmatprep.subr.mxu0 0.0
    %647 = vmatpush1.msra.mxu0 0.0
    %648 = vmatprep.subr.mxu0 0.0
    %649 = vmatpush1.msra.mxu0 0.0
    %650 = vmatprep.subr.mxu0 0.0
    %651 = vmatpush1.msra.mxu0 0.0
    %652 = vmatprep.subr.mxu0 0.0
    %653 = vmatpush1.msra.mxu0 0.0
    %654 = vmatprep.mubr.f32.mxu0 0.0
    %655 = vmatmul.mubr.f32.gmra.mrb[0].mxu0 %v588
    %v656 = vpop.f32.mrb[0].mxu0
    %v657 = vadd.f32 0.0, %v656
    %v658 = vpop.f32.mrb[0].mxu0
    %v659 = vadd.f32 0.0, %v658
    %660 = vdwg.mxu0
    %v661 = vld [vmem:[%s4] sm:$0xff]
    %v662 = vld [vmem:[%s4 + $0x8] sm:$0xff]
    %v663 = vld [vmem:[%s4 + $0x10] sm:$0xff]
    %v664 = vld [vmem:[%s4 + $0x18] sm:$0xff]
    %v666 = vsel %vm586, %v581, 0
    %668 = vmatprep.subr.mxu0 %v662
    %669 = vmatpush1.msra.mxu0 %v661
    %670 = vmatprep.subr.mxu0 %v664
    %671 = vmatpush1.msra.mxu0 %v663
    %672 = vmatprep.subr.mxu0 0.0
    %673 = vmatpush1.msra.mxu0 0.0
    %674 = vmatprep.subr.mxu0 0.0
    %675 = vmatpush1.msra.mxu0 0.0
    %676 = vmatprep.subr.mxu0 0.0
    %677 = vmatpush1.msra.mxu0 0.0
    %678 = vmatprep.subr.mxu0 0.0
    %679 = vmatpush1.msra.mxu0 0.0
    %680 = vmatprep.subr.mxu0 0.0
    %681 = vmatpush1.msra.mxu0 0.0
    %682 = vmatprep.subr.mxu0 0.0
    %683 = vmatpush1.msra.mxu0 0.0
    %684 = vmatprep.subr.mxu0 0.0
    %685 = vmatpush1.msra.mxu0 0.0
    %686 = vmatprep.subr.mxu0 0.0
    %687 = vmatpush1.msra.mxu0 0.0
    %688 = vmatprep.subr.mxu0 0.0
    %689 = vmatpush1.msra.mxu0 0.0
    %690 = vmatprep.subr.mxu0 0.0
    %691 = vmatpush1.msra.mxu0 0.0
    %692 = vmatprep.subr.mxu0 0.0
    %693 = vmatpush1.msra.mxu0 0.0
    %694 = vmatprep.subr.mxu0 0.0
    %695 = vmatpush1.msra.mxu0 0.0
    %696 = vmatprep.subr.mxu0 0.0
    %697 = vmatpush1.msra.mxu0 0.0
    %698 = vmatprep.subr.mxu0 0.0
    %699 = vmatpush1.msra.mxu0 0.0
    %700 = vmatprep.subr.mxu0 0.0
    %701 = vmatpush1.msra.mxu0 0.0
    %702 = vmatprep.subr.mxu0 0.0
    %703 = vmatpush1.msra.mxu0 0.0
    %704 = vmatprep.subr.mxu0 0.0
    %705 = vmatpush1.msra.mxu0 0.0
    %706 = vmatprep.subr.mxu0 0.0
    %707 = vmatpush1.msra.mxu0 0.0
    %708 = vmatprep.subr.mxu0 0.0
    %709 = vmatpush1.msra.mxu0 0.0
    %710 = vmatprep.subr.mxu0 0.0
    %711 = vmatpush1.msra.mxu0 0.0
    %712 = vmatprep.subr.mxu0 0.0
    %713 = vmatpush1.msra.mxu0 0.0
    %714 = vmatprep.subr.mxu0 0.0
    %715 = vmatpush1.msra.mxu0 0.0
    %716 = vmatprep.subr.mxu0 0.0
    %717 = vmatpush1.msra.mxu0 0.0
    %718 = vmatprep.subr.mxu0 0.0
    %719 = vmatpush1.msra.mxu0 0.0
    %720 = vmatprep.subr.mxu0 0.0
    %721 = vmatpush1.msra.mxu0 0.0
    %722 = vmatprep.subr.mxu0 0.0
    %723 = vmatpush1.msra.mxu0 0.0
    %724 = vmatprep.subr.mxu0 0.0
    %725 = vmatpush1.msra.mxu0 0.0
    %726 = vmatprep.subr.mxu0 0.0
    %727 = vmatpush1.msra.mxu0 0.0
    %728 = vmatprep.subr.mxu0 0.0
    %729 = vmatpush1.msra.mxu0 0.0
    %730 = vmatprep.subr.mxu0 0.0
    %731 = vmatpush1.msra.mxu0 0.0
    %732 = vmatprep.mubr.f32.mxu0 0.0
    %733 = vmatmul.mubr.f32.gmra.mrb[0].mxu0 %v666
    %v734 = vpop.f32.mrb[0].mxu0
    %v735 = vadd.f32 0.0, %v734
    %v736 = vpop.f32.mrb[0].mxu0
    %v737 = vadd.f32 0.0, %v736
    %738 = vdwg.mxu0
    %v741 = vcombine.low %v657, %v659
    %v743 = vmul.f32 %v39, %v741
    %v746 = vcombine.low %v735, %v737
    %v748 = vmul.f32 %v743, %v746
    %749 = vst [vmem:[#allocation2] sm:$0xff] %v748
    %s750 = scalar_lea.vmem %s0, 8
    %v751 = vld [vmem:[%s750] sm:$0xff]
    %v752 = vld [vmem:[%s1] sm:$0xff]
    %v753 = vld [vmem:[%s1 + $0x8] sm:$0xff]
    %v754 = vld [vmem:[%s1 + $0x10] sm:$0xff]
    %v755 = vld [vmem:[%s1 + $0x18] sm:$0xff]
    %v756 = vld [vmem:[%s1 + $0x20] sm:$0xff]
    %v757 = vld [vmem:[%s1 + $0x28] sm:$0xff]
    %v758 = vld [vmem:[%s1 + $0x30] sm:$0xff]
    %v759 = vld [vmem:[%s1 + $0x38] sm:$0xff]
    %v760 = vld [vmem:[%s1 + $0x40] sm:$0xff]
    %v761 = vld [vmem:[%s1 + $0x48] sm:$0xff]
    %v762 = vld [vmem:[%s1 + $0x50] sm:$0xff]
    %v763 = vld [vmem:[%s1 + $0x58] sm:$0xff]
    %v764 = vld [vmem:[%s1 + $0x60] sm:$0xff]
    %v765 = vld [vmem:[%s1 + $0x68] sm:$0xff]
    %v766 = vld [vmem:[%s1 + $0x70] sm:$0xff]
    %v767 = vld [vmem:[%s1 + $0x78] sm:$0xff]
    %v768 = vld [vmem:[%s1 + $0x80] sm:$0xff]
    %v769 = vld [vmem:[%s1 + $0x88] sm:$0xff]
    %v770 = vld [vmem:[%s1 + $0x90] sm:$0xff]
    %v771 = vld [vmem:[%s1 + $0x98] sm:$0xff]
    %v772 = vld [vmem:[%s1 + $0xa0] sm:$0xff]
    %v773 = vld [vmem:[%s1 + $0xa8] sm:$0xff]
    %v774 = vld [vmem:[%s1 + $0xb0] sm:$0xff]
    %v775 = vld [vmem:[%s1 + $0xb8] sm:$0xff]
    %v776 = vld [vmem:[%s1 + $0xc0] sm:$0xff]
    %v777 = vld [vmem:[%s1 + $0xc8] sm:$0xff]
    %v778 = vld [vmem:[%s1 + $0xd0] sm:$0xff]
    %v779 = vld [vmem:[%s1 + $0xd8] sm:$0xff]
    %v780 = vld [vmem:[%s1 + $0xe0] sm:$0xff]
    %v781 = vld [vmem:[%s1 + $0xe8] sm:$0xff]
    %v782 = vld [vmem:[%s1 + $0xf0] sm:$0xff]
    %v783 = vld [vmem:[%s1 + $0xf8] sm:$0xff]
    %v785 = vcombine.high %v751, %v751
    %787 = vmatprep.subr.mxu0 0.0
    %788 = vmatpush1.msra.mxu0 %v752
    %789 = vmatprep.subr.mxu0 0.0
    %790 = vmatpush1.msra.mxu0 %v753
    %791 = vmatprep.subr.mxu0 0.0
    %792 = vmatpush1.msra.mxu0 %v754
    %793 = vmatprep.subr.mxu0 0.0
    %794 = vmatpush1.msra.mxu0 %v755
    %795 = vmatprep.subr.mxu0 0.0
    %796 = vmatpush1.msra.mxu0 %v756
    %797 = vmatprep.subr.mxu0 0.0
    %798 = vmatpush1.msra.mxu0 %v757
    %799 = vmatprep.subr.mxu0 0.0
    %800 = vmatpush1.msra.mxu0 %v758
    %801 = vmatprep.subr.mxu0 0.0
    %802 = vmatpush1.msra.mxu0 %v759
    %803 = vmatprep.subr.mxu0 0.0
    %804 = vmatpush1.msra.mxu0 %v760
    %805 = vmatprep.subr.mxu0 0.0
    %806 = vmatpush1.msra.mxu0 %v761
    %807 = vmatprep.subr.mxu0 0.0
    %808 = vmatpush1.msra.mxu0 %v762
    %809 = vmatprep.subr.mxu0 0.0
    %810 = vmatpush1.msra.mxu0 %v763
    %811 = vmatprep.subr.mxu0 0.0
    %812 = vmatpush1.msra.mxu0 %v764
    %813 = vmatprep.subr.mxu0 0.0
    %814 = vmatpush1.msra.mxu0 %v765
    %815 = vmatprep.subr.mxu0 0.0
    %816 = vmatpush1.msra.mxu0 %v766
    %817 = vmatprep.subr.mxu0 0.0
    %818 = vmatpush1.msra.mxu0 %v767
    %819 = vmatprep.subr.mxu0 0.0
    %820 = vmatpush1.msra.mxu0 %v768
    %821 = vmatprep.subr.mxu0 0.0
    %822 = vmatpush1.msra.mxu0 %v769
    %823 = vmatprep.subr.mxu0 0.0
    %824 = vmatpush1.msra.mxu0 %v770
    %825 = vmatprep.subr.mxu0 0.0
    %826 = vmatpush1.msra.mxu0 %v771
    %827 = vmatprep.subr.mxu0 0.0
    %828 = vmatpush1.msra.mxu0 %v772
    %829 = vmatprep.subr.mxu0 0.0
    %830 = vmatpush1.msra.mxu0 %v773
    %831 = vmatprep.subr.mxu0 0.0
    %832 = vmatpush1.msra.mxu0 %v774
    %833 = vmatprep.subr.mxu0 0.0
    %834 = vmatpush1.msra.mxu0 %v775
    %835 = vmatprep.subr.mxu0 0.0
    %836 = vmatpush1.msra.mxu0 %v776
    %837 = vmatprep.subr.mxu0 0.0
    %838 = vmatpush1.msra.mxu0 %v777
    %839 = vmatprep.subr.mxu0 0.0
    %840 = vmatpush1.msra.mxu0 %v778
    %841 = vmatprep.subr.mxu0 0.0
    %842 = vmatpush1.msra.mxu0 %v779
    %843 = vmatprep.subr.mxu0 0.0
    %844 = vmatpush1.msra.mxu0 %v780
    %845 = vmatprep.subr.mxu0 0.0
    %846 = vmatpush1.msra.mxu0 %v781
    %847 = vmatprep.subr.mxu0 0.0
    %848 = vmatpush1.msra.mxu0 %v782
    %849 = vmatprep.subr.mxu0 0.0
    %850 = vmatpush1.msra.mxu0 %v783
    %851 = vmatprep.mubr.f32.mxu0 %v785
    %852 = vmatmul.mubr.f32.gmra.mrb[0].mxu0 %v751
    %v853 = vpop.f32.mrb[0].mxu0
    %v854 = vadd.f32 0.0, %v853
    %v855 = vpop.f32.mrb[0].mxu0
    %856 = vdwg.mxu0
    %v857 = vmul.f32 %v854, 0.0625
    %v858 = vld [vmem:[%s2] sm:$0xff]
    %v859 = vld [vmem:[%s2 + $0x8] sm:$0xff]
    %v860 = vld [vmem:[%s2 + $0x10] sm:$0xff]
    %v861 = vld [vmem:[%s2 + $0x18] sm:$0xff]
    %v862 = vld [vmem:[%s2 + $0x20] sm:$0xff]
    %v863 = vld [vmem:[%s2 + $0x28] sm:$0xff]
    %v864 = vld [vmem:[%s2 + $0x30] sm:$0xff]
    %v865 = vld [vmem:[%s2 + $0x38] sm:$0xff]
    %v866 = vld [vmem:[%s2 + $0x40] sm:$0xff]
    %v867 = vld [vmem:[%s2 + $0x48] sm:$0xff]
    %v868 = vld [vmem:[%s2 + $0x50] sm:$0xff]
    %v869 = vld [vmem:[%s2 + $0x58] sm:$0xff]
    %v870 = vld [vmem:[%s2 + $0x60] sm:$0xff]
    %v871 = vld [vmem:[%s2 + $0x68] sm:$0xff]
    %v872 = vld [vmem:[%s2 + $0x70] sm:$0xff]
    %v873 = vld [vmem:[%s2 + $0x78] sm:$0xff]
    %v874 = vld [vmem:[%s2 + $0x80] sm:$0xff]
    %v875 = vld [vmem:[%s2 + $0x88] sm:$0xff]
    %v876 = vld [vmem:[%s2 + $0x90] sm:$0xff]
    %v877 = vld [vmem:[%s2 + $0x98] sm:$0xff]
    %v878 = vld [vmem:[%s2 + $0xa0] sm:$0xff]
    %v879 = vld [vmem:[%s2 + $0xa8] sm:$0xff]
    %v880 = vld [vmem:[%s2 + $0xb0] sm:$0xff]
    %v881 = vld [vmem:[%s2 + $0xb8] sm:$0xff]
    %v882 = vld [vmem:[%s2 + $0xc0] sm:$0xff]
    %v883 = vld [vmem:[%s2 + $0xc8] sm:$0xff]
    %v884 = vld [vmem:[%s2 + $0xd0] sm:$0xff]
    %v885 = vld [vmem:[%s2 + $0xd8] sm:$0xff]
    %v886 = vld [vmem:[%s2 + $0xe0] sm:$0xff]
    %v887 = vld [vmem:[%s2 + $0xe8] sm:$0xff]
    %v888 = vld [vmem:[%s2 + $0xf0] sm:$0xff]
    %v889 = vld [vmem:[%s2 + $0xf8] sm:$0xff]
    %890 = vmatprep.subr.mxu0 0.0
    %891 = vmatpush1.msra.mxu0 %v858
    %892 = vmatprep.subr.mxu0 0.0
    %893 = vmatpush1.msra.mxu0 %v859
    %894 = vmatprep.subr.mxu0 0.0
    %895 = vmatpush1.msra.mxu0 %v860
    %896 = vmatprep.subr.mxu0 0.0
    %897 = vmatpush1.msra.mxu0 %v861
    %898 = vmatprep.subr.mxu0 0.0
    %899 = vmatpush1.msra.mxu0 %v862
    %900 = vmatprep.subr.mxu0 0.0
    %901 = vmatpush1.msra.mxu0 %v863
    %902 = vmatprep.subr.mxu0 0.0
    %903 = vmatpush1.msra.mxu0 %v864
    %904 = vmatprep.subr.mxu0 0.0
    %905 = vmatpush1.msra.mxu0 %v865
    %906 = vmatprep.subr.mxu0 0.0
    %907 = vmatpush1.msra.mxu0 %v866
    %908 = vmatprep.subr.mxu0 0.0
    %909 = vmatpush1.msra.mxu0 %v867
    %910 = vmatprep.subr.mxu0 0.0
    %911 = vmatpush1.msra.mxu0 %v868
    %912 = vmatprep.subr.mxu0 0.0
    %913 = vmatpush1.msra.mxu0 %v869
    %914 = vmatprep.subr.mxu0 0.0
    %915 = vmatpush1.msra.mxu0 %v870
    %916 = vmatprep.subr.mxu0 0.0
    %917 = vmatpush1.msra.mxu0 %v871
    %918 = vmatprep.subr.mxu0 0.0
    %919 = vmatpush1.msra.mxu0 %v872
    %920 = vmatprep.subr.mxu0 0.0
    %921 = vmatpush1.msra.mxu0 %v873
    %922 = vmatprep.subr.mxu0 0.0
    %923 = vmatpush1.msra.mxu0 %v874
    %924 = vmatprep.subr.mxu0 0.0
    %925 = vmatpush1.msra.mxu0 %v875
    %926 = vmatprep.subr.mxu0 0.0
    %927 = vmatpush1.msra.mxu0 %v876
    %928 = vmatprep.subr.mxu0 0.0
    %929 = vmatpush1.msra.mxu0 %v877
    %930 = vmatprep.subr.mxu0 0.0
    %931 = vmatpush1.msra.mxu0 %v878
    %932 = vmatprep.subr.mxu0 0.0
    %933 = vmatpush1.msra.mxu0 %v879
    %934 = vmatprep.subr.mxu0 0.0
    %935 = vmatpush1.msra.mxu0 %v880
    %936 = vmatprep.subr.mxu0 0.0
    %937 = vmatpush1.msra.mxu0 %v881
    %938 = vmatprep.subr.mxu0 0.0
    %939 = vmatpush1.msra.mxu0 %v882
    %940 = vmatprep.subr.mxu0 0.0
    %941 = vmatpush1.msra.mxu0 %v883
    %942 = vmatprep.subr.mxu0 0.0
    %943 = vmatpush1.msra.mxu0 %v884
    %944 = vmatprep.subr.mxu0 0.0
    %945 = vmatpush1.msra.mxu0 %v885
    %946 = vmatprep.subr.mxu0 0.0
    %947 = vmatpush1.msra.mxu0 %v886
    %948 = vmatprep.subr.mxu0 0.0
    %949 = vmatpush1.msra.mxu0 %v887
    %950 = vmatprep.subr.mxu0 0.0
    %951 = vmatpush1.msra.mxu0 %v888
    %952 = vmatprep.subr.mxu0 0.0
    %953 = vmatpush1.msra.mxu0 %v889
    %954 = vmatprep.mubr.f32.mxu0 %v785
    %955 = vmatmul.mubr.f32.gmra.mrb[0].mxu0 %v751
    %v956 = vpop.f32.mrb[0].mxu0
    %v957 = vadd.f32 0.0, %v956
    %v958 = vpop.f32.mrb[0].mxu0
    %959 = vdwg.mxu0
    %v960 = vmul.f32 %v957, 0.0625
    %v961 = vld [vmem:[%s5] sm:$0xff]
    %v962 = vld [vmem:[%s6] sm:$0xff]
    %964 = vset.pattern.permute.xlu0 0
    %965 = vperm.xlu0 %964, %v962
    %v966 = vpop.permute.xlu0 %965
    %v969 = vsel %vm256, %v961, 0
    %v972 = vsel %vm260, %v857, 0
    %974 = vmatprep.subr.mxu0 0.0
    %975 = vmatpush1.msra.mxu0 %v972
    %976 = vmatprep.subr.mxu0 0.0
    %977 = vmatpush1.msra.mxu0 0.0
    %978 = vmatprep.subr.mxu0 0.0
    %979 = vmatpush1.msra.mxu0 0.0
    %980 = vmatprep.subr.mxu0 0.0
    %981 = vmatpush1.msra.mxu0 0.0
    %982 = vmatprep.subr.mxu0 0.0
    %983 = vmatpush1.msra.mxu0 0.0
    %984 = vmatprep.subr.mxu0 0.0
    %985 = vmatpush1.msra.mxu0 0.0
    %986 = vmatprep.subr.mxu0 0.0
    %987 = vmatpush1.msra.mxu0 0.0
    %988 = vmatprep.subr.mxu0 0.0
    %989 = vmatpush1.msra.mxu0 0.0
    %990 = vmatprep.subr.mxu0 0.0
    %991 = vmatpush1.msra.mxu0 0.0
    %992 = vmatprep.subr.mxu0 0.0
    %993 = vmatpush1.msra.mxu0 0.0
    %994 = vmatprep.subr.mxu0 0.0
    %995 = vmatpush1.msra.mxu0 0.0
    %996 = vmatprep.subr.mxu0 0.0
    %997 = vmatpush1.msra.mxu0 0.0
    %998 = vmatprep.subr.mxu0 0.0
    %999 = vmatpush1.msra.mxu0 0.0
    %1000 = vmatprep.subr.mxu0 0.0
    %1001 = vmatpush1.msra.mxu0 0.0
    %1002 = vmatprep.subr.mxu0 0.0
    %1003 = vmatpush1.msra.mxu0 0.0
    %1004 = vmatprep.subr.mxu0 0.0
    %1005 = vmatpush1.msra.mxu0 0.0
    %1006 = vmatprep.subr.mxu0 0.0
    %1007 = vmatpush1.msra.mxu0 0.0
    %1008 = vmatprep.subr.mxu0 0.0
    %1009 = vmatpush1.msra.mxu0 0.0
    %1010 = vmatprep.subr.mxu0 0.0
    %1011 = vmatpush1.msra.mxu0 0.0
    %1012 = vmatprep.subr.mxu0 0.0
    %1013 = vmatpush1.msra.mxu0 0.0
    %1014 = vmatprep.subr.mxu0 0.0
    %1015 = vmatpush1.msra.mxu0 0.0
    %1016 = vmatprep.subr.mxu0 0.0
    %1017 = vmatpush1.msra.mxu0 0.0
    %1018 = vmatprep.subr.mxu0 0.0
    %1019 = vmatpush1.msra.mxu0 0.0
    %1020 = vmatprep.subr.mxu0 0.0
    %1021 = vmatpush1.msra.mxu0 0.0
    %1022 = vmatprep.subr.mxu0 0.0
    %1023 = vmatpush1.msra.mxu0 0.0
    %1024 = vmatprep.subr.mxu0 0.0
    %1025 = vmatpush1.msra.mxu0 0.0
    %1026 = vmatprep.subr.mxu0 0.0
    %1027 = vmatpush1.msra.mxu0 0.0
    %1028 = vmatprep.subr.mxu0 0.0
    %1029 = vmatpush1.msra.mxu0 0.0
    %1030 = vmatprep.subr.mxu0 0.0
    %1031 = vmatpush1.msra.mxu0 0.0
    %1032 = vmatprep.subr.mxu0 0.0
    %1033 = vmatpush1.msra.mxu0 0.0
    %1034 = vmatprep.subr.mxu0 0.0
    %1035 = vmatpush1.msra.mxu0 0.0
    %1036 = vmatprep.subr.mxu0 0.0
    %1037 = vmatpush1.msra.mxu0 0.0
    %1038 = vmatprep.mubr.f32.mxu0 0.0
    %1039 = vmatmul.mubr.f32.gmra.mrb[0].mxu0 %v969
    %v1040 = vpop.f32.mrb[0].mxu0
    %v1041 = vadd.f32 %v966, %v1040
    %v1042 = vpop.f32.mrb[0].mxu0
    %1043 = vdwg.mxu0
    %v1044 = vmax.f32 %v1041, 0.0
    %v1046 = vsel %vm260, %v960, 0
    %1048 = vmatprep.subr.mxu0 0.0
    %1049 = vmatpush1.msra.mxu0 %v1046
    %1050 = vmatprep.subr.mxu0 0.0
    %1051 = vmatpush1.msra.mxu0 0.0
    %1052 = vmatprep.subr.mxu0 0.0
    %1053 = vmatpush1.msra.mxu0 0.0
    %1054 = vmatprep.subr.mxu0 0.0
    %1055 = vmatpush1.msra.mxu0 0.0
    %1056 = vmatprep.subr.mxu0 0.0
    %1057 = vmatpush1.msra.mxu0 0.0
    %1058 = vmatprep.subr.mxu0 0.0
    %1059 = vmatpush1.msra.mxu0 0.0
    %1060 = vmatprep.subr.mxu0 0.0
    %1061 = vmatpush1.msra.mxu0 0.0
    %1062 = vmatprep.subr.mxu0 0.0
    %1063 = vmatpush1.msra.mxu0 0.0
    %1064 = vmatprep.subr.mxu0 0.0
    %1065 = vmatpush1.msra.mxu0 0.0
    %1066 = vmatprep.subr.mxu0 0.0
    %1067 = vmatpush1.msra.mxu0 0.0
    %1068 = vmatprep.subr.mxu0 0.0
    %1069 = vmatpush1.msra.mxu0 0.0
    %1070 = vmatprep.subr.mxu0 0.0
    %1071 = vmatpush1.msra.mxu0 0.0
    %1072 = vmatprep.subr.mxu0 0.0
    %1073 = vmatpush1.msra.mxu0 0.0
    %1074 = vmatprep.subr.mxu0 0.0
    %1075 = vmatpush1.msra.mxu0 0.0
    %1076 = vmatprep.subr.mxu0 0.0
    %1077 = vmatpush1.msra.mxu0 0.0
    %1078 = vmatprep.subr.mxu0 0.0
    %1079 = vmatpush1.msra.mxu0 0.0
    %1080 = vmatprep.subr.mxu0 0.0
    %1081 = vmatpush1.msra.mxu0 0.0
    %1082 = vmatprep.subr.mxu0 0.0
    %1083 = vmatpush1.msra.mxu0 0.0
    %1084 = vmatprep.subr.mxu0 0.0
    %1085 = vmatpush1.msra.mxu0 0.0
    %1086 = vmatprep.subr.mxu0 0.0
    %1087 = vmatpush1.msra.mxu0 0.0
    %1088 = vmatprep.subr.mxu0 0.0
    %1089 = vmatpush1.msra.mxu0 0.0
    %1090 = vmatprep.subr.mxu0 0.0
    %1091 = vmatpush1.msra.mxu0 0.0
    %1092 = vmatprep.subr.mxu0 0.0
    %1093 = vmatpush1.msra.mxu0 0.0
    %1094 = vmatprep.subr.mxu0 0.0
    %1095 = vmatpush1.msra.mxu0 0.0
    %1096 = vmatprep.subr.mxu0 0.0
    %1097 = vmatpush1.msra.mxu0 0.0
    %1098 = vmatprep.subr.mxu0 0.0
    %1099 = vmatpush1.msra.mxu0 0.0
    %1100 = vmatprep.subr.mxu0 0.0
    %1101 = vmatpush1.msra.mxu0 0.0
    %1102 = vmatprep.subr.mxu0 0.0
    %1103 = vmatpush1.msra.mxu0 0.0
    %1104 = vmatprep.subr.mxu0 0.0
    %1105 = vmatpush1.msra.mxu0 0.0
    %1106 = vmatprep.subr.mxu0 0.0
    %1107 = vmatpush1.msra.mxu0 0.0
    %1108 = vmatprep.subr.mxu0 0.0
    %1109 = vmatpush1.msra.mxu0 0.0
    %1110 = vmatprep.subr.mxu0 0.0
    %1111 = vmatpush1.msra.mxu0 0.0
    %1112 = vmatprep.mubr.f32.mxu0 0.0
    %1113 = vmatmul.mubr.f32.gmra.mrb[0].mxu0 %v969
    %v1114 = vpop.f32.mrb[0].mxu0
    %v1115 = vadd.f32 %v966, %v1114
    %v1116 = vpop.f32.mrb[0].mxu0
    %1117 = vdwg.mxu0
    %v1118 = vmax.f32 %v1115, 0.0
    %v1119 = vld [vmem:[%s7] sm:$0xf]
    %v1120 = vld [vmem:[%s8] sm:$0xf]
    %1122 = vset.pattern.permute.xlu0 0
    %1123 = vperm.xlu0 %1122, %v1120
    %v1124 = vpop.permute.xlu0 %1123
    %v1127 = vsel %vm416, %v1119, 0
    %1129 = vmatprep.subr.mxu0 0.0
    %1130 = vmatpush1.msra.mxu0 %v1044
    %1131 = vmatprep.subr.mxu0 0.0
    %1132 = vmatpush1.msra.mxu0 0.0
    %1133 = vmatprep.subr.mxu0 0.0
    %1134 = vmatpush1.msra.mxu0 0.0
    %1135 = vmatprep.subr.mxu0 0.0
    %1136 = vmatpush1.msra.mxu0 0.0
    %1137 = vmatprep.subr.mxu0 0.0
    %1138 = vmatpush1.msra.mxu0 0.0
    %1139 = vmatprep.subr.mxu0 0.0
    %1140 = vmatpush1.msra.mxu0 0.0
    %1141 = vmatprep.subr.mxu0 0.0
    %1142 = vmatpush1.msra.mxu0 0.0
    %1143 = vmatprep.subr.mxu0 0.0
    %1144 = vmatpush1.msra.mxu0 0.0
    %1145 = vmatprep.subr.mxu0 0.0
    %1146 = vmatpush1.msra.mxu0 0.0
    %1147 = vmatprep.subr.mxu0 0.0
    %1148 = vmatpush1.msra.mxu0 0.0
    %1149 = vmatprep.subr.mxu0 0.0
    %1150 = vmatpush1.msra.mxu0 0.0
    %1151 = vmatprep.subr.mxu0 0.0
    %1152 = vmatpush1.msra.mxu0 0.0
    %1153 = vmatprep.subr.mxu0 0.0
    %1154 = vmatpush1.msra.mxu0 0.0
    %1155 = vmatprep.subr.mxu0 0.0
    %1156 = vmatpush1.msra.mxu0 0.0
    %1157 = vmatprep.subr.mxu0 0.0
    %1158 = vmatpush1.msra.mxu0 0.0
    %1159 = vmatprep.subr.mxu0 0.0
    %1160 = vmatpush1.msra.mxu0 0.0
    %1161 = vmatprep.subr.mxu0 0.0
    %1162 = vmatpush1.msra.mxu0 0.0
    %1163 = vmatprep.subr.mxu0 0.0
    %1164 = vmatpush1.msra.mxu0 0.0
    %1165 = vmatprep.subr.mxu0 0.0
    %1166 = vmatpush1.msra.mxu0 0.0
    %1167 = vmatprep.subr.mxu0 0.0
    %1168 = vmatpush1.msra.mxu0 0.0
    %1169 = vmatprep.subr.mxu0 0.0
    %1170 = vmatpush1.msra.mxu0 0.0
    %1171 = vmatprep.subr.mxu0 0.0
    %1172 = vmatpush1.msra.mxu0 0.0
    %1173 = vmatprep.subr.mxu0 0.0
    %1174 = vmatpush1.msra.mxu0 0.0
    %1175 = vmatprep.subr.mxu0 0.0
    %1176 = vmatpush1.msra.mxu0 0.0
    %1177 = vmatprep.subr.mxu0 0.0
    %1178 = vmatpush1.msra.mxu0 0.0
    %1179 = vmatprep.subr.mxu0 0.0
    %1180 = vmatpush1.msra.mxu0 0.0
    %1181 = vmatprep.subr.mxu0 0.0
    %1182 = vmatpush1.msra.mxu0 0.0
    %1183 = vmatprep.subr.mxu0 0.0
    %1184 = vmatpush1.msra.mxu0 0.0
    %1185 = vmatprep.subr.mxu0 0.0
    %1186 = vmatpush1.msra.mxu0 0.0
    %1187 = vmatprep.subr.mxu0 0.0
    %1188 = vmatpush1.msra.mxu0 0.0
    %1189 = vmatprep.subr.mxu0 0.0
    %1190 = vmatpush1.msra.mxu0 0.0
    %1191 = vmatprep.subr.mxu0 0.0
    %1192 = vmatpush1.msra.mxu0 0.0
    %1193 = vmatprep.mubr.f32.mxu0 0.0
    %1194 = vmatmul.mubr.f32.gmra.mrb[0].mxu0 %v1127
    %v1195 = vpop.f32.mrb[0].mxu0
    %v1196 = vadd.f32 %v1124, %v1195
    %v1197 = vpop.f32.mrb[0].mxu0
    %1198 = vdwg.mxu0
    %v1199 = vxor.u32 %v1196, 2147483648
    %v1200 = vmul.f32 %v1199, 1.442695
    %v1201 = vpow.pop %v1200
    %v1202 = vadd.f32 %v1201, 1.0
    %v1203 = vrcp.pop %v1202
    %v1204 = vmul.f32 1.0, %v1203
    %v1205 = vld [vmem:[%s9] sm:$0xf]
    %v1206 = vld [vmem:[%s10] sm:$0xf]
    %1208 = vset.pattern.permute.xlu0 0
    %1209 = vperm.xlu0 %1208, %v1206
    %v1210 = vpop.permute.xlu0 %1209
    %v1213 = vsel %vm416, %v1205, 0
    %1215 = vmatprep.subr.mxu0 0.0
    %1216 = vmatpush1.msra.mxu0 %v1118
    %1217 = vmatprep.subr.mxu0 0.0
    %1218 = vmatpush1.msra.mxu0 0.0
    %1219 = vmatprep.subr.mxu0 0.0
    %1220 = vmatpush1.msra.mxu0 0.0
    %1221 = vmatprep.subr.mxu0 0.0
    %1222 = vmatpush1.msra.mxu0 0.0
    %1223 = vmatprep.subr.mxu0 0.0
    %1224 = vmatpush1.msra.mxu0 0.0
    %1225 = vmatprep.subr.mxu0 0.0
    %1226 = vmatpush1.msra.mxu0 0.0
    %1227 = vmatprep.subr.mxu0 0.0
    %1228 = vmatpush1.msra.mxu0 0.0
    %1229 = vmatprep.subr.mxu0 0.0
    %1230 = vmatpush1.msra.mxu0 0.0
    %1231 = vmatprep.subr.mxu0 0.0
    %1232 = vmatpush1.msra.mxu0 0.0
    %1233 = vmatprep.subr.mxu0 0.0
    %1234 = vmatpush1.msra.mxu0 0.0
    %1235 = vmatprep.subr.mxu0 0.0
    %1236 = vmatpush1.msra.mxu0 0.0
    %1237 = vmatprep.subr.mxu0 0.0
    %1238 = vmatpush1.msra.mxu0 0.0
    %1239 = vmatprep.subr.mxu0 0.0
    %1240 = vmatpush1.msra.mxu0 0.0
    %1241 = vmatprep.subr.mxu0 0.0
    %1242 = vmatpush1.msra.mxu0 0.0
    %1243 = vmatprep.subr.mxu0 0.0
    %1244 = vmatpush1.msra.mxu0 0.0
    %1245 = vmatprep.subr.mxu0 0.0
    %1246 = vmatpush1.msra.mxu0 0.0
    %1247 = vmatprep.subr.mxu0 0.0
    %1248 = vmatpush1.msra.mxu0 0.0
    %1249 = vmatprep.subr.mxu0 0.0
    %1250 = vmatpush1.msra.mxu0 0.0
    %1251 = vmatprep.subr.mxu0 0.0
    %1252 = vmatpush1.msra.mxu0 0.0
    %1253 = vmatprep.subr.mxu0 0.0
    %1254 = vmatpush1.msra.mxu0 0.0
    %1255 = vmatprep.subr.mxu0 0.0
    %1256 = vmatpush1.msra.mxu0 0.0
    %1257 = vmatprep.subr.mxu0 0.0
    %1258 = vmatpush1.msra.mxu0 0.0
    %1259 = vmatprep.subr.mxu0 0.0
    %1260 = vmatpush1.msra.mxu0 0.0
    %1261 = vmatprep.subr.mxu0 0.0
    %1262 = vmatpush1.msra.mxu0 0.0
    %1263 = vmatprep.subr.mxu0 0.0
    %1264 = vmatpush1.msra.mxu0 0.0
    %1265 = vmatprep.subr.mxu0 0.0
    %1266 = vmatpush1.msra.mxu0 0.0
    %1267 = vmatprep.subr.mxu0 0.0
    %1268 = vmatpush1.msra.mxu0 0.0
    %1269 = vmatprep.subr.mxu0 0.0
    %1270 = vmatpush1.msra.mxu0 0.0
    %1271 = vmatprep.subr.mxu0 0.0
    %1272 = vmatpush1.msra.mxu0 0.0
    %1273 = vmatprep.subr.mxu0 0.0
    %1274 = vmatpush1.msra.mxu0 0.0
    %1275 = vmatprep.subr.mxu0 0.0
    %1276 = vmatpush1.msra.mxu0 0.0
    %1277 = vmatprep.subr.mxu0 0.0
    %1278 = vmatpush1.msra.mxu0 0.0
    %1279 = vmatprep.mubr.f32.mxu0 0.0
    %1280 = vmatmul.mubr.f32.gmra.mrb[0].mxu0 %v1213
    %v1281 = vpop.f32.mrb[0].mxu0
    %v1282 = vadd.f32 %v1210, %v1281
    %v1283 = vpop.f32.mrb[0].mxu0
    %1284 = vdwg.mxu0
    %v1285 = vxor.u32 %v1282, 2147483648
    %v1286 = vmul.f32 %v1285, 1.442695
    %v1287 = vpow.pop %v1286
    %v1288 = vadd.f32 %v1287, 1.0
    %v1289 = vrcp.pop %v1288
    %v1290 = vmul.f32 1.0, %v1289
    %v1291 = vld [vmem:[%s3] sm:$0xff]
    %v1292 = vld [vmem:[%s3 + $0x8] sm:$0xff]
    %v1293 = vld [vmem:[%s3 + $0x10] sm:$0xff]
    %v1294 = vld [vmem:[%s3 + $0x18] sm:$0xff]
    %v1296 = vsel %vm586, %v1204, 0
    %1298 = vmatprep.subr.mxu0 %v1292
    %1299 = vmatpush1.msra.mxu0 %v1291
    %1300 = vmatprep.subr.mxu0 %v1294
    %1301 = vmatpush1.msra.mxu0 %v1293
    %1302 = vmatprep.subr.mxu0 0.0
    %1303 = vmatpush1.msra.mxu0 0.0
    %1304 = vmatprep.subr.mxu0 0.0
    %1305 = vmatpush1.msra.mxu0 0.0
    %1306 = vmatprep.subr.mxu0 0.0
    %1307 = vmatpush1.msra.mxu0 0.0
    %1308 = vmatprep.subr.mxu0 0.0
    %1309 = vmatpush1.msra.mxu0 0.0
    %1310 = vmatprep.subr.mxu0 0.0
    %1311 = vmatpush1.msra.mxu0 0.0
    %1312 = vmatprep.subr.mxu0 0.0
    %1313 = vmatpush1.msra.mxu0 0.0
    %1314 = vmatprep.subr.mxu0 0.0
    %1315 = vmatpush1.msra.mxu0 0.0
    %1316 = vmatprep.subr.mxu0 0.0
    %1317 = vmatpush1.msra.mxu0 0.0
    %1318 = vmatprep.subr.mxu0 0.0
    %1319 = vmatpush1.msra.mxu0 0.0
    %1320 = vmatprep.subr.mxu0 0.0
    %1321 = vmatpush1.msra.mxu0 0.0
    %1322 = vmatprep.subr.mxu0 0.0
    %1323 = vmatpush1.msra.mxu0 0.0
    %1324 = vmatprep.subr.mxu0 0.0
    %1325 = vmatpush1.msra.mxu0 0.0
    %1326 = vmatprep.subr.mxu0 0.0
    %1327 = vmatpush1.msra.mxu0 0.0
    %1328 = vmatprep.subr.mxu0 0.0
    %1329 = vmatpush1.msra.mxu0 0.0
    %1330 = vmatprep.subr.mxu0 0.0
    %1331 = vmatpush1.msra.mxu0 0.0
    %1332 = vmatprep.subr.mxu0 0.0
    %1333 = vmatpush1.msra.mxu0 0.0
    %1334 = vmatprep.subr.mxu0 0.0
    %1335 = vmatpush1.msra.mxu0 0.0
    %1336 = vmatprep.subr.mxu0 0.0
    %1337 = vmatpush1.msra.mxu0 0.0
    %1338 = vmatprep.subr.mxu0 0.0
    %1339 = vmatpush1.msra.mxu0 0.0
    %1340 = vmatprep.subr.mxu0 0.0
    %1341 = vmatpush1.msra.mxu0 0.0
    %1342 = vmatprep.subr.mxu0 0.0
    %1343 = vmatpush1.msra.mxu0 0.0
    %1344 = vmatprep.subr.mxu0 0.0
    %1345 = vmatpush1.msra.mxu0 0.0
    %1346 = vmatprep.subr.mxu0 0.0
    %1347 = vmatpush1.msra.mxu0 0.0
    %1348 = vmatprep.subr.mxu0 0.0
    %1349 = vmatpush1.msra.mxu0 0.0
    %1350 = vmatprep.subr.mxu0 0.0
    %1351 = vmatpush1.msra.mxu0 0.0
    %1352 = vmatprep.subr.mxu0 0.0
    %1353 = vmatpush1.msra.mxu0 0.0
    %1354 = vmatprep.subr.mxu0 0.0
    %1355 = vmatpush1.msra.mxu0 0.0
    %1356 = vmatprep.subr.mxu0 0.0
    %1357 = vmatpush1.msra.mxu0 0.0
    %1358 = vmatprep.subr.mxu0 0.0
    %1359 = vmatpush1.msra.mxu0 0.0
    %1360 = vmatprep.subr.mxu0 0.0
    %1361 = vmatpush1.msra.mxu0 0.0
    %1362 = vmatprep.mubr.f32.mxu0 0.0
    %1363 = vmatmul.mubr.f32.gmra.mrb[0].mxu0 %v1296
    %v1364 = vpop.f32.mrb[0].mxu0
    %v1365 = vadd.f32 0.0, %v1364
    %v1366 = vpop.f32.mrb[0].mxu0
    %v1367 = vadd.f32 0.0, %v1366
    %1368 = vdwg.mxu0
    %v1369 = vld [vmem:[%s4] sm:$0xff]
    %v1370 = vld [vmem:[%s4 + $0x8] sm:$0xff]
    %v1371 = vld [vmem:[%s4 + $0x10] sm:$0xff]
    %v1372 = vld [vmem:[%s4 + $0x18] sm:$0xff]
    %v1374 = vsel %vm586, %v1290, 0
    %1376 = vmatprep.subr.mxu0 %v1370
    %1377 = vmatpush1.msra.mxu0 %v1369
    %1378 = vmatprep.subr.mxu0 %v1372
    %1379 = vmatpush1.msra.mxu0 %v1371
    %1380 = vmatprep.subr.mxu0 0.0
    %1381 = vmatpush1.msra.mxu0 0.0
    %1382 = vmatprep.subr.mxu0 0.0
    %1383 = vmatpush1.msra.mxu0 0.0
    %1384 = vmatprep.subr.mxu0 0.0
    %1385 = vmatpush1.msra.mxu0 0.0
    %1386 = vmatprep.subr.mxu0 0.0
    %1387 = vmatpush1.msra.mxu0 0.0
    %1388 = vmatprep.subr.mxu0 0.0
    %1389 = vmatpush1.msra.mxu0 0.0
    %1390 = vmatprep.subr.mxu0 0.0
    %1391 = vmatpush1.msra.mxu0 0.0
    %1392 = vmatprep.subr.mxu0 0.0
    %1393 = vmatpush1.msra.mxu0 0.0
    %1394 = vmatprep.subr.mxu0 0.0
    %1395 = vmatpush1.msra.mxu0 0.0
    %1396 = vmatprep.subr.mxu0 0.0
    %1397 = vmatpush1.msra.mxu0 0.0
    %1398 = vmatprep.subr.mxu0 0.0
    %1399 = vmatpush1.msra.mxu0 0.0
    %1400 = vmatprep.subr.mxu0 0.0
    %1401 = vmatpush1.msra.mxu0 0.0
    %1402 = vmatprep.subr.mxu0 0.0
    %1403 = vmatpush1.msra.mxu0 0.0
    %1404 = vmatprep.subr.mxu0 0.0
    %1405 = vmatpush1.msra.mxu0 0.0
    %1406 = vmatprep.subr.mxu0 0.0
    %1407 = vmatpush1.msra.mxu0 0.0
    %1408 = vmatprep.subr.mxu0 0.0
    %1409 = vmatpush1.msra.mxu0 0.0
    %1410 = vmatprep.subr.mxu0 0.0
    %1411 = vmatpush1.msra.mxu0 0.0
    %1412 = vmatprep.subr.mxu0 0.0
    %1413 = vmatpush1.msra.mxu0 0.0
    %1414 = vmatprep.subr.mxu0 0.0
    %1415 = vmatpush1.msra.mxu0 0.0
    %1416 = vmatprep.subr.mxu0 0.0
    %1417 = vmatpush1.msra.mxu0 0.0
    %1418 = vmatprep.subr.mxu0 0.0
    %1419 = vmatpush1.msra.mxu0 0.0
    %1420 = vmatprep.subr.mxu0 0.0
    %1421 = vmatpush1.msra.mxu0 0.0
    %1422 = vmatprep.subr.mxu0 0.0
    %1423 = vmatpush1.msra.mxu0 0.0
    %1424 = vmatprep.subr.mxu0 0.0
    %1425 = vmatpush1.msra.mxu0 0.0
    %1426 = vmatprep.subr.mxu0 0.0
    %1427 = vmatpush1.msra.mxu0 0.0
    %1428 = vmatprep.subr.mxu0 0.0
    %1429 = vmatpush1.msra.mxu0 0.0
    %1430 = vmatprep.subr.mxu0 0.0
    %1431 = vmatpush1.msra.mxu0 0.0
    %1432 = vmatprep.subr.mxu0 0.0
    %1433 = vmatpush1.msra.mxu0 0.0
    %1434 = vmatprep.subr.mxu0 0.0
    %1435 = vmatpush1.msra.mxu0 0.0
    %1436 = vmatprep.subr.mxu0 0.0
    %1437 = vmatpush1.msra.mxu0 0.0
    %1438 = vmatprep.subr.mxu0 0.0
    %1439 = vmatpush1.msra.mxu0 0.0
    %1440 = vmatprep.mubr.f32.mxu0 0.0
    %1441 = vmatmul.mubr.f32.gmra.mrb[0].mxu0 %v1374
    %v1442 = vpop.f32.mrb[0].mxu0
    %v1443 = vadd.f32 0.0, %v1442
    %v1444 = vpop.f32.mrb[0].mxu0
    %v1445 = vadd.f32 0.0, %v1444
    %1446 = vdwg.mxu0
    %v1449 = vcombine.low %v1365, %v1367
    %v1451 = vmul.f32 %v751, %v1449
    %v1454 = vcombine.low %v1443, %v1445
    %v1456 = vmul.f32 %v1451, %v1454
    %s1457 = scalar_lea.vmem [#allocation2], 8
    %1458 = vst [vmem:[%s1457] sm:$0xff] %v1456
    // Predicated region
    $region46: #{tpu_custom_call.1} parent=1 // pred_check
      _
    $region47: #{tpu_custom_call.1} parent=1 // pred_check_branch
      %1460 = sbr.rel (0) target = $region49
    $region48: #{tpu_custom_call.1} parent=1 // pred_region
      %s1462 = ssub.s32 256, 256
      %1463 = vsyncadd [#allocation3], %s1462
      %s1464 = sshll.u32 [#allocation2], 4
      %s1465 = int_to_ptr.vmem [resolvable:$true] %s1464
      %1470 = dma.vmem_to_hbm [thread:$0]  %s1465, 256, %s11, [#allocation3], 128, 128, 8
    $region49: #{tpu_custom_call.1} parent=1 // pred_fallthru
      _
    // Predicated region
    $region50: #{tpu_custom_call.1} parent=1 // pred_check
      _
    $region51: #{tpu_custom_call.1} parent=1 // pred_check_branch
      %1472 = sbr.rel (0) target = $region53
    $region52: #{tpu_custom_call.1} parent=1 // pred_region
      %1473 = dma.done [#allocation3], 256
    $region53: #{tpu_custom_call.1} parent=1 // pred_fallthru
      _
    %1474 = vsyncpa [#allocation3], 1

// kernel: tpu_custom_call.1
$region0: #{tpu_custom_call.1}
  #allocation0 [shape = 'u32[]', space=smem, size = 0x4, offset = 0x4, fixed_abs, tag = 'smem constant byte address 0x4 - core index']
  #allocation1 [shape = 'u32[144,128]{1,0:T(1,128)}', space=vmem, size = 0x12000, scoped, tag = 'internal scratch']
  %s0 = inlined_call_operand.vmem [shape: f32[2,4,256], index: 0, kind: input, shape index: {}]
  %s1 = inlined_call_operand.vmem [shape: f32[256,16], index: 1, kind: input, shape index: {}]
  %s2 = inlined_call_operand.vmem [shape: f32[256,16], index: 2, kind: input, shape index: {}]
  %s3 = inlined_call_operand.vmem [shape: f32[16,256], index: 3, kind: input, shape index: {}]
  %s4 = inlined_call_operand.vmem [shape: f32[16,256], index: 4, kind: input, shape index: {}]
  %s5 = inlined_call_operand.vmem [shape: f32[8,4], index: 5, kind: input, shape index: {}]
  %s6 = inlined_call_operand.vmem [shape: f32[8,1], index: 6, kind: input, shape index: {}]
  %s7 = inlined_call_operand.vmem [shape: f32[4,8], index: 7, kind: input, shape index: {}]
  %s8 = inlined_call_operand.vmem [shape: f32[4,1], index: 8, kind: input, shape index: {}]
  %s9 = inlined_call_operand.vmem [shape: f32[4,8], index: 9, kind: input, shape index: {}]
  %s10 = inlined_call_operand.vmem [shape: f32[4,1], index: 10, kind: input, shape index: {}]
  %s11 = inlined_call_operand.hbm [shape: f32[2,4,256], index: 11, kind: output, shape index: {}]
  %s12 = sld [smem:[#allocation0]]
  $region54: #{tpu_custom_call.1} parent=0
    _
  %s14 = ssub.s32 1, %s12
  %s15 = scalar_select 0, %s14, %s12
  $region1: #{tpu_custom_call.1} parent=0
    #allocation2 [shape = 'u8[8192]{0}', space=vmem, size = 0x2000, scoped, tag = 'output window, operand 0, single buffered']
    #allocation3 [shape = 's32[1]{0}', space=sflag, size = 0x4, scoped, tag = 'scoped memory for tpu_custom_call.1']
    %16 = vsyncpa [#allocation3], 0
    // Predicated region
    $region2: #{tpu_custom_call.1} parent=1 // pred_check
      _
    $region3: #{tpu_custom_call.1} parent=1 // pred_check_branch
      %18 = sbr.rel (0) target = $region5
    $region4: #{tpu_custom_call.1} parent=1 // pred_region
      _
    $region5: #{tpu_custom_call.1} parent=1 // pred_fallthru
      _
    // Predicated region
    $region6: #{tpu_custom_call.1} parent=1 // pred_check
      _
    $region7: #{tpu_custom_call.1} parent=1 // pred_check_branch
      %20 = sbr.rel (0) target = $region9
    $region8: #{tpu_custom_call.1} parent=1 // pred_region
      _
    $region9: #{tpu_custom_call.1} parent=1 // pred_fallthru
      _
    // Predicated region
    $region10: #{tpu_custom_call.1} parent=1 // pred_check
      _
    $region11: #{tpu_custom_call.1} parent=1 // pred_check_branch
      %22 = sbr.rel (0) target = $region13
    $region12: #{tpu_custom_call.1} parent=1 // pred_region
      _
    $region13: #{tpu_custom_call.1} parent=1 // pred_fallthru
      _
    // Predicated region
    $region14: #{tpu_custom_call.1} parent=1 // pred_check
      _
    $region15: #{tpu_custom_call.1} parent=1 // pred_check_branch
      %24 = sbr.rel (0) target = $region17
    $region16: #{tpu_custom_call.1} parent=1 // pred_region
      _
    $region17: #{tpu_custom_call.1} parent=1 // pred_fallthru
      _
    // Predicated region
    $region18: #{tpu_custom_call.1} parent=1 // pred_check
      _
    $region19: #{tpu_custom_call.1} parent=1 // pred_check_branch
      %26 = sbr.rel (0) target = $region21
    $region20: #{tpu_custom_call.1} parent=1 // pred_region
      _
    $region21: #{tpu_custom_call.1} parent=1 // pred_fallthru
      _
    // Predicated region
    $region22: #{tpu_custom_call.1} parent=1 // pred_check
      _
    $region23: #{tpu_custom_call.1} parent=1 // pred_check_branch
      %28 = sbr.rel (0) target = $region25
    $region24: #{tpu_custom_call.1} parent=1 // pred_region
      _
    $region25: #{tpu_custom_call.1} parent=1 // pred_fallthru
      _
    // Predicated region
    $region26: #{tpu_custom_call.1} parent=1 // pred_check
      _
    $region27: #{tpu_custom_call.1} parent=1 // pred_check_branch
      %30 = sbr.rel (0) target = $region29
    $region28: #{tpu_custom_call.1} parent=1 // pred_region
      _
    $region29: #{tpu_custom_call.1} parent=1 // pred_fallthru
      _
    // Predicated region
    $region30: #{tpu_custom_call.1} parent=1 // pred_check
      _
    $region31: #{tpu_custom_call.1} parent=1 // pred_check_branch
      %32 = sbr.rel (0) target = $region33
    $region32: #{tpu_custom_call.1} parent=1 // pred_region
      _
    $region33: #{tpu_custom_call.1} parent=1 // pred_fallthru
      _
    // Predicated region
    $region34: #{tpu_custom_call.1} parent=1 // pred_check
      _
    $region35: #{tpu_custom_call.1} parent=1 // pred_check_branch
      %34 = sbr.rel (0) target = $region37
    $region36: #{tpu_custom_call.1} parent=1 // pred_region
      _
    $region37: #{tpu_custom_call.1} parent=1 // pred_fallthru
      _
    // Predicated region
    $region38: #{tpu_custom_call.1} parent=1 // pred_check
      _
    $region39: #{tpu_custom_call.1} parent=1 // pred_check_branch
      %36 = sbr.rel (0) target = $region41
    $region40: #{tpu_custom_call.1} parent=1 // pred_region
      _
    $region41: #{tpu_custom_call.1} parent=1 // pred_fallthru
      _
    // Predicated region
    $region42: #{tpu_custom_call.1} parent=1 // pred_check
      _
    $region43: #{tpu_custom_call.1} parent=1 // pred_check_branch
      %38 = sbr.rel (0) target = $region45
    $region44: #{tpu_custom_call.1} parent=1 // pred_region
      _
    $region45: #{tpu_custom_call.1} parent=1 // pred_fallthru
      _
    %v39 = vld [vmem:[%s0] sm:$0xff]
    %v40 = vld [vmem:[%s1] sm:$0xff]
    %v41 = vld [vmem:[%s1 + $0x8] sm:$0xff]
    %v42 = vld [vmem:[%s1 + $0x10] sm:$0xff]
    %v43 = vld [vmem:[%s1 + $0x18] sm:$0xff]
    %v44 = vld [vmem:[%s1 + $0x20] sm:$0xff]
    %v45 = vld [vmem:[%s1 + $0x28] sm:$0xff]
    %v46 = vld [vmem:[%s1 + $0x30] sm:$0xff]
    %v47 = vld [vmem:[%s1 + $0x38] sm:$0xff]
    %v48 = vld [vmem:[%s1 + $0x40] sm:$0xff]
    %v49 = vld [vmem:[%s1 + $0x48] sm:$0xff]
    %v50 = vld [vmem:[%s1 + $0x50] sm:$0xff]
    %v51 = vld [vmem:[%s1 + $0x58] sm:$0xff]
    %v52 = vld [vmem:[%s1 + $0x60] sm:$0xff]
    %v53 = vld [vmem:[%s1 + $0x68] sm:$0xff]
    %v54 = vld [vmem:[%s1 + $0x70] sm:$0xff]
    %v55 = vld [vmem:[%s1 + $0x78] sm:$0xff]
    %v56 = vld [vmem:[%s1 + $0x80] sm:$0xff]
    %v57 = vld [vmem:[%s1 + $0x88] sm:$0xff]
    %v58 = vld [vmem:[%s1 + $0x90] sm:$0xff]
    %v59 = vld [vmem:[%s1 + $0x98] sm:$0xff]
    %v60 = vld [vmem:[%s1 + $0xa0] sm:$0xff]
    %v61 = vld [vmem:[%s1 + $0xa8] sm:$0xff]
    %v62 = vld [vmem:[%s1 + $0xb0] sm:$0xff]
    %v63 = vld [vmem:[%s1 + $0xb8] sm:$0xff]
    %v64 = vld [vmem:[%s1 + $0xc0] sm:$0xff]
    %v65 = vld [vmem:[%s1 + $0xc8] sm:$0xff]
    %v66 = vld [vmem:[%s1 + $0xd0] sm:$0xff]
    %v67 = vld [vmem:[%s1 + $0xd8] sm:$0xff]
    %v68 = vld [vmem:[%s1 + $0xe0] sm:$0xff]
    %v69 = vld [vmem:[%s1 + $0xe8] sm:$0xff]
    %v70 = vld [vmem:[%s1 + $0xf0] sm:$0xff]
    %v71 = vld [vmem:[%s1 + $0xf8] sm:$0xff]
    %v73 = vcombine.high %v39, %v39
    %75 = vmatprep.subr.mxu0 0.0
    %76 = vmatpush1.msra.mxu0 %v40
    %77 = vmatprep.subr.mxu0 0.0
    %78 = vmatpush1.msra.mxu0 %v41
    %79 = vmatprep.subr.mxu0 0.0
    %80 = vmatpush1.msra.mxu0 %v42
    %81 = vmatprep.subr.mxu0 0.0
    %82 = vmatpush1.msra.mxu0 %v43
    %83 = vmatprep.subr.mxu0 0.0
    %84 = vmatpush1.msra.mxu0 %v44
    %85 = vmatprep.subr.mxu0 0.0
    %86 = vmatpush1.msra.mxu0 %v45
    %87 = vmatprep.subr.mxu0 0.0
    %88 = vmatpush1.msra.mxu0 %v46
    %89 = vmatprep.subr.mxu0 0.0
    %90 = vmatpush1.msra.mxu0 %v47
    %91 = vmatprep.subr.mxu0 0.0
    %92 = vmatpush1.msra.mxu0 %v48
    %93 = vmatprep.subr.mxu0 0.0
    %94 = vmatpush1.msra.mxu0 %v49
    %95 = vmatprep.subr.mxu0 0.0
    %96 = vmatpush1.msra.mxu0 %v50
    %97 = vmatprep.subr.mxu0 0.0
    %98 = vmatpush1.msra.mxu0 %v51
    %99 = vmatprep.subr.mxu0 0.0
    %100 = vmatpush1.msra.mxu0 %v52
    %101 = vmatprep.subr.mxu0 0.0
    %102 = vmatpush1.msra.mxu0 %v53
    %103 = vmatprep.subr.mxu0 0.0
    %104 = vmatpush1.msra.mxu0 %v54
    %105 = vmatprep.subr.mxu0 0.0
    %106 = vmatpush1.msra.mxu0 %v55
    %107 = vmatprep.subr.mxu0 0.0
    %108 = vmatpush1.msra.mxu0 %v56
    %109 = vmatprep.subr.mxu0 0.0
    %110 = vmatpush1.msra.mxu0 %v57
    %111 = vmatprep.subr.mxu0 0.0
    %112 = vmatpush1.msra.mxu0 %v58
    %113 = vmatprep.subr.mxu0 0.0
    %114 = vmatpush1.msra.mxu0 %v59
    %115 = vmatprep.subr.mxu0 0.0
    %116 = vmatpush1.msra.mxu0 %v60
    %117 = vmatprep.subr.mxu0 0.0
    %118 = vmatpush1.msra.mxu0 %v61
    %119 = vmatprep.subr.mxu0 0.0
    %120 = vmatpush1.msra.mxu0 %v62
    %121 = vmatprep.subr.mxu0 0.0
    %122 = vmatpush1.msra.mxu0 %v63
    %123 = vmatprep.subr.mxu0 0.0
    %124 = vmatpush1.msra.mxu0 %v64
    %125 = vmatprep.subr.mxu0 0.0
    %126 = vmatpush1.msra.mxu0 %v65
    %127 = vmatprep.subr.mxu0 0.0
    %128 = vmatpush1.msra.mxu0 %v66
    %129 = vmatprep.subr.mxu0 0.0
    %130 = vmatpush1.msra.mxu0 %v67
    %131 = vmatprep.subr.mxu0 0.0
    %132 = vmatpush1.msra.mxu0 %v68
    %133 = vmatprep.subr.mxu0 0.0
    %134 = vmatpush1.msra.mxu0 %v69
    %135 = vmatprep.subr.mxu0 0.0
    %136 = vmatpush1.msra.mxu0 %v70
    %137 = vmatprep.subr.mxu0 0.0
    %138 = vmatpush1.msra.mxu0 %v71
    %139 = vmatprep.mubr.f32.mxu0 %v73
    %140 = vmatmul.mubr.f32.gmra.mrb[0].mxu0 %v39
    %v141 = vpop.f32.mrb[0].mxu0
    %v142 = vadd.f32 0.0, %v141
    %v143 = vpop.f32.mrb[0].mxu0
    %144 = vdwg.mxu0
    %v145 = vmul.f32 %v142, 0.0625
    %v146 = vld [vmem:[%s2] sm:$0xff]
    %v147 = vld [vmem:[%s2 + $0x8] sm:$0xff]
    %v148 = vld [vmem:[%s2 + $0x10] sm:$0xff]
    %v149 = vld [vmem:[%s2 + $0x18] sm:$0xff]
    %v150 = vld [vmem:[%s2 + $0x20] sm:$0xff]
    %v151 = vld [vmem:[%s2 + $0x28] sm:$0xff]
    %v152 = vld [vmem:[%s2 + $0x30] sm:$0xff]
    %v153 = vld [vmem:[%s2 + $0x38] sm:$0xff]
    %v154 = vld [vmem:[%s2 + $0x40] sm:$0xff]
    %v155 = vld [vmem:[%s2 + $0x48] sm:$0xff]
    %v156 = vld [vmem:[%s2 + $0x50] sm:$0xff]
    %v157 = vld [vmem:[%s2 + $0x58] sm:$0xff]
    %v158 = vld [vmem:[%s2 + $0x60] sm:$0xff]
    %v159 = vld [vmem:[%s2 + $0x68] sm:$0xff]
    %v160 = vld [vmem:[%s2 + $0x70] sm:$0xff]
    %v161 = vld [vmem:[%s2 + $0x78] sm:$0xff]
    %v162 = vld [vmem:[%s2 + $0x80] sm:$0xff]
    %v163 = vld [vmem:[%s2 + $0x88] sm:$0xff]
    %v164 = vld [vmem:[%s2 + $0x90] sm:$0xff]
    %v165 = vld [vmem:[%s2 + $0x98] sm:$0xff]
    %v166 = vld [vmem:[%s2 + $0xa0] sm:$0xff]
    %v167 = vld [vmem:[%s2 + $0xa8] sm:$0xff]
    %v168 = vld [vmem:[%s2 + $0xb0] sm:$0xff]
    %v169 = vld [vmem:[%s2 + $0xb8] sm:$0xff]
    %v170 = vld [vmem:[%s2 + $0xc0] sm:$0xff]
    %v171 = vld [vmem:[%s2 + $0xc8] sm:$0xff]
    %v172 = vld [vmem:[%s2 + $0xd0] sm:$0xff]
    %v173 = vld [vmem:[%s2 + $0xd8] sm:$0xff]
    %v174 = vld [vmem:[%s2 + $0xe0] sm:$0xff]
    %v175 = vld [vmem:[%s2 + $0xe8] sm:$0xff]
    %v176 = vld [vmem:[%s2 + $0xf0] sm:$0xff]
    %v177 = vld [vmem:[%s2 + $0xf8] sm:$0xff]
    %178 = vmatprep.subr.mxu0 0.0
    %179 = vmatpush1.msra.mxu0 %v146
    %180 = vmatprep.subr.mxu0 0.0
    %181 = vmatpush1.msra.mxu0 %v147
    %182 = vmatprep.subr.mxu0 0.0
    %183 = vmatpush1.msra.mxu0 %v148
    %184 = vmatprep.subr.mxu0 0.0
    %185 = vmatpush1.msra.mxu0 %v149
    %186 = vmatprep.subr.mxu0 0.0
    %187 = vmatpush1.msra.mxu0 %v150
    %188 = vmatprep.subr.mxu0 0.0
    %189 = vmatpush1.msra.mxu0 %v151
    %190 = vmatprep.subr.mxu0 0.0
    %191 = vmatpush1.msra.mxu0 %v152
    %192 = vmatprep.subr.mxu0 0.0
    %193 = vmatpush1.msra.mxu0 %v153
    %194 = vmatprep.subr.mxu0 0.0
    %195 = vmatpush1.msra.mxu0 %v154
    %196 = vmatprep.subr.mxu0 0.0
    %197 = vmatpush1.msra.mxu0 %v155
    %198 = vmatprep.subr.mxu0 0.0
    %199 = vmatpush1.msra.mxu0 %v156
    %200 = vmatprep.subr.mxu0 0.0
    %201 = vmatpush1.msra.mxu0 %v157
    %202 = vmatprep.subr.mxu0 0.0
    %203 = vmatpush1.msra.mxu0 %v158
    %204 = vmatprep.subr.mxu0 0.0
    %205 = vmatpush1.msra.mxu0 %v159
    %206 = vmatprep.subr.mxu0 0.0
    %207 = vmatpush1.msra.mxu0 %v160
    %208 = vmatprep.subr.mxu0 0.0
    %209 = vmatpush1.msra.mxu0 %v161
    %210 = vmatprep.subr.mxu0 0.0
    %211 = vmatpush1.msra.mxu0 %v162
    %212 = vmatprep.subr.mxu0 0.0
    %213 = vmatpush1.msra.mxu0 %v163
    %214 = vmatprep.subr.mxu0 0.0
    %215 = vmatpush1.msra.mxu0 %v164
    %216 = vmatprep.subr.mxu0 0.0
    %217 = vmatpush1.msra.mxu0 %v165
    %218 = vmatprep.subr.mxu0 0.0
    %219 = vmatpush1.msra.mxu0 %v166
    %220 = vmatprep.subr.mxu0 0.0
    %221 = vmatpush1.msra.mxu0 %v167
    %222 = vmatprep.subr.mxu0 0.0
    %223 = vmatpush1.msra.mxu0 %v168
    %224 = vmatprep.subr.mxu0 0.0
    %225 = vmatpush1.msra.mxu0 %v169
    %226 = vmatprep.subr.mxu0 0.0
    %227 = vmatpush1.msra.mxu0 %v170
    %228 = vmatprep.subr.mxu0 0.0
    %229 = vmatpush1.msra.mxu0 %v171
    %230 = vmatprep.subr.mxu0 0.0
    %231 = vmatpush1.msra.mxu0 %v172
    %232 = vmatprep.subr.mxu0 0.0
    %233 = vmatpush1.msra.mxu0 %v173
    %234 = vmatprep.subr.mxu0 0.0
    %235 = vmatpush1.msra.mxu0 %v174
    %236 = vmatprep.subr.mxu0 0.0
    %237 = vmatpush1.msra.mxu0 %v175
    %238 = vmatprep.subr.mxu0 0.0
    %239 = vmatpush1.msra.mxu0 %v176
    %240 = vmatprep.subr.mxu0 0.0
    %241 = vmatpush1.msra.mxu0 %v177
    %242 = vmatprep.mubr.f32.mxu0 %v73
    %243 = vmatmul.mubr.f32.gmra.mrb[0].mxu0 %v39
    %v244 = vpop.f32.mrb[0].mxu0
    %v245 = vadd.f32 0.0, %v244
    %v246 = vpop.f32.mrb[0].mxu0
    %247 = vdwg.mxu0
    %v248 = vmul.f32 %v245, 0.0625
    %v249 = vld [vmem:[%s5] sm:$0xff]
    %v250 = vld [vmem:[%s6] sm:$0xff]
    %252 = vset.pattern.permute.xlu0 0
    %253 = vperm.xlu0 %252, %v250
    %v254 = vpop.permute.xlu0 %253
    %vm256 = vcmask 31744
    %v258 = vsel %vm256, %v249, 0
    %vm260 = vcmask 1043456
    %v262 = vsel %vm260, %v145, 0
    %264 = vmatprep.subr.mxu0 0.0
    %265 = vmatpush1.msra.mxu0 %v262
    %266 = vmatprep.subr.mxu0 0.0
    %267 = vmatpush1.msra.mxu0 0.0
    %268 = vmatprep.subr.mxu0 0.0
    %269 = vmatpush1.msra.mxu0 0.0
    %270 = vmatprep.subr.mxu0 0.0
    %271 = vmatpush1.msra.mxu0 0.0
    %272 = vmatprep.subr.mxu0 0.0
    %273 = vmatpush1.msra.mxu0 0.0
    %274 = vmatprep.subr.mxu0 0.0
    %275 = vmatpush1.msra.mxu0 0.0
    %276 = vmatprep.subr.mxu0 0.0
    %277 = vmatpush1.msra.mxu0 0.0
    %278 = vmatprep.subr.mxu0 0.0
    %279 = vmatpush1.msra.mxu0 0.0
    %280 = vmatprep.subr.mxu0 0.0
    %281 = vmatpush1.msra.mxu0 0.0
    %282 = vmatprep.subr.mxu0 0.0
    %283 = vmatpush1.msra.mxu0 0.0
    %284 = vmatprep.subr.mxu0 0.0
    %285 = vmatpush1.msra.mxu0 0.0
    %286 = vmatprep.subr.mxu0 0.0
    %287 = vmatpush1.msra.mxu0 0.0
    %288 = vmatprep.subr.mxu0 0.0
    %289 = vmatpush1.msra.mxu0 0.0
    %290 = vmatprep.subr.mxu0 0.0
    %291 = vmatpush1.msra.mxu0 0.0
    %292 = vmatprep.subr.mxu0 0.0
    %293 = vmatpush1.msra.mxu0 0.0
    %294 = vmatprep.subr.mxu0 0.0
    %295 = vmatpush1.msra.mxu0 0.0
    %296 = vmatprep.subr.mxu0 0.0
    %297 = vmatpush1.msra.mxu0 0.0
    %298 = vmatprep.subr.mxu0 0.0
    %299 = vmatpush1.msra.mxu0 0.0
    %300 = vmatprep.subr.mxu0 0.0
    %301 = vmatpush1.msra.mxu0 0.0
    %302 = vmatprep.subr.mxu0 0.0
    %303 = vmatpush1.msra.mxu0 0.0
    %304 = vmatprep.subr.mxu0 0.0
    %305 = vmatpush1.msra.mxu0 0.0
    %306 = vmatprep.subr.mxu0 0.0
    %307 = vmatpush1.msra.mxu0 0.0
    %308 = vmatprep.subr.mxu0 0.0
    %309 = vmatpush1.msra.mxu0 0.0
    %310 = vmatprep.subr.mxu0 0.0
    %311 = vmatpush1.msra.mxu0 0.0
    %312 = vmatprep.subr.mxu0 0.0
    %313 = vmatpush1.msra.mxu0 0.0
    %314 = vmatprep.subr.mxu0 0.0
    %315 = vmatpush1.msra.mxu0 0.0
    %316 = vmatprep.subr.mxu0 0.0
    %317 = vmatpush1.msra.mxu0 0.0
    %318 = vmatprep.subr.mxu0 0.0
    %319 = vmatpush1.msra.mxu0 0.0
    %320 = vmatprep.subr.mxu0 0.0
    %321 = vmatpush1.msra.mxu0 0.0
    %322 = vmatprep.subr.mxu0 0.0
    %323 = vmatpush1.msra.mxu0 0.0
    %324 = vmatprep.subr.mxu0 0.0
    %325 = vmatpush1.msra.mxu0 0.0
    %326 = vmatprep.subr.mxu0 0.0
    %327 = vmatpush1.msra.mxu0 0.0
    %328 = vmatprep.mubr.f32.mxu0 0.0
    %329 = vmatmul.mubr.f32.gmra.mrb[0].mxu0 %v258
    %v330 = vpop.f32.mrb[0].mxu0
    %v331 = vadd.f32 %v254, %v330
    %v332 = vpop.f32.mrb[0].mxu0
    %333 = vdwg.mxu0
    %v334 = vmax.f32 %v331, 0.0
    %v336 = vsel %vm260, %v248, 0
    %338 = vmatprep.subr.mxu0 0.0
    %339 = vmatpush1.msra.mxu0 %v336
    %340 = vmatprep.subr.mxu0 0.0
    %341 = vmatpush1.msra.mxu0 0.0
    %342 = vmatprep.subr.mxu0 0.0
    %343 = vmatpush1.msra.mxu0 0.0
    %344 = vmatprep.subr.mxu0 0.0
    %345 = vmatpush1.msra.mxu0 0.0
    %346 = vmatprep.subr.mxu0 0.0
    %347 = vmatpush1.msra.mxu0 0.0
    %348 = vmatprep.subr.mxu0 0.0
    %349 = vmatpush1.msra.mxu0 0.0
    %350 = vmatprep.subr.mxu0 0.0
    %351 = vmatpush1.msra.mxu0 0.0
    %352 = vmatprep.subr.mxu0 0.0
    %353 = vmatpush1.msra.mxu0 0.0
    %354 = vmatprep.subr.mxu0 0.0
    %355 = vmatpush1.msra.mxu0 0.0
    %356 = vmatprep.subr.mxu0 0.0
    %357 = vmatpush1.msra.mxu0 0.0
    %358 = vmatprep.subr.mxu0 0.0
    %359 = vmatpush1.msra.mxu0 0.0
    %360 = vmatprep.subr.mxu0 0.0
    %361 = vmatpush1.msra.mxu0 0.0
    %362 = vmatprep.subr.mxu0 0.0
    %363 = vmatpush1.msra.mxu0 0.0
    %364 = vmatprep.subr.mxu0 0.0
    %365 = vmatpush1.msra.mxu0 0.0
    %366 = vmatprep.subr.mxu0 0.0
    %367 = vmatpush1.msra.mxu0 0.0
    %368 = vmatprep.subr.mxu0 0.0
    %369 = vmatpush1.msra.mxu0 0.0
    %370 = vmatprep.subr.mxu0 0.0
    %371 = vmatpush1.msra.mxu0 0.0
    %372 = vmatprep.subr.mxu0 0.0
    %373 = vmatpush1.msra.mxu0 0.0
    %374 = vmatprep.subr.mxu0 0.0
    %375 = vmatpush1.msra.mxu0 0.0
    %376 = vmatprep.subr.mxu0 0.0
    %377 = vmatpush1.msra.mxu0 0.0
    %378 = vmatprep.subr.mxu0 0.0
    %379 = vmatpush1.msra.mxu0 0.0
    %380 = vmatprep.subr.mxu0 0.0
    %381 = vmatpush1.msra.mxu0 0.0
    %382 = vmatprep.subr.mxu0 0.0
    %383 = vmatpush1.msra.mxu0 0.0
    %384 = vmatprep.subr.mxu0 0.0
    %385 = vmatpush1.msra.mxu0 0.0
    %386 = vmatprep.subr.mxu0 0.0
    %387 = vmatpush1.msra.mxu0 0.0
    %388 = vmatprep.subr.mxu0 0.0
    %389 = vmatpush1.msra.mxu0 0.0
    %390 = vmatprep.subr.mxu0 0.0
    %391 = vmatpush1.msra.mxu0 0.0
    %392 = vmatprep.subr.mxu0 0.0
    %393 = vmatpush1.msra.mxu0 0.0
    %394 = vmatprep.subr.mxu0 0.0
    %395 = vmatpush1.msra.mxu0 0.0
    %396 = vmatprep.subr.mxu0 0.0
    %397 = vmatpush1.msra.mxu0 0.0
    %398 = vmatprep.subr.mxu0 0.0
    %399 = vmatpush1.msra.mxu0 0.0
    %400 = vmatprep.subr.mxu0 0.0
    %401 = vmatpush1.msra.mxu0 0.0
    %402 = vmatprep.mubr.f32.mxu0 0.0
    %403 = vmatmul.mubr.f32.gmra.mrb[0].mxu0 %v258
    %v404 = vpop.f32.mrb[0].mxu0
    %v405 = vadd.f32 %v254, %v404
    %v406 = vpop.f32.mrb[0].mxu0
    %407 = vdwg.mxu0
    %v408 = vmax.f32 %v405, 0.0
    %v409 = vld [vmem:[%s7] sm:$0xf]
    %v410 = vld [vmem:[%s8] sm:$0xf]
    %412 = vset.pattern.permute.xlu0 0
    %413 = vperm.xlu0 %412, %v410
    %v414 = vpop.permute.xlu0 %413
    %vm416 = vcmask 64512
    %v418 = vsel %vm416, %v409, 0
    %420 = vmatprep.subr.mxu0 0.0
    %421 = vmatpush1.msra.mxu0 %v334
    %422 = vmatprep.subr.mxu0 0.0
    %423 = vmatpush1.msra.mxu0 0.0
    %424 = vmatprep.subr.mxu0 0.0
    %425 = vmatpush1.msra.mxu0 0.0
    %426 = vmatprep.subr.mxu0 0.0
    %427 = vmatpush1.msra.mxu0 0.0
    %428 = vmatprep.subr.mxu0 0.0
    %429 = vmatpush1.msra.mxu0 0.0
    %430 = vmatprep.subr.mxu0 0.0
    %431 = vmatpush1.msra.mxu0 0.0
    %432 = vmatprep.subr.mxu0 0.0
    %433 = vmatpush1.msra.mxu0 0.0
    %434 = vmatprep.subr.mxu0 0.0
    %435 = vmatpush1.msra.mxu0 0.0
    %436 = vmatprep.subr.mxu0 0.0
    %437 = vmatpush1.msra.mxu0 0.0
    %438 = vmatprep.subr.mxu0 0.0
    %439 = vmatpush1.msra.mxu0 0.0
    %440 = vmatprep.subr.mxu0 0.0
    %441 = vmatpush1.msra.mxu0 0.0
    %442 = vmatprep.subr.mxu0 0.0
    %443 = vmatpush1.msra.mxu0 0.0
    %444 = vmatprep.subr.mxu0 0.0
    %445 = vmatpush1.msra.mxu0 0.0
    %446 = vmatprep.subr.mxu0 0.0
    %447 = vmatpush1.msra.mxu0 0.0
    %448 = vmatprep.subr.mxu0 0.0
    %449 = vmatpush1.msra.mxu0 0.0
    %450 = vmatprep.subr.mxu0 0.0
    %451 = vmatpush1.msra.mxu0 0.0
    %452 = vmatprep.subr.mxu0 0.0
    %453 = vmatpush1.msra.mxu0 0.0
    %454 = vmatprep.subr.mxu0 0.0
    %455 = vmatpush1.msra.mxu0 0.0
    %456 = vmatprep.subr.mxu0 0.0
    %457 = vmatpush1.msra.mxu0 0.0
    %458 = vmatprep.subr.mxu0 0.0
    %459 = vmatpush1.msra.mxu0 0.0
    %460 = vmatprep.subr.mxu0 0.0
    %461 = vmatpush1.msra.mxu0 0.0
    %462 = vmatprep.subr.mxu0 0.0
    %463 = vmatpush1.msra.mxu0 0.0
    %464 = vmatprep.subr.mxu0 0.0
    %465 = vmatpush1.msra.mxu0 0.0
    %466 = vmatprep.subr.mxu0 0.0
    %467 = vmatpush1.msra.mxu0 0.0
    %468 = vmatprep.subr.mxu0 0.0
    %469 = vmatpush1.msra.mxu0 0.0
    %470 = vmatprep.subr.mxu0 0.0
    %471 = vmatpush1.msra.mxu0 0.0
    %472 = vmatprep.subr.mxu0 0.0
    %473 = vmatpush1.msra.mxu0 0.0
    %474 = vmatprep.subr.mxu0 0.0
    %475 = vmatpush1.msra.mxu0 0.0
    %476 = vmatprep.subr.mxu0 0.0
    %477 = vmatpush1.msra.mxu0 0.0
    %478 = vmatprep.subr.mxu0 0.0
    %479 = vmatpush1.msra.mxu0 0.0
    %480 = vmatprep.subr.mxu0 0.0
    %481 = vmatpush1.msra.mxu0 0.0
    %482 = vmatprep.subr.mxu0 0.0
    %483 = vmatpush1.msra.mxu0 0.0
    %484 = vmatprep.mubr.f32.mxu0 0.0
    %485 = vmatmul.mubr.f32.gmra.mrb[0].mxu0 %v418
    %v486 = vpop.f32.mrb[0].mxu0
    %v487 = vadd.f32 %v414, %v486
    %v488 = vpop.f32.mrb[0].mxu0
    %489 = vdwg.mxu0
    %v490 = vxor.u32 %v487, 2147483648
    %v491 = vmul.f32 %v490, 1.442695
    %v492 = vpow.pop %v491
    %v493 = vadd.f32 %v492, 1.0
    %v494 = vrcp.pop %v493
    %v495 = vmul.f32 1.0, %v494
    %v496 = vld [vmem:[%s9] sm:$0xf]
    %v497 = vld [vmem:[%s10] sm:$0xf]
    %499 = vset.pattern.permute.xlu0 0
    %500 = vperm.xlu0 %499, %v497
    %v501 = vpop.permute.xlu0 %500
    %v504 = vsel %vm416, %v496, 0
    %506 = vmatprep.subr.mxu0 0.0
    %507 = vmatpush1.msra.mxu0 %v408
    %508 = vmatprep.subr.mxu0 0.0
    %509 = vmatpush1.msra.mxu0 0.0
    %510 = vmatprep.subr.mxu0 0.0
    %511 = vmatpush1.msra.mxu0 0.0
    %512 = vmatprep.subr.mxu0 0.0
    %513 = vmatpush1.msra.mxu0 0.0
    %514 = vmatprep.subr.mxu0 0.0
    %515 = vmatpush1.msra.mxu0 0.0
    %516 = vmatprep.subr.mxu0 0.0
    %517 = vmatpush1.msra.mxu0 0.0
    %518 = vmatprep.subr.mxu0 0.0
    %519 = vmatpush1.msra.mxu0 0.0
    %520 = vmatprep.subr.mxu0 0.0
    %521 = vmatpush1.msra.mxu0 0.0
    %522 = vmatprep.subr.mxu0 0.0
    %523 = vmatpush1.msra.mxu0 0.0
    %524 = vmatprep.subr.mxu0 0.0
    %525 = vmatpush1.msra.mxu0 0.0
    %526 = vmatprep.subr.mxu0 0.0
    %527 = vmatpush1.msra.mxu0 0.0
    %528 = vmatprep.subr.mxu0 0.0
    %529 = vmatpush1.msra.mxu0 0.0
    %530 = vmatprep.subr.mxu0 0.0
    %531 = vmatpush1.msra.mxu0 0.0
    %532 = vmatprep.subr.mxu0 0.0
    %533 = vmatpush1.msra.mxu0 0.0
    %534 = vmatprep.subr.mxu0 0.0
    %535 = vmatpush1.msra.mxu0 0.0
    %536 = vmatprep.subr.mxu0 0.0
    %537 = vmatpush1.msra.mxu0 0.0
    %538 = vmatprep.subr.mxu0 0.0
    %539 = vmatpush1.msra.mxu0 0.0
    %540 = vmatprep.subr.mxu0 0.0
    %541 = vmatpush1.msra.mxu0 0.0
    %542 = vmatprep.subr.mxu0 0.0
    %543 = vmatpush1.msra.mxu0 0.0
    %544 = vmatprep.subr.mxu0 0.0
    %545 = vmatpush1.msra.mxu0 0.0
    %546 = vmatprep.subr.mxu0 0.0
    %547 = vmatpush1.msra.mxu0 0.0
    %548 = vmatprep.subr.mxu0 0.0
    %549 = vmatpush1.msra.mxu0 0.0
    %550 = vmatprep.subr.mxu0 0.0
    %551 = vmatpush1.msra.mxu0 0.0
    %552 = vmatprep.subr.mxu0 0.0
    %553 = vmatpush1.msra.mxu0 0.0
    %554 = vmatprep.subr.mxu0 0.0
    %555 = vmatpush1.msra.mxu0 0.0
    %556 = vmatprep.subr.mxu0 0.0
    %557 = vmatpush1.msra.mxu0 0.0
    %558 = vmatprep.subr.mxu0 0.0
    %559 = vmatpush1.msra.mxu0 0.0
    %560 = vmatprep.subr.mxu0 0.0
    %561 = vmatpush1.msra.mxu0 0.0
    %562 = vmatprep.subr.mxu0 0.0
    %563 = vmatpush1.msra.mxu0 0.0
    %564 = vmatprep.subr.mxu0 0.0
    %565 = vmatpush1.msra.mxu0 0.0
    %566 = vmatprep.subr.mxu0 0.0
    %567 = vmatpush1.msra.mxu0 0.0
    %568 = vmatprep.subr.mxu0 0.0
    %569 = vmatpush1.msra.mxu0 0.0
    %570 = vmatprep.mubr.f32.mxu0 0.0
    %571 = vmatmul.mubr.f32.gmra.mrb[0].mxu0 %v504
    %v572 = vpop.f32.mrb[0].mxu0
    %v573 = vadd.f32 %v501, %v572
    %v574 = vpop.f32.mrb[0].mxu0
    %575 = vdwg.mxu0
    %v576 = vxor.u32 %v573, 2147483648
    %v577 = vmul.f32 %v576, 1.442695
    %v578 = vpow.pop %v577
    %v579 = vadd.f32 %v578, 1.0
    %v580 = vrcp.pop %v579
    %v581 = vmul.f32 1.0, %v580
    %v582 = vld [vmem:[%s3] sm:$0xff]
    %v583 = vld [vmem:[%s3 + $0x8] sm:$0xff]
    %v584 = vld [vmem:[%s3 + $0x10] sm:$0xff]
    %v585 = vld [vmem:[%s3 + $0x18] sm:$0xff]
    %vm586 = vcmask 130048
    %v588 = vsel %vm586, %v495, 0
    %590 = vmatprep.subr.mxu0 %v583
    %591 = vmatpush1.msra.mxu0 %v582
    %592 = vmatprep.subr.mxu0 %v585
    %593 = vmatpush1.msra.mxu0 %v584
    %594 = vmatprep.subr.mxu0 0.0
    %595 = vmatpush1.msra.mxu0 0.0
    %596 = vmatprep.subr.mxu0 0.0
    %597 = vmatpush1.msra.mxu0 0.0
    %598 = vmatprep.subr.mxu0 0.0
    %599 = vmatpush1.msra.mxu0 0.0
    %600 = vmatprep.subr.mxu0 0.0
    %601 = vmatpush1.msra.mxu0 0.0
    %602 = vmatprep.subr.mxu0 0.0
    %603 = vmatpush1.msra.mxu0 0.0
    %604 = vmatprep.subr.mxu0 0.0
    %605 = vmatpush1.msra.mxu0 0.0
    %606 = vmatprep.subr.mxu0 0.0
    %607 = vmatpush1.msra.mxu0 0.0
    %608 = vmatprep.subr.mxu0 0.0
    %609 = vmatpush1.msra.mxu0 0.0
    %610 = vmatprep.subr.mxu0 0.0
    %611 = vmatpush1.msra.mxu0 0.0
    %612 = vmatprep.subr.mxu0 0.0
    %613 = vmatpush1.msra.mxu0 0.0
    %614 = vmatprep.subr.mxu0 0.0
    %615 = vmatpush1.msra.mxu0 0.0
    %616 = vmatprep.subr.mxu0 0.0
    %617 = vmatpush1.msra.mxu0 0.0
    %618 = vmatprep.subr.mxu0 0.0
    %619 = vmatpush1.msra.mxu0 0.0
    %620 = vmatprep.subr.mxu0 0.0
    %621 = vmatpush1.msra.mxu0 0.0
    %622 = vmatprep.subr.mxu0 0.0
    %623 = vmatpush1.msra.mxu0 0.0
    %624 = vmatprep.subr.mxu0 0.0
    %625 = vmatpush1.msra.mxu0 0.0
    %626 = vmatprep.subr.mxu0 0.0
    %627 = vmatpush1.msra.mxu0 0.0
    %628 = vmatprep.subr.mxu0 0.0
    %629 = vmatpush1.msra.mxu0 0.0
    %630 = vmatprep.subr.mxu0 0.0
    %631 = vmatpush1.msra.mxu0 0.0
    %632 = vmatprep.subr.mxu0 0.0
    %633 = vmatpush1.msra.mxu0 0.0
    %634 = vmatprep.subr.mxu0 0.0
    %635 = vmatpush1.msra.mxu0 0.0
    %636 = vmatprep.subr.mxu0 0.0
    %637 = vmatpush1.msra.mxu0 0.0
    %638 = vmatprep.subr.mxu0 0.0
    %639 = vmatpush1.msra.mxu0 0.0
    %640 = vmatprep.subr.mxu0 0.0
    %641 = vmatpush1.msra.mxu0 0.0
    %642 = vmatprep.subr.mxu0 0.0
    %643 = vmatpush1.msra.mxu0 0.0
    %644 = vmatprep.subr.mxu0 0.0
    %645 = vmatpush1.msra.mxu0 0.0
    %646 = vmatprep.subr.mxu0 0.0
    %647 = vmatpush1.msra.mxu0 0.0
    %648 = vmatprep.subr.mxu0 0.0
    %649 = vmatpush1.msra.mxu0 0.0
    %650 = vmatprep.subr.mxu0 0.0
    %651 = vmatpush1.msra.mxu0 0.0
    %652 = vmatprep.subr.mxu0 0.0
    %653 = vmatpush1.msra.mxu0 0.0
    %654 = vmatprep.mubr.f32.mxu0 0.0
    %655 = vmatmul.mubr.f32.gmra.mrb[0].mxu0 %v588
    %v656 = vpop.f32.mrb[0].mxu0
    %v657 = vadd.f32 0.0, %v656
    %v658 = vpop.f32.mrb[0].mxu0
    %v659 = vadd.f32 0.0, %v658
    %660 = vdwg.mxu0
    %v661 = vld [vmem:[%s4] sm:$0xff]
    %v662 = vld [vmem:[%s4 + $0x8] sm:$0xff]
    %v663 = vld [vmem:[%s4 + $0x10] sm:$0xff]
    %v664 = vld [vmem:[%s4 + $0x18] sm:$0xff]
    %v666 = vsel %vm586, %v581, 0
    %668 = vmatprep.subr.mxu0 %v662
    %669 = vmatpush1.msra.mxu0 %v661
    %670 = vmatprep.subr.mxu0 %v664
    %671 = vmatpush1.msra.mxu0 %v663
    %672 = vmatprep.subr.mxu0 0.0
    %673 = vmatpush1.msra.mxu0 0.0
    %674 = vmatprep.subr.mxu0 0.0
    %675 = vmatpush1.msra.mxu0 0.0
    %676 = vmatprep.subr.mxu0 0.0
    %677 = vmatpush1.msra.mxu0 0.0
    %678 = vmatprep.subr.mxu0 0.0
    %679 = vmatpush1.msra.mxu0 0.0
    %680 = vmatprep.subr.mxu0 0.0
    %681 = vmatpush1.msra.mxu0 0.0
    %682 = vmatprep.subr.mxu0 0.0
    %683 = vmatpush1.msra.mxu0 0.0
    %684 = vmatprep.subr.mxu0 0.0
    %685 = vmatpush1.msra.mxu0 0.0
    %686 = vmatprep.subr.mxu0 0.0
    %687 = vmatpush1.msra.mxu0 0.0
    %688 = vmatprep.subr.mxu0 0.0
    %689 = vmatpush1.msra.mxu0 0.0
    %690 = vmatprep.subr.mxu0 0.0
    %691 = vmatpush1.msra.mxu0 0.0
    %692 = vmatprep.subr.mxu0 0.0
    %693 = vmatpush1.msra.mxu0 0.0
    %694 = vmatprep.subr.mxu0 0.0
    %695 = vmatpush1.msra.mxu0 0.0
    %696 = vmatprep.subr.mxu0 0.0
    %697 = vmatpush1.msra.mxu0 0.0
    %698 = vmatprep.subr.mxu0 0.0
    %699 = vmatpush1.msra.mxu0 0.0
    %700 = vmatprep.subr.mxu0 0.0
    %701 = vmatpush1.msra.mxu0 0.0
    %702 = vmatprep.subr.mxu0 0.0
    %703 = vmatpush1.msra.mxu0 0.0
    %704 = vmatprep.subr.mxu0 0.0
    %705 = vmatpush1.msra.mxu0 0.0
    %706 = vmatprep.subr.mxu0 0.0
    %707 = vmatpush1.msra.mxu0 0.0
    %708 = vmatprep.subr.mxu0 0.0
    %709 = vmatpush1.msra.mxu0 0.0
    %710 = vmatprep.subr.mxu0 0.0
    %711 = vmatpush1.msra.mxu0 0.0
    %712 = vmatprep.subr.mxu0 0.0
    %713 = vmatpush1.msra.mxu0 0.0
    %714 = vmatprep.subr.mxu0 0.0
    %715 = vmatpush1.msra.mxu0 0.0
    %716 = vmatprep.subr.mxu0 0.0
    %717 = vmatpush1.msra.mxu0 0.0
    %718 = vmatprep.subr.mxu0 0.0
    %719 = vmatpush1.msra.mxu0 0.0
    %720 = vmatprep.subr.mxu0 0.0
    %721 = vmatpush1.msra.mxu0 0.0
    %722 = vmatprep.subr.mxu0 0.0
    %723 = vmatpush1.msra.mxu0 0.0
    %724 = vmatprep.subr.mxu0 0.0
    %725 = vmatpush1.msra.mxu0 0.0
    %726 = vmatprep.subr.mxu0 0.0
    %727 = vmatpush1.msra.mxu0 0.0
    %728 = vmatprep.subr.mxu0 0.0
    %729 = vmatpush1.msra.mxu0 0.0
    %730 = vmatprep.subr.mxu0 0.0
    %731 = vmatpush1.msra.mxu0 0.0
    %732 = vmatprep.mubr.f32.mxu0 0.0
    %733 = vmatmul.mubr.f32.gmra.mrb[0].mxu0 %v666
    %v734 = vpop.f32.mrb[0].mxu0
    %v735 = vadd.f32 0.0, %v734
    %v736 = vpop.f32.mrb[0].mxu0
    %v737 = vadd.f32 0.0, %v736
    %738 = vdwg.mxu0
    %v741 = vcombine.low %v657, %v659
    %v743 = vmul.f32 %v39, %v741
    %v746 = vcombine.low %v735, %v737
    %v748 = vmul.f32 %v743, %v746
    %749 = vst [vmem:[#allocation2] sm:$0xff] %v748
    %s750 = scalar_lea.vmem %s0, 8
    %v751 = vld [vmem:[%s750] sm:$0xff]
    %v752 = vld [vmem:[%s1] sm:$0xff]
    %v753 = vld [vmem:[%s1 + $0x8] sm:$0xff]
    %v754 = vld [vmem:[%s1 + $0x10] sm:$0xff]
    %v755 = vld [vmem:[%s1 + $0x18] sm:$0xff]
    %v756 = vld [vmem:[%s1 + $0x20] sm:$0xff]
    %v757 = vld [vmem:[%s1 + $0x28] sm:$0xff]
    %v758 = vld [vmem:[%s1 + $0x30] sm:$0xff]
    %v759 = vld [vmem:[%s1 + $0x38] sm:$0xff]
    %v760 = vld [vmem:[%s1 + $0x40] sm:$0xff]
    %v761 = vld [vmem:[%s1 + $0x48] sm:$0xff]
    %v762 = vld [vmem:[%s1 + $0x50] sm:$0xff]
    %v763 = vld [vmem:[%s1 + $0x58] sm:$0xff]
    %v764 = vld [vmem:[%s1 + $0x60] sm:$0xff]
    %v765 = vld [vmem:[%s1 + $0x68] sm:$0xff]
    %v766 = vld [vmem:[%s1 + $0x70] sm:$0xff]
    %v767 = vld [vmem:[%s1 + $0x78] sm:$0xff]
    %v768 = vld [vmem:[%s1 + $0x80] sm:$0xff]
    %v769 = vld [vmem:[%s1 + $0x88] sm:$0xff]
    %v770 = vld [vmem:[%s1 + $0x90] sm:$0xff]
    %v771 = vld [vmem:[%s1 + $0x98] sm:$0xff]
    %v772 = vld [vmem:[%s1 + $0xa0] sm:$0xff]
    %v773 = vld [vmem:[%s1 + $0xa8] sm:$0xff]
    %v774 = vld [vmem:[%s1 + $0xb0] sm:$0xff]
    %v775 = vld [vmem:[%s1 + $0xb8] sm:$0xff]
    %v776 = vld [vmem:[%s1 + $0xc0] sm:$0xff]
    %v777 = vld [vmem:[%s1 + $0xc8] sm:$0xff]
    %v778 = vld [vmem:[%s1 + $0xd0] sm:$0xff]
    %v779 = vld [vmem:[%s1 + $0xd8] sm:$0xff]
    %v780 = vld [vmem:[%s1 + $0xe0] sm:$0xff]
    %v781 = vld [vmem:[%s1 + $0xe8] sm:$0xff]
    %v782 = vld [vmem:[%s1 + $0xf0] sm:$0xff]
    %v783 = vld [vmem:[%s1 + $0xf8] sm:$0xff]
    %v785 = vcombine.high %v751, %v751
    %787 = vmatprep.subr.mxu0 0.0
    %788 = vmatpush1.msra.mxu0 %v752
    %789 = vmatprep.subr.mxu0 0.0
    %790 = vmatpush1.msra.mxu0 %v753
    %791 = vmatprep.subr.mxu0 0.0
    %792 = vmatpush1.msra.mxu0 %v754
    %793 = vmatprep.subr.mxu0 0.0
    %794 = vmatpush1.msra.mxu0 %v755
    %795 = vmatprep.subr.mxu0 0.0
    %796 = vmatpush1.msra.mxu0 %v756
    %797 = vmatprep.subr.mxu0 0.0
    %798 = vmatpush1.msra.mxu0 %v757
    %799 = vmatprep.subr.mxu0 0.0
    %800 = vmatpush1.msra.mxu0 %v758
    %801 = vmatprep.subr.mxu0 0.0
    %802 = vmatpush1.msra.mxu0 %v759
    %803 = vmatprep.subr.mxu0 0.0
    %804 = vmatpush1.msra.mxu0 %v760
    %805 = vmatprep.subr.mxu0 0.0
    %806 = vmatpush1.msra.mxu0 %v761
    %807 = vmatprep.subr.mxu0 0.0
    %808 = vmatpush1.msra.mxu0 %v762
    %809 = vmatprep.subr.mxu0 0.0
    %810 = vmatpush1.msra.mxu0 %v763
    %811 = vmatprep.subr.mxu0 0.0
    %812 = vmatpush1.msra.mxu0 %v764
    %813 = vmatprep.subr.mxu0 0.0
    %814 = vmatpush1.msra.mxu0 %v765
    %815 = vmatprep.subr.mxu0 0.0
    %816 = vmatpush1.msra.mxu0 %v766
    %817 = vmatprep.subr.mxu0 0.0
    %818 = vmatpush1.msra.mxu0 %v767
    %819 = vmatprep.subr.mxu0 0.0
    %820 = vmatpush1.msra.mxu0 %v768
    %821 = vmatprep.subr.mxu0 0.0
    %822 = vmatpush1.msra.mxu0 %v769
    %823 = vmatprep.subr.mxu0 0.0
    %824 = vmatpush1.msra.mxu0 %v770
    %825 = vmatprep.subr.mxu0 0.0
    %826 = vmatpush1.msra.mxu0 %v771
    %827 = vmatprep.subr.mxu0 0.0
    %828 = vmatpush1.msra.mxu0 %v772
    %829 = vmatprep.subr.mxu0 0.0
    %830 = vmatpush1.msra.mxu0 %v773
    %831 = vmatprep.subr.mxu0 0.0
    %832 = vmatpush1.msra.mxu0 %v774
    %833 = vmatprep.subr.mxu0 0.0
    %834 = vmatpush1.msra.mxu0 %v775
    %835 = vmatprep.subr.mxu0 0.0
    %836 = vmatpush1.msra.mxu0 %v776
    %837 = vmatprep.subr.mxu0 0.0
    %838 = vmatpush1.msra.mxu0 %v777
    %839 = vmatprep.subr.mxu0 0.0
    %840 = vmatpush1.msra.mxu0 %v778
    %841 = vmatprep.subr.mxu0 0.0
    %842 = vmatpush1.msra.mxu0 %v779
    %843 = vmatprep.subr.mxu0 0.0
    %844 = vmatpush1.msra.mxu0 %v780
    %845 = vmatprep.subr.mxu0 0.0
    %846 = vmatpush1.msra.mxu0 %v781
    %847 = vmatprep.subr.mxu0 0.0
    %848 = vmatpush1.msra.mxu0 %v782
    %849 = vmatprep.subr.mxu0 0.0
    %850 = vmatpush1.msra.mxu0 %v783
    %851 = vmatprep.mubr.f32.mxu0 %v785
    %852 = vmatmul.mubr.f32.gmra.mrb[0].mxu0 %v751
    %v853 = vpop.f32.mrb[0].mxu0
    %v854 = vadd.f32 0.0, %v853
    %v855 = vpop.f32.mrb[0].mxu0
    %856 = vdwg.mxu0
    %v857 = vmul.f32 %v854, 0.0625
    %v858 = vld [vmem:[%s2] sm:$0xff]
    %v859 = vld [vmem:[%s2 + $0x8] sm:$0xff]
    %v860 = vld [vmem:[%s2 + $0x10] sm:$0xff]
    %v861 = vld [vmem:[%s2 + $0x18] sm:$0xff]
    %v862 = vld [vmem:[%s2 + $0x20] sm:$0xff]
    %v863 = vld [vmem:[%s2 + $0x28] sm:$0xff]
    %v864 = vld [vmem:[%s2 + $0x30] sm:$0xff]
    %v865 = vld [vmem:[%s2 + $0x38] sm:$0xff]
    %v866 = vld [vmem:[%s2 + $0x40] sm:$0xff]
    %v867 = vld [vmem:[%s2 + $0x48] sm:$0xff]
    %v868 = vld [vmem:[%s2 + $0x50] sm:$0xff]
    %v869 = vld [vmem:[%s2 + $0x58] sm:$0xff]
    %v870 = vld [vmem:[%s2 + $0x60] sm:$0xff]
    %v871 = vld [vmem:[%s2 + $0x68] sm:$0xff]
    %v872 = vld [vmem:[%s2 + $0x70] sm:$0xff]
    %v873 = vld [vmem:[%s2 + $0x78] sm:$0xff]
    %v874 = vld [vmem:[%s2 + $0x80] sm:$0xff]
    %v875 = vld [vmem:[%s2 + $0x88] sm:$0xff]
    %v876 = vld [vmem:[%s2 + $0x90] sm:$0xff]
    %v877 = vld [vmem:[%s2 + $0x98] sm:$0xff]
    %v878 = vld [vmem:[%s2 + $0xa0] sm:$0xff]
    %v879 = vld [vmem:[%s2 + $0xa8] sm:$0xff]
    %v880 = vld [vmem:[%s2 + $0xb0] sm:$0xff]
    %v881 = vld [vmem:[%s2 + $0xb8] sm:$0xff]
    %v882 = vld [vmem:[%s2 + $0xc0] sm:$0xff]
    %v883 = vld [vmem:[%s2 + $0xc8] sm:$0xff]
    %v884 = vld [vmem:[%s2 + $0xd0] sm:$0xff]
    %v885 = vld [vmem:[%s2 + $0xd8] sm:$0xff]
    %v886 = vld [vmem:[%s2 + $0xe0] sm:$0xff]
    %v887 = vld [vmem:[%s2 + $0xe8] sm:$0xff]
    %v888 = vld [vmem:[%s2 + $0xf0] sm:$0xff]
    %v889 = vld [vmem:[%s2 + $0xf8] sm:$0xff]
    %890 = vmatprep.subr.mxu0 0.0
    %891 = vmatpush1.msra.mxu0 %v858
    %892 = vmatprep.subr.mxu0 0.0
    %893 = vmatpush1.msra.mxu0 %v859
    %894 = vmatprep.subr.mxu0 0.0
    %895 = vmatpush1.msra.mxu0 %v860
    %896 = vmatprep.subr.mxu0 0.0
    %897 = vmatpush1.msra.mxu0 %v861
    %898 = vmatprep.subr.mxu0 0.0
    %899 = vmatpush1.msra.mxu0 %v862
    %900 = vmatprep.subr.mxu0 0.0
    %901 = vmatpush1.msra.mxu0 %v863
    %902 = vmatprep.subr.mxu0 0.0
    %903 = vmatpush1.msra.mxu0 %v864
    %904 = vmatprep.subr.mxu0 0.0
    %905 = vmatpush1.msra.mxu0 %v865
    %906 = vmatprep.subr.mxu0 0.0
    %907 = vmatpush1.msra.mxu0 %v866
    %908 = vmatprep.subr.mxu0 0.0
    %909 = vmatpush1.msra.mxu0 %v867
    %910 = vmatprep.subr.mxu0 0.0
    %911 = vmatpush1.msra.mxu0 %v868
    %912 = vmatprep.subr.mxu0 0.0
    %913 = vmatpush1.msra.mxu0 %v869
    %914 = vmatprep.subr.mxu0 0.0
    %915 = vmatpush1.msra.mxu0 %v870
    %916 = vmatprep.subr.mxu0 0.0
    %917 = vmatpush1.msra.mxu0 %v871
    %918 = vmatprep.subr.mxu0 0.0
    %919 = vmatpush1.msra.mxu0 %v872
    %920 = vmatprep.subr.mxu0 0.0
    %921 = vmatpush1.msra.mxu0 %v873
    %922 = vmatprep.subr.mxu0 0.0
    %923 = vmatpush1.msra.mxu0 %v874
    %924 = vmatprep.subr.mxu0 0.0
    %925 = vmatpush1.msra.mxu0 %v875
    %926 = vmatprep.subr.mxu0 0.0
    %927 = vmatpush1.msra.mxu0 %v876
    %928 = vmatprep.subr.mxu0 0.0
    %929 = vmatpush1.msra.mxu0 %v877
    %930 = vmatprep.subr.mxu0 0.0
    %931 = vmatpush1.msra.mxu0 %v878
    %932 = vmatprep.subr.mxu0 0.0
    %933 = vmatpush1.msra.mxu0 %v879
    %934 = vmatprep.subr.mxu0 0.0
    %935 = vmatpush1.msra.mxu0 %v880
    %936 = vmatprep.subr.mxu0 0.0
    %937 = vmatpush1.msra.mxu0 %v881
    %938 = vmatprep.subr.mxu0 0.0
    %939 = vmatpush1.msra.mxu0 %v882
    %940 = vmatprep.subr.mxu0 0.0
    %941 = vmatpush1.msra.mxu0 %v883
    %942 = vmatprep.subr.mxu0 0.0
    %943 = vmatpush1.msra.mxu0 %v884
    %944 = vmatprep.subr.mxu0 0.0
    %945 = vmatpush1.msra.mxu0 %v885
    %946 = vmatprep.subr.mxu0 0.0
    %947 = vmatpush1.msra.mxu0 %v886
    %948 = vmatprep.subr.mxu0 0.0
    %949 = vmatpush1.msra.mxu0 %v887
    %950 = vmatprep.subr.mxu0 0.0
    %951 = vmatpush1.msra.mxu0 %v888
    %952 = vmatprep.subr.mxu0 0.0
    %953 = vmatpush1.msra.mxu0 %v889
    %954 = vmatprep.mubr.f32.mxu0 %v785
    %955 = vmatmul.mubr.f32.gmra.mrb[0].mxu0 %v751
    %v956 = vpop.f32.mrb[0].mxu0
    %v957 = vadd.f32 0.0, %v956
    %v958 = vpop.f32.mrb[0].mxu0
    %959 = vdwg.mxu0
    %v960 = vmul.f32 %v957, 0.0625
    %v961 = vld [vmem:[%s5] sm:$0xff]
    %v962 = vld [vmem:[%s6] sm:$0xff]
    %964 = vset.pattern.permute.xlu0 0
    %965 = vperm.xlu0 %964, %v962
    %v966 = vpop.permute.xlu0 %965
    %v969 = vsel %vm256, %v961, 0
    %v972 = vsel %vm260, %v857, 0
    %974 = vmatprep.subr.mxu0 0.0
    %975 = vmatpush1.msra.mxu0 %v972
    %976 = vmatprep.subr.mxu0 0.0
    %977 = vmatpush1.msra.mxu0 0.0
    %978 = vmatprep.subr.mxu0 0.0
    %979 = vmatpush1.msra.mxu0 0.0
    %980 = vmatprep.subr.mxu0 0.0
    %981 = vmatpush1.msra.mxu0 0.0
    %982 = vmatprep.subr.mxu0 0.0
    %983 = vmatpush1.msra.mxu0 0.0
    %984 = vmatprep.subr.mxu0 0.0
    %985 = vmatpush1.msra.mxu0 0.0
    %986 = vmatprep.subr.mxu0 0.0
    %987 = vmatpush1.msra.mxu0 0.0
    %988 = vmatprep.subr.mxu0 0.0
    %989 = vmatpush1.msra.mxu0 0.0
    %990 = vmatprep.subr.mxu0 0.0
    %991 = vmatpush1.msra.mxu0 0.0
    %992 = vmatprep.subr.mxu0 0.0
    %993 = vmatpush1.msra.mxu0 0.0
    %994 = vmatprep.subr.mxu0 0.0
    %995 = vmatpush1.msra.mxu0 0.0
    %996 = vmatprep.subr.mxu0 0.0
    %997 = vmatpush1.msra.mxu0 0.0
    %998 = vmatprep.subr.mxu0 0.0
    %999 = vmatpush1.msra.mxu0 0.0
    %1000 = vmatprep.subr.mxu0 0.0
    %1001 = vmatpush1.msra.mxu0 0.0
    %1002 = vmatprep.subr.mxu0 0.0
    %1003 = vmatpush1.msra.mxu0 0.0
    %1004 = vmatprep.subr.mxu0 0.0
    %1005 = vmatpush1.msra.mxu0 0.0
    %1006 = vmatprep.subr.mxu0 0.0
    %1007 = vmatpush1.msra.mxu0 0.0
    %1008 = vmatprep.subr.mxu0 0.0
    %1009 = vmatpush1.msra.mxu0 0.0
    %1010 = vmatprep.subr.mxu0 0.0
    %1011 = vmatpush1.msra.mxu0 0.0
    %1012 = vmatprep.subr.mxu0 0.0
    %1013 = vmatpush1.msra.mxu0 0.0
    %1014 = vmatprep.subr.mxu0 0.0
    %1015 = vmatpush1.msra.mxu0 0.0
    %1016 = vmatprep.subr.mxu0 0.0
    %1017 = vmatpush1.msra.mxu0 0.0
    %1018 = vmatprep.subr.mxu0 0.0
    %1019 = vmatpush1.msra.mxu0 0.0
    %1020 = vmatprep.subr.mxu0 0.0
    %1021 = vmatpush1.msra.mxu0 0.0
    %1022 = vmatprep.subr.mxu0 0.0
    %1023 = vmatpush1.msra.mxu0 0.0
    %1024 = vmatprep.subr.mxu0 0.0
    %1025 = vmatpush1.msra.mxu0 0.0
    %1026 = vmatprep.subr.mxu0 0.0
    %1027 = vmatpush1.msra.mxu0 0.0
    %1028 = vmatprep.subr.mxu0 0.0
    %1029 = vmatpush1.msra.mxu0 0.0
    %1030 = vmatprep.subr.mxu0 0.0
    %1031 = vmatpush1.msra.mxu0 0.0
    %1032 = vmatprep.subr.mxu0 0.0
    %1033 = vmatpush1.msra.mxu0 0.0
    %1034 = vmatprep.subr.mxu0 0.0
    %1035 = vmatpush1.msra.mxu0 0.0
    %1036 = vmatprep.subr.mxu0 0.0
    %1037 = vmatpush1.msra.mxu0 0.0
    %1038 = vmatprep.mubr.f32.mxu0 0.0
    %1039 = vmatmul.mubr.f32.gmra.mrb[0].mxu0 %v969
    %v1040 = vpop.f32.mrb[0].mxu0
    %v1041 = vadd.f32 %v966, %v1040
    %v1042 = vpop.f32.mrb[0].mxu0
    %1043 = vdwg.mxu0
    %v1044 = vmax.f32 %v1041, 0.0
    %v1046 = vsel %vm260, %v960, 0
    %1048 = vmatprep.subr.mxu0 0.0
    %1049 = vmatpush1.msra.mxu0 %v1046
    %1050 = vmatprep.subr.mxu0 0.0
    %1051 = vmatpush1.msra.mxu0 0.0
    %1052 = vmatprep.subr.mxu0 0.0
    %1053 = vmatpush1.msra.mxu0 0.0
    %1054 = vmatprep.subr.mxu0 0.0
    %1055 = vmatpush1.msra.mxu0 0.0
    %1056 = vmatprep.subr.mxu0 0.0
    %1057 = vmatpush1.msra.mxu0 0.0
    %1058 = vmatprep.subr.mxu0 0.0
    %1059 = vmatpush1.msra.mxu0 0.0
    %1060 = vmatprep.subr.mxu0 0.0
    %1061 = vmatpush1.msra.mxu0 0.0
    %1062 = vmatprep.subr.mxu0 0.0
    %1063 = vmatpush1.msra.mxu0 0.0
    %1064 = vmatprep.subr.mxu0 0.0
    %1065 = vmatpush1.msra.mxu0 0.0
    %1066 = vmatprep.subr.mxu0 0.0
    %1067 = vmatpush1.msra.mxu0 0.0
    %1068 = vmatprep.subr.mxu0 0.0
    %1069 = vmatpush1.msra.mxu0 0.0
    %1070 = vmatprep.subr.mxu0 0.0
    %1071 = vmatpush1.msra.mxu0 0.0
    %1072 = vmatprep.subr.mxu0 0.0
    %1073 = vmatpush1.msra.mxu0 0.0
    %1074 = vmatprep.subr.mxu0 0.0
    %1075 = vmatpush1.msra.mxu0 0.0
    %1076 = vmatprep.subr.mxu0 0.0
    %1077 = vmatpush1.msra.mxu0 0.0
    %1078 = vmatprep.subr.mxu0 0.0
    %1079 = vmatpush1.msra.mxu0 0.0
    %1080 = vmatprep.subr.mxu0 0.0
    %1081 = vmatpush1.msra.mxu0 0.0
    %1082 = vmatprep.subr.mxu0 0.0
    %1083 = vmatpush1.msra.mxu0 0.0
    %1084 = vmatprep.subr.mxu0 0.0
    %1085 = vmatpush1.msra.mxu0 0.0
    %1086 = vmatprep.subr.mxu0 0.0
    %1087 = vmatpush1.msra.mxu0 0.0
    %1088 = vmatprep.subr.mxu0 0.0
    %1089 = vmatpush1.msra.mxu0 0.0
    %1090 = vmatprep.subr.mxu0 0.0
    %1091 = vmatpush1.msra.mxu0 0.0
    %1092 = vmatprep.subr.mxu0 0.0
    %1093 = vmatpush1.msra.mxu0 0.0
    %1094 = vmatprep.subr.mxu0 0.0
    %1095 = vmatpush1.msra.mxu0 0.0
    %1096 = vmatprep.subr.mxu0 0.0
    %1097 = vmatpush1.msra.mxu0 0.0
    %1098 = vmatprep.subr.mxu0 0.0
    %1099 = vmatpush1.msra.mxu0 0.0
    %1100 = vmatprep.subr.mxu0 0.0
    %1101 = vmatpush1.msra.mxu0 0.0
    %1102 = vmatprep.subr.mxu0 0.0
    %1103 = vmatpush1.msra.mxu0 0.0
    %1104 = vmatprep.subr.mxu0 0.0
    %1105 = vmatpush1.msra.mxu0 0.0
    %1106 = vmatprep.subr.mxu0 0.0
    %1107 = vmatpush1.msra.mxu0 0.0
    %1108 = vmatprep.subr.mxu0 0.0
    %1109 = vmatpush1.msra.mxu0 0.0
    %1110 = vmatprep.subr.mxu0 0.0
    %1111 = vmatpush1.msra.mxu0 0.0
    %1112 = vmatprep.mubr.f32.mxu0 0.0
    %1113 = vmatmul.mubr.f32.gmra.mrb[0].mxu0 %v969
    %v1114 = vpop.f32.mrb[0].mxu0
    %v1115 = vadd.f32 %v966, %v1114
    %v1116 = vpop.f32.mrb[0].mxu0
    %1117 = vdwg.mxu0
    %v1118 = vmax.f32 %v1115, 0.0
    %v1119 = vld [vmem:[%s7] sm:$0xf]
    %v1120 = vld [vmem:[%s8] sm:$0xf]
    %1122 = vset.pattern.permute.xlu0 0
    %1123 = vperm.xlu0 %1122, %v1120
    %v1124 = vpop.permute.xlu0 %1123
    %v1127 = vsel %vm416, %v1119, 0
    %1129 = vmatprep.subr.mxu0 0.0
    %1130 = vmatpush1.msra.mxu0 %v1044
    %1131 = vmatprep.subr.mxu0 0.0
    %1132 = vmatpush1.msra.mxu0 0.0
    %1133 = vmatprep.subr.mxu0 0.0
    %1134 = vmatpush1.msra.mxu0 0.0
    %1135 = vmatprep.subr.mxu0 0.0
    %1136 = vmatpush1.msra.mxu0 0.0
    %1137 = vmatprep.subr.mxu0 0.0
    %1138 = vmatpush1.msra.mxu0 0.0
    %1139 = vmatprep.subr.mxu0 0.0
    %1140 = vmatpush1.msra.mxu0 0.0
    %1141 = vmatprep.subr.mxu0 0.0
    %1142 = vmatpush1.msra.mxu0 0.0
    %1143 = vmatprep.subr.mxu0 0.0
    %1144 = vmatpush1.msra.mxu0 0.0
    %1145 = vmatprep.subr.mxu0 0.0
    %1146 = vmatpush1.msra.mxu0 0.0
    %1147 = vmatprep.subr.mxu0 0.0
    %1148 = vmatpush1.msra.mxu0 0.0
    %1149 = vmatprep.subr.mxu0 0.0
    %1150 = vmatpush1.msra.mxu0 0.0
    %1151 = vmatprep.subr.mxu0 0.0
    %1152 = vmatpush1.msra.mxu0 0.0
    %1153 = vmatprep.subr.mxu0 0.0
    %1154 = vmatpush1.msra.mxu0 0.0
    %1155 = vmatprep.subr.mxu0 0.0
    %1156 = vmatpush1.msra.mxu0 0.0
    %1157 = vmatprep.subr.mxu0 0.0
    %1158 = vmatpush1.msra.mxu0 0.0
    %1159 = vmatprep.subr.mxu0 0.0
    %1160 = vmatpush1.msra.mxu0 0.0
    %1161 = vmatprep.subr.mxu0 0.0
    %1162 = vmatpush1.msra.mxu0 0.0
    %1163 = vmatprep.subr.mxu0 0.0
    %1164 = vmatpush1.msra.mxu0 0.0
    %1165 = vmatprep.subr.mxu0 0.0
    %1166 = vmatpush1.msra.mxu0 0.0
    %1167 = vmatprep.subr.mxu0 0.0
    %1168 = vmatpush1.msra.mxu0 0.0
    %1169 = vmatprep.subr.mxu0 0.0
    %1170 = vmatpush1.msra.mxu0 0.0
    %1171 = vmatprep.subr.mxu0 0.0
    %1172 = vmatpush1.msra.mxu0 0.0
    %1173 = vmatprep.subr.mxu0 0.0
    %1174 = vmatpush1.msra.mxu0 0.0
    %1175 = vmatprep.subr.mxu0 0.0
    %1176 = vmatpush1.msra.mxu0 0.0
    %1177 = vmatprep.subr.mxu0 0.0
    %1178 = vmatpush1.msra.mxu0 0.0
    %1179 = vmatprep.subr.mxu0 0.0
    %1180 = vmatpush1.msra.mxu0 0.0
    %1181 = vmatprep.subr.mxu0 0.0
    %1182 = vmatpush1.msra.mxu0 0.0
    %1183 = vmatprep.subr.mxu0 0.0
    %1184 = vmatpush1.msra.mxu0 0.0
    %1185 = vmatprep.subr.mxu0 0.0
    %1186 = vmatpush1.msra.mxu0 0.0
    %1187 = vmatprep.subr.mxu0 0.0
    %1188 = vmatpush1.msra.mxu0 0.0
    %1189 = vmatprep.subr.mxu0 0.0
    %1190 = vmatpush1.msra.mxu0 0.0
    %1191 = vmatprep.subr.mxu0 0.0
    %1192 = vmatpush1.msra.mxu0 0.0
    %1193 = vmatprep.mubr.f32.mxu0 0.0
    %1194 = vmatmul.mubr.f32.gmra.mrb[0].mxu0 %v1127
    %v1195 = vpop.f32.mrb[0].mxu0
    %v1196 = vadd.f32 %v1124, %v1195
    %v1197 = vpop.f32.mrb[0].mxu0
    %1198 = vdwg.mxu0
    %v1199 = vxor.u32 %v1196, 2147483648
    %v1200 = vmul.f32 %v1199, 1.442695
    %v1201 = vpow.pop %v1200
    %v1202 = vadd.f32 %v1201, 1.0
    %v1203 = vrcp.pop %v1202
    %v1204 = vmul.f32 1.0, %v1203
    %v1205 = vld [vmem:[%s9] sm:$0xf]
    %v1206 = vld [vmem:[%s10] sm:$0xf]
    %1208 = vset.pattern.permute.xlu0 0
    %1209 = vperm.xlu0 %1208, %v1206
    %v1210 = vpop.permute.xlu0 %1209
    %v1213 = vsel %vm416, %v1205, 0
    %1215 = vmatprep.subr.mxu0 0.0
    %1216 = vmatpush1.msra.mxu0 %v1118
    %1217 = vmatprep.subr.mxu0 0.0
    %1218 = vmatpush1.msra.mxu0 0.0
    %1219 = vmatprep.subr.mxu0 0.0
    %1220 = vmatpush1.msra.mxu0 0.0
    %1221 = vmatprep.subr.mxu0 0.0
    %1222 = vmatpush1.msra.mxu0 0.0
    %1223 = vmatprep.subr.mxu0 0.0
    %1224 = vmatpush1.msra.mxu0 0.0
    %1225 = vmatprep.subr.mxu0 0.0
    %1226 = vmatpush1.msra.mxu0 0.0
    %1227 = vmatprep.subr.mxu0 0.0
    %1228 = vmatpush1.msra.mxu0 0.0
    %1229 = vmatprep.subr.mxu0 0.0
    %1230 = vmatpush1.msra.mxu0 0.0
    %1231 = vmatprep.subr.mxu0 0.0
    %1232 = vmatpush1.msra.mxu0 0.0
    %1233 = vmatprep.subr.mxu0 0.0
    %1234 = vmatpush1.msra.mxu0 0.0
    %1235 = vmatprep.subr.mxu0 0.0
    %1236 = vmatpush1.msra.mxu0 0.0
    %1237 = vmatprep.subr.mxu0 0.0
    %1238 = vmatpush1.msra.mxu0 0.0
    %1239 = vmatprep.subr.mxu0 0.0
    %1240 = vmatpush1.msra.mxu0 0.0
    %1241 = vmatprep.subr.mxu0 0.0
    %1242 = vmatpush1.msra.mxu0 0.0
    %1243 = vmatprep.subr.mxu0 0.0
    %1244 = vmatpush1.msra.mxu0 0.0
    %1245 = vmatprep.subr.mxu0 0.0
    %1246 = vmatpush1.msra.mxu0 0.0
    %1247 = vmatprep.subr.mxu0 0.0
    %1248 = vmatpush1.msra.mxu0 0.0
    %1249 = vmatprep.subr.mxu0 0.0
    %1250 = vmatpush1.msra.mxu0 0.0
    %1251 = vmatprep.subr.mxu0 0.0
    %1252 = vmatpush1.msra.mxu0 0.0
    %1253 = vmatprep.subr.mxu0 0.0
    %1254 = vmatpush1.msra.mxu0 0.0
    %1255 = vmatprep.subr.mxu0 0.0
    %1256 = vmatpush1.msra.mxu0 0.0
    %1257 = vmatprep.subr.mxu0 0.0
    %1258 = vmatpush1.msra.mxu0 0.0
    %1259 = vmatprep.subr.mxu0 0.0
    %1260 = vmatpush1.msra.mxu0 0.0
    %1261 = vmatprep.subr.mxu0 0.0
    %1262 = vmatpush1.msra.mxu0 0.0
    %1263 = vmatprep.subr.mxu0 0.0
    %1264 = vmatpush1.msra.mxu0 0.0
    %1265 = vmatprep.subr.mxu0 0.0
    %1266 = vmatpush1.msra.mxu0 0.0
    %1267 = vmatprep.subr.mxu0 0.0
    %1268 = vmatpush1.msra.mxu0 0.0
    %1269 = vmatprep.subr.mxu0 0.0
    %1270 = vmatpush1.msra.mxu0 0.0
    %1271 = vmatprep.subr.mxu0 0.0
    %1272 = vmatpush1.msra.mxu0 0.0
    %1273 = vmatprep.subr.mxu0 0.0
    %1274 = vmatpush1.msra.mxu0 0.0
    %1275 = vmatprep.subr.mxu0 0.0
    %1276 = vmatpush1.msra.mxu0 0.0
    %1277 = vmatprep.subr.mxu0 0.0
    %1278 = vmatpush1.msra.mxu0 0.0
    %1279 = vmatprep.mubr.f32.mxu0 0.0
    %1280 = vmatmul.mubr.f32.gmra.mrb[0].mxu0 %v1213
    %v1281 = vpop.f32.mrb[0].mxu0
    %v1282 = vadd.f32 %v1210, %v1281
    %v1283 = vpop.f32.mrb[0].mxu0
    %1284 = vdwg.mxu0
    %v1285 = vxor.u32 %v1282, 2147483648
    %v1286 = vmul.f32 %v1285, 1.442695
    %v1287 = vpow.pop %v1286
    %v1288 = vadd.f32 %v1287, 1.0
    %v1289 = vrcp.pop %v1288
    %v1290 = vmul.f32 1.0, %v1289
    %v1291 = vld [vmem:[%s3] sm:$0xff]
    %v1292 = vld [vmem:[%s3 + $0x8] sm:$0xff]
    %v1293 = vld [vmem:[%s3 + $0x10] sm:$0xff]
    %v1294 = vld [vmem:[%s3 + $0x18] sm:$0xff]
    %v1296 = vsel %vm586, %v1204, 0
    %1298 = vmatprep.subr.mxu0 %v1292
    %1299 = vmatpush1.msra.mxu0 %v1291
    %1300 = vmatprep.subr.mxu0 %v1294
    %1301 = vmatpush1.msra.mxu0 %v1293
    %1302 = vmatprep.subr.mxu0 0.0
    %1303 = vmatpush1.msra.mxu0 0.0
    %1304 = vmatprep.subr.mxu0 0.0
    %1305 = vmatpush1.msra.mxu0 0.0
    %1306 = vmatprep.subr.mxu0 0.0
    %1307 = vmatpush1.msra.mxu0 0.0
    %1308 = vmatprep.subr.mxu0 0.0
    %1309 = vmatpush1.msra.mxu0 0.0
    %1310 = vmatprep.subr.mxu0 0.0
    %1311 = vmatpush1.msra.mxu0 0.0
    %1312 = vmatprep.subr.mxu0 0.0
    %1313 = vmatpush1.msra.mxu0 0.0
    %1314 = vmatprep.subr.mxu0 0.0
    %1315 = vmatpush1.msra.mxu0 0.0
    %1316 = vmatprep.subr.mxu0 0.0
    %1317 = vmatpush1.msra.mxu0 0.0
    %1318 = vmatprep.subr.mxu0 0.0
    %1319 = vmatpush1.msra.mxu0 0.0
    %1320 = vmatprep.subr.mxu0 0.0
    %1321 = vmatpush1.msra.mxu0 0.0
    %1322 = vmatprep.subr.mxu0 0.0
    %1323 = vmatpush1.msra.mxu0 0.0
    %1324 = vmatprep.subr.mxu0 0.0
    %1325 = vmatpush1.msra.mxu0 0.0
    %1326 = vmatprep.subr.mxu0 0.0
    %1327 = vmatpush1.msra.mxu0 0.0
    %1328 = vmatprep.subr.mxu0 0.0
    %1329 = vmatpush1.msra.mxu0 0.0
    %1330 = vmatprep.subr.mxu0 0.0
    %1331 = vmatpush1.msra.mxu0 0.0
    %1332 = vmatprep.subr.mxu0 0.0
    %1333 = vmatpush1.msra.mxu0 0.0
    %1334 = vmatprep.subr.mxu0 0.0
    %1335 = vmatpush1.msra.mxu0 0.0
    %1336 = vmatprep.subr.mxu0 0.0
    %1337 = vmatpush1.msra.mxu0 0.0
    %1338 = vmatprep.subr.mxu0 0.0
    %1339 = vmatpush1.msra.mxu0 0.0
    %1340 = vmatprep.subr.mxu0 0.0
    %1341 = vmatpush1.msra.mxu0 0.0
    %1342 = vmatprep.subr.mxu0 0.0
    %1343 = vmatpush1.msra.mxu0 0.0
    %1344 = vmatprep.subr.mxu0 0.0
    %1345 = vmatpush1.msra.mxu0 0.0
    %1346 = vmatprep.subr.mxu0 0.0
    %1347 = vmatpush1.msra.mxu0 0.0
    %1348 = vmatprep.subr.mxu0 0.0
    %1349 = vmatpush1.msra.mxu0 0.0
    %1350 = vmatprep.subr.mxu0 0.0
    %1351 = vmatpush1.msra.mxu0 0.0
    %1352 = vmatprep.subr.mxu0 0.0
    %1353 = vmatpush1.msra.mxu0 0.0
    %1354 = vmatprep.subr.mxu0 0.0
    %1355 = vmatpush1.msra.mxu0 0.0
    %1356 = vmatprep.subr.mxu0 0.0
    %1357 = vmatpush1.msra.mxu0 0.0
    %1358 = vmatprep.subr.mxu0 0.0
    %1359 = vmatpush1.msra.mxu0 0.0
    %1360 = vmatprep.subr.mxu0 0.0
    %1361 = vmatpush1.msra.mxu0 0.0
    %1362 = vmatprep.mubr.f32.mxu0 0.0
    %1363 = vmatmul.mubr.f32.gmra.mrb[0].mxu0 %v1296
    %v1364 = vpop.f32.mrb[0].mxu0
    %v1365 = vadd.f32 0.0, %v1364
    %v1366 = vpop.f32.mrb[0].mxu0
    %v1367 = vadd.f32 0.0, %v1366
    %1368 = vdwg.mxu0
    %v1369 = vld [vmem:[%s4] sm:$0xff]
    %v1370 = vld [vmem:[%s4 + $0x8] sm:$0xff]
    %v1371 = vld [vmem:[%s4 + $0x10] sm:$0xff]
    %v1372 = vld [vmem:[%s4 + $0x18] sm:$0xff]
    %v1374 = vsel %vm586, %v1290, 0
    %1376 = vmatprep.subr.mxu0 %v1370
    %1377 = vmatpush1.msra.mxu0 %v1369
    %1378 = vmatprep.subr.mxu0 %v1372
    %1379 = vmatpush1.msra.mxu0 %v1371
    %1380 = vmatprep.subr.mxu0 0.0
    %1381 = vmatpush1.msra.mxu0 0.0
    %1382 = vmatprep.subr.mxu0 0.0
    %1383 = vmatpush1.msra.mxu0 0.0
    %1384 = vmatprep.subr.mxu0 0.0
    %1385 = vmatpush1.msra.mxu0 0.0
    %1386 = vmatprep.subr.mxu0 0.0
    %1387 = vmatpush1.msra.mxu0 0.0
    %1388 = vmatprep.subr.mxu0 0.0
    %1389 = vmatpush1.msra.mxu0 0.0
    %1390 = vmatprep.subr.mxu0 0.0
    %1391 = vmatpush1.msra.mxu0 0.0
    %1392 = vmatprep.subr.mxu0 0.0
    %1393 = vmatpush1.msra.mxu0 0.0
    %1394 = vmatprep.subr.mxu0 0.0
    %1395 = vmatpush1.msra.mxu0 0.0
    %1396 = vmatprep.subr.mxu0 0.0
    %1397 = vmatpush1.msra.mxu0 0.0
    %1398 = vmatprep.subr.mxu0 0.0
    %1399 = vmatpush1.msra.mxu0 0.0
    %1400 = vmatprep.subr.mxu0 0.0
    %1401 = vmatpush1.msra.mxu0 0.0
    %1402 = vmatprep.subr.mxu0 0.0
    %1403 = vmatpush1.msra.mxu0 0.0
    %1404 = vmatprep.subr.mxu0 0.0
    %1405 = vmatpush1.msra.mxu0 0.0
    %1406 = vmatprep.subr.mxu0 0.0
    %1407 = vmatpush1.msra.mxu0 0.0
    %1408 = vmatprep.subr.mxu0 0.0
    %1409 = vmatpush1.msra.mxu0 0.0
    %1410 = vmatprep.subr.mxu0 0.0
    %1411 = vmatpush1.msra.mxu0 0.0
    %1412 = vmatprep.subr.mxu0 0.0
    %1413 = vmatpush1.msra.mxu0 0.0
    %1414 = vmatprep.subr.mxu0 0.0
    %1415 = vmatpush1.msra.mxu0 0.0
    %1416 = vmatprep.subr.mxu0 0.0
    %1417 = vmatpush1.msra.mxu0 0.0
    %1418 = vmatprep.subr.mxu0 0.0
    %1419 = vmatpush1.msra.mxu0 0.0
    %1420 = vmatprep.subr.mxu0 0.0
    %1421 = vmatpush1.msra.mxu0 0.0
    %1422 = vmatprep.subr.mxu0 0.0
    %1423 = vmatpush1.msra.mxu0 0.0
    %1424 = vmatprep.subr.mxu0 0.0
    %1425 = vmatpush1.msra.mxu0 0.0
    %1426 = vmatprep.subr.mxu0 0.0
    %1427 = vmatpush1.msra.mxu0 0.0
    %1428 = vmatprep.subr.mxu0 0.0
    %1429 = vmatpush1.msra.mxu0 0.0
    %1430 = vmatprep.subr.mxu0 0.0
    %1431 = vmatpush1.msra.mxu0 0.0
    %1432 = vmatprep.subr.mxu0 0.0
    %1433 = vmatpush1.msra.mxu0 0.0
    %1434 = vmatprep.subr.mxu0 0.0
    %1435 = vmatpush1.msra.mxu0 0.0
    %1436 = vmatprep.subr.mxu0 0.0
    %1437 = vmatpush1.msra.mxu0 0.0
    %1438 = vmatprep.subr.mxu0 0.0
    %1439 = vmatpush1.msra.mxu0 0.0
    %1440 = vmatprep.mubr.f32.mxu0 0.0
    %1441 = vmatmul.mubr.f32.gmra.mrb[0].mxu0 %v1374
    %v1442 = vpop.f32.mrb[0].mxu0
    %v1443 = vadd.f32 0.0, %v1442
    %v1444 = vpop.f32.mrb[0].mxu0
    %v1445 = vadd.f32 0.0, %v1444
    %1446 = vdwg.mxu0
    %v1449 = vcombine.low %v1365, %v1367
    %v1451 = vmul.f32 %v751, %v1449
    %v1454 = vcombine.low %v1443, %v1445
    %v1456 = vmul.f32 %v1451, %v1454
    %s1457 = scalar_lea.vmem [#allocation2], 8
    %1458 = vst [vmem:[%s1457] sm:$0xff] %v1456
    // Predicated region
    $region46: #{tpu_custom_call.1} parent=1 // pred_check
      _
    $region47: #{tpu_custom_call.1} parent=1 // pred_check_branch
      %1460 = sbr.rel (0) target = $region49
    $region48: #{tpu_custom_call.1} parent=1 // pred_region
      %s1462 = ssub.s32 256, 256
      %1463 = vsyncadd [#allocation3], %s1462
      %s1464 = sshll.u32 [#allocation2], 4
      %s1465 = int_to_ptr.vmem [resolvable:$true] %s1464
      %1470 = dma.vmem_to_hbm [thread:$0]  %s1465, 256, %s11, [#allocation3], 128, 128, 8
    $region49: #{tpu_custom_call.1} parent=1 // pred_fallthru
      _
    // Predicated region
    $region50: #{tpu_custom_call.1} parent=1 // pred_check
      _
    $region51: #{tpu_custom_call.1} parent=1 // pred_check_branch
      %1472 = sbr.rel (0) target = $region53
    $region52: #{tpu_custom_call.1} parent=1 // pred_region
      %1473 = dma.done [#allocation3], 256
    $region53: #{tpu_custom_call.1} parent=1 // pred_fallthru
      _
    %1474 = vsyncpa [#allocation3], 1

</llo_original>
